<compile_context>
chip_gen: v7x
topology: tpu7x:2x2x1
jax: 0.10.0
libtpu: 0.0.40
codegen_flags: <defaults>
</compile_context>

<pallas_src>
import functools

import jax
import jax.numpy as jnp
from jax.experimental import pallas as pl
from jax.experimental.pallas import tpu as pltpu


# ---------------------------------------------------------------------------
# Host-side constant builders (0/1 selection / shift matrices, border masks).
# All depend only on static shapes, so XLA constant-folds them under jit.
# ---------------------------------------------------------------------------
def _pool_matrices(H, W):
    """avg_pool2d(2,2) and nearest 2x upsample as 0/1 selection matmuls."""
    P, Q = H // 2, W // 2
    y = jnp.arange(H * W) // W
    x = jnp.arange(H * W) % W
    p = jnp.arange(P * Q) // Q
    q = jnp.arange(P * Q) % Q
    pool = ((y[:, None] // 2 == p[None, :]) &
            (x[:, None] // 2 == q[None, :])).astype(jnp.float32)      # (HW, PQ)
    return pool, pool.T                                                # up = pool^T


def _edge_masks_and_offsets(H, W, kh, kw):
    """Per-tap border-validity masks + flattened source offsets for a dw conv."""
    y = jnp.arange(H * W) // W
    x = jnp.arange(H * W) % W
    masks, offsets = [], []
    for dy in range(kh):
        for dx in range(kw):
            oy, ox = dy - kh // 2, dx - kw // 2
            m = ((y + oy >= 0) & (y + oy < H) & (x + ox >= 0) & (x + ox < W))
            masks.append(m.astype(jnp.float32))
            offsets.append(oy * W + ox)              # source offset in flat lanes
    return jnp.stack(masks), tuple(offsets)          # (kh*kw, H*W), python ints


def _shift_matrices(H, W, kh, kw):
    """(kh*kw, HW, HW) 0/1 matrices: shifted_tap = x_flat @ S[tap] (zero borders)."""
    HW = H * W
    src = jnp.arange(HW)[:, None]
    dst = jnp.arange(HW)[None, :]
    dq, dp = dst % W, dst // W
    mats = []
    for dy in range(kh):
        for dx in range(kw):
            oy, ox = dy - kh // 2, dx - kw // 2
            valid = (dq + ox >= 0) & (dq + ox < W) & (dp + oy >= 0) & (dp + oy < H)
            mats.append(((src - dst == oy * W + ox) & valid).astype(jnp.float32))
    return jnp.stack(mats)


# ---------------------------------------------------------------------------
# Fused kernel: ghost1 (pw + dw3x3) -> DFC gate (pool, pw, 1x5 dw, 5x1 dw,
# sigmoid, 2x nearest upsample) -> gate multiply -> ghost2 (pw + dw3x3) ->
# identity residual.  One grid step handles `bt` images.
# ---------------------------------------------------------------------------
def _fused_kernel(x_ref, pool_ref, up_ref, m3_ref, sh_ref, sv_ref,
                  g1pw_w, g1pw_b, g1dw_w, g1dw_b,
                  dfcpw_w, dfcpw_b, dfch_w, dfch_b, dfcv_w, dfcv_b,
                  g2pw_w, g2pw_b, g2dw_w, g2dw_b,
                  out_ref, *, MID, C2, offs3):
    f32 = jnp.float32
    HW = x_ref.shape[-1]

    def act(a, kind):
        if kind == "relu":
            return jnp.maximum(a, 0.0)
        if kind == "sigmoid":
            return jax.nn.sigmoid(a)
        return a

    def pw(xcp, w_ref, b_ref, kind):
        # 1x1 conv + folded-BN bias (+ act) as one small MXU matmul on a
        # lane-dense (Cin, N) slab.
        y = jnp.dot(w_ref[...], xcp, preferred_element_type=f32) + b_ref[...]
        return act(y, kind)

    def dw_roll(xcp, w_ref, b_ref, kind):
        # Depthwise 3x3 on (C, H*W): statically rolled copies along the 256-lane
        # flattened axis (XLU), border-masked, FMA'd with per-channel tap weights.
        acc = None
        for t, off in enumerate(offs3):
            shift = (-off) % HW
            src = xcp if shift == 0 else pltpu.roll(xcp, shift, axis=1)
            term = src * m3_ref[t:t + 1, :] * w_ref[:, t:t + 1]
            acc = term if acc is None else acc + term
        return act(acc + b_ref[...], kind)

    def dw_mm(xcp, s_ref, w_ref, b_ref, kind):
        # Depthwise conv at the pooled 8x8 resolution: each tap's shift is a tiny
        # (PQ, PQ) 0/1 matmul (borders zeroed inside the matrix); MXU is idle here.
        acc = None
        for t in range(s_ref.shape[0]):
            src = jnp.dot(xcp, s_ref[t], preferred_element_type=f32)
            term = src * w_ref[:, t:t + 1]
            acc = term if acc is None else acc + term
        return act(acc + b_ref[...], kind)

    for i in range(x_ref.shape[0]):                       # bt images per step
        xin = x_ref[i]                                     # (C1, HW) lane-dense slab

        # ---- ghost1: 1x1 pw (+BN+ReLU), cheap dw3x3 (+BN+ReLU), concat ----
        x1 = pw(xin, g1pw_w, g1pw_b, "relu")               # (MID/2, HW)
        x2 = dw_roll(x1, g1dw_w, g1dw_b, "relu")           # (MID/2, HW)
        g1 = jnp.concatenate([x1, x2], axis=0)[:MID]       # (MID, HW)

        # ---- DFC gate: pool -> 1x1 -> (1,5) dw -> (5,1) dw -> sigmoid -> up ----
        pooled = jnp.dot(xin, pool_ref[...], preferred_element_type=f32) * 0.25
        s1 = pw(pooled, dfcpw_w, dfcpw_b, None)            # (MID, PQ)
        s2 = dw_mm(s1, sh_ref, dfch_w, dfch_b, None)       # (MID, PQ)
        s3 = dw_mm(s2, sv_ref, dfcv_w, dfcv_b, "sigmoid")  # (MID, PQ)
        gate = jnp.dot(s3, up_ref[...], preferred_element_type=f32)   # (MID, HW)

        gated = g1 * gate                                  # (MID, HW)

        # ---- ghost2: 1x1 pw (+BN), cheap dw3x3 (+BN), concat (no act) ----
        y1 = pw(gated, g2pw_w, g2pw_b, None)               # (C2/2, HW)
        y2 = dw_roll(y1, g2dw_w, g2dw_b, None)             # (C2/2, HW)
        g2 = jnp.concatenate([y1, y2], axis=0)[:C2]        # (C2, HW)

        # ---- identity shortcut (c1 == c2, stride == 1): re-read x, one store ----
        out_ref[i] = (g2 + x_ref[i]).astype(out_ref.dtype)


# ---------------------------------------------------------------------------
# Wrapper: single pallas_call over lane-dense (B, C, H*W) views.
# ---------------------------------------------------------------------------
def ghost_bottleneck_v2(x, p):
    B, C1, H, W = x.shape
    C2, MID = C1, 8
    assert H % 2 == 0 and W % 2 == 0, "avg_pool(2,2)/nearest-2x assume even maps"
    HW = H * W
    assert HW % 128 == 0, "flattened spatial axis must be lane-dense (mult of 128)"

    pool_mat, up_mat = _pool_matrices(H, W)                 # (HW,PQ), (PQ,HW)
    mask3, offs3 = _edge_masks_and_offsets(H, W, 3, 3)      # (9,HW)
    sh_mats = _shift_matrices(H // 2, W // 2, 1, 5)         # (5,PQ,PQ)
    sv_mats = _shift_matrices(H // 2, W // 2, 5, 1)         # (5,PQ,PQ)

    x_flat = x.reshape(B, C1, HW)                           # free contiguous reshape

    # Two fat parallel steps when possible (v7x has 2 TensorCores); otherwise one
    # step so single-core v5e/v6e pay no per-step pipeline overhead.
    bt = B // 2 if (B % 2 == 0 and B >= 2) else B
    grid = (B // bt,)

    def _const_spec(arr):
        return pl.BlockSpec(arr.shape, lambda b: (0,) * arr.ndim)

    consts = [pool_mat, up_mat, mask3, sh_mats, sv_mats,
              p["g1_pw_w"], p["g1_pw_b"], p["g1_dw_w"], p["g1_dw_b"],
              p["dfc_pw_w"], p["dfc_pw_b"], p["dfc_h_w"], p["dfc_h_b"],
              p["dfc_v_w"], p["dfc_v_b"], p["g2_pw_w"], p["g2_pw_b"],
              p["g2_dw_w"], p["g2_dw_b"]]

    kernel = functools.partial(_fused_kernel, MID=MID, C2=C2, offs3=offs3)

    out_flat = pl.pallas_call(
        kernel,
        out_shape=jax.ShapeDtypeStruct((B, C2, HW), jnp.float32),
        grid=grid,
        in_specs=[pl.BlockSpec((bt, C1, HW), lambda b: (b, 0, 0))]
                 + [_const_spec(a) for a in consts],
        out_specs=pl.BlockSpec((bt, C2, HW), lambda b: (b, 0, 0)),
        compiler_params=pltpu.CompilerParams(dimension_semantics=("parallel",)),
    )(x_flat, *consts)

    return out_flat.reshape(B, C2, H, W)


# ---------------------------------------------------------------------------
# Deterministic synthetic parameters: conv weights + eval-mode BN, with the BN
# scale folded into the conv weights (bias kept as a (C,1) VMEM column).
# ---------------------------------------------------------------------------
def init_params(key):
    keys = iter(jax.random.split(key, 40))

    def conv(shape):  # PyTorch layout (Cout, Cin/groups, kh, kw)
        fan_in = shape[1] * shape[2] * shape[3]
        return jax.random.normal(next(keys), shape, jnp.float32) / jnp.sqrt(float(fan_in))

    def bn(c):  # folded eval-mode BN -> (scale, bias as (C,1))
        gamma = 1.0 + 0.1 * jax.random.normal(next(keys), (c,), jnp.float32)
        beta = 0.1 * jax.random.normal(next(keys), (c,), jnp.float32)
        mean = 0.1 * jax.random.normal(next(keys), (c,), jnp.float32)
        var = jnp.abs(jax.random.normal(next(keys), (c,), jnp.float32)) + 0.5
        s = gamma / jnp.sqrt(var + 1e-5)
        return s, (beta - mean * s)[:, None]

    def fold_pw(w, s):   # (Cout, Cin, 1, 1) -> (Cout, Cin)
        return w[:, :, 0, 0] * s[:, None]

    def fold_dw(w, s):   # (C, 1, kh, kw) -> (C, kh*kw), tap index = dy*kw + dx
        return w[:, 0].reshape(w.shape[0], -1) * s[:, None]

    p = {}
    # ghost1.primary_conv: Conv2d(4, 4, 1) + BN + ReLU
    w = conv((4, 4, 1, 1)); s, b = bn(4); p["g1_pw_w"], p["g1_pw_b"] = fold_pw(w, s), b
    # ghost1.cheap_operation: Conv2d(4, 4, 3, groups=4) + BN + ReLU
    w = conv((4, 1, 3, 3)); s, b = bn(4); p["g1_dw_w"], p["g1_dw_b"] = fold_dw(w, s), b
    # DFC short_conv[0]: Conv2d(4, 8, 1) + BN
    w = conv((8, 4, 1, 1)); s, b = bn(8); p["dfc_pw_w"], p["dfc_pw_b"] = fold_pw(w, s), b
    # DFC short_conv[2]: Conv2d(8, 8, (1,5), groups=8, pad=(0,2)) + BN
    w = conv((8, 1, 1, 5)); s, b = bn(8); p["dfc_h_w"], p["dfc_h_b"] = fold_dw(w, s), b
    # DFC short_conv[4]: Conv2d(8, 8, (5,1), groups=8, pad=(2,0)) + BN
    w = conv((8, 1, 5, 1)); s, b = bn(8); p["dfc_v_w"], p["dfc_v_b"] = fold_dw(w, s), b
    # ghost2.primary_conv: Conv2d(8, 2, 1) + BN (act=None)
    w = conv((2, 8, 1, 1)); s, b = bn(2); p["g2_pw_w"], p["g2_pw_b"] = fold_pw(w, s), b
    # ghost2.cheap_operation: Conv2d(2, 2, 3, groups=2) + BN (act=None)
    w = conv((2, 1, 3, 3)); s, b = bn(2); p["g2_dw_w"], p["g2_dw_b"] = fold_dw(w, s), b
    return p


if __name__ == "__main__":
    key = jax.random.PRNGKey(0)
    pkey, xkey = jax.random.split(key)
    params = init_params(pkey)
    x = jax.random.normal(xkey, (2, 4, 16, 16), jnp.float32)   # NCHW, like PyTorch

    fwd = jax.jit(ghost_bottleneck_v2)
    out = jax.block_until_ready(fwd(x, params))

    assert out.shape == (2, 4, 16, 16) and out.dtype == jnp.float32
    assert bool(jnp.all(jnp.isfinite(out)))
    print("KERNEL_OK")
</pallas_src>

<mosaic_0001>
module attributes {stable_mosaic.version = 11 : i64} {
  func.func @_fused_kernel(%arg0: i32, %arg1: memref<1x4x256xf32, #tpu.memory_space<vmem>>, %arg2: memref<256x64xf32, #tpu.memory_space<vmem>>, %arg3: memref<64x256xf32, #tpu.memory_space<vmem>>, %arg4: memref<9x256xf32, #tpu.memory_space<vmem>>, %arg5: memref<5x64x64xf32, #tpu.memory_space<vmem>>, %arg6: memref<5x64x64xf32, #tpu.memory_space<vmem>>, %arg7: memref<4x4xf32, #tpu.memory_space<vmem>>, %arg8: memref<4x1xf32, #tpu.memory_space<vmem>>, %arg9: memref<4x9xf32, #tpu.memory_space<vmem>>, %arg10: memref<4x1xf32, #tpu.memory_space<vmem>>, %arg11: memref<8x4xf32, #tpu.memory_space<vmem>>, %arg12: memref<8x1xf32, #tpu.memory_space<vmem>>, %arg13: memref<8x5xf32, #tpu.memory_space<vmem>>, %arg14: memref<8x1xf32, #tpu.memory_space<vmem>>, %arg15: memref<8x5xf32, #tpu.memory_space<vmem>>, %arg16: memref<8x1xf32, #tpu.memory_space<vmem>>, %arg17: memref<2x8xf32, #tpu.memory_space<vmem>>, %arg18: memref<2x1xf32, #tpu.memory_space<vmem>>, %arg19: memref<2x9xf32, #tpu.memory_space<vmem>>, %arg20: memref<2x1xf32, #tpu.memory_space<vmem>>, %arg21: memref<1x4x256xf32, #tpu.memory_space<vmem>>) attributes {dimension_semantics = [#tpu.dimension_semantics<parallel>], iteration_bounds = array<i64: 2>, scalar_prefetch = 0 : i64, scratch_operands = 0 : i64, tpu.core_type = #tpu.core_type<tc>, window_params = [{transform_indices = @transform_0, window_bounds = array<i64: 1, 4, 256>}, {pipeline_mode = #tpu.pipeline_mode<synchronous>, transform_indices = @transform_1, window_bounds = array<i64: 256, 64>}, {pipeline_mode = #tpu.pipeline_mode<synchronous>, transform_indices = @transform_2, window_bounds = array<i64: 64, 256>}, {pipeline_mode = #tpu.pipeline_mode<synchronous>, transform_indices = @transform_3, window_bounds = array<i64: 9, 256>}, {pipeline_mode = #tpu.pipeline_mode<synchronous>, transform_indices = @transform_4, window_bounds = array<i64: 5, 64, 64>}, {pipeline_mode = #tpu.pipeline_mode<synchronous>, transform_indices = @transform_5, window_bounds = array<i64: 5, 64, 64>}, {pipeline_mode = #tpu.pipeline_mode<synchronous>, transform_indices = @transform_6, window_bounds = array<i64: 4, 4>}, {pipeline_mode = #tpu.pipeline_mode<synchronous>, transform_indices = @transform_7, window_bounds = array<i64: 4, 1>}, {pipeline_mode = #tpu.pipeline_mode<synchronous>, transform_indices = @transform_8, window_bounds = array<i64: 4, 9>}, {pipeline_mode = #tpu.pipeline_mode<synchronous>, transform_indices = @transform_9, window_bounds = array<i64: 4, 1>}, {pipeline_mode = #tpu.pipeline_mode<synchronous>, transform_indices = @transform_10, window_bounds = array<i64: 8, 4>}, {pipeline_mode = #tpu.pipeline_mode<synchronous>, transform_indices = @transform_11, window_bounds = array<i64: 8, 1>}, {pipeline_mode = #tpu.pipeline_mode<synchronous>, transform_indices = @transform_12, window_bounds = array<i64: 8, 5>}, {pipeline_mode = #tpu.pipeline_mode<synchronous>, transform_indices = @transform_13, window_bounds = array<i64: 8, 1>}, {pipeline_mode = #tpu.pipeline_mode<synchronous>, transform_indices = @transform_14, window_bounds = array<i64: 8, 5>}, {pipeline_mode = #tpu.pipeline_mode<synchronous>, transform_indices = @transform_15, window_bounds = array<i64: 8, 1>}, {pipeline_mode = #tpu.pipeline_mode<synchronous>, transform_indices = @transform_16, window_bounds = array<i64: 2, 8>}, {pipeline_mode = #tpu.pipeline_mode<synchronous>, transform_indices = @transform_17, window_bounds = array<i64: 2, 1>}, {pipeline_mode = #tpu.pipeline_mode<synchronous>, transform_indices = @transform_18, window_bounds = array<i64: 2, 9>}, {pipeline_mode = #tpu.pipeline_mode<synchronous>, transform_indices = @transform_19, window_bounds = array<i64: 2, 1>}, {transform_indices = @transform_20, window_bounds = array<i64: 1, 4, 256>}]} {
    %c0 = arith.constant 0 : index
    %c0_0 = arith.constant 0 : index
    %c0_1 = arith.constant 0 : index
    %0 = vector.load %arg1[%c0, %c0_0, %c0_1] : memref<1x4x256xf32, #tpu.memory_space<vmem>>, vector<1x4x256xf32>
    %1 = vector.shape_cast %0 : vector<1x4x256xf32> to vector<4x256xf32>
    %c0_2 = arith.constant 0 : index
    %c0_3 = arith.constant 0 : index
    %2 = vector.load %arg7[%c0_2, %c0_3] : memref<4x4xf32, #tpu.memory_space<vmem>>, vector<4x4xf32>
    %cst = arith.constant dense<0.000000e+00> : vector<4x256xf32>
    %3 = tpu.matmul %2, %1, %cst {dimension_numbers = #tpu.dot_dimension_numbers<[1], [0], [0], [1], [0, 0, 1, 1], [], []>} : vector<4x4xf32>, vector<4x256xf32>, vector<4x256xf32> -> vector<4x256xf32>
    %c0_4 = arith.constant 0 : index
    %c0_5 = arith.constant 0 : index
    %4 = vector.load %arg8[%c0_4, %c0_5] : memref<4x1xf32, #tpu.memory_space<vmem>>, vector<4x1xf32>
    %5 = vector.broadcast %4 : vector<4x1xf32> to vector<4x256xf32>
    %6 = arith.addf %3, %5 : vector<4x256xf32>
    %cst_6 = arith.constant 0.000000e+00 : f32
    %7 = vector.broadcast %cst_6 : f32 to vector<4x256xf32>
    %8 = arith.maximumf %6, %7 : vector<4x256xf32>
    %c17_i32 = arith.constant 17 : i32
    %9 = tpu.dynamic_rotate %8 by %c17_i32 dim 1 : vector<4x256xf32>, i32 -> vector<4x256xf32>
    %c0_7 = arith.constant 0 : index
    %c0_8 = arith.constant 0 : index
    %10 = vector.load %arg4[%c0_7, %c0_8] : memref<9x256xf32, #tpu.memory_space<vmem>>, vector<1x256xf32>
    %11 = vector.broadcast %10 : vector<1x256xf32> to vector<4x256xf32>
    %12 = arith.mulf %9, %11 : vector<4x256xf32>
    %c0_9 = arith.constant 0 : index
    %c0_10 = arith.constant 0 : index
    %13 = vector.load %arg9[%c0_9, %c0_10] : memref<4x9xf32, #tpu.memory_space<vmem>>, vector<4x1xf32>
    %14 = vector.broadcast %13 : vector<4x1xf32> to vector<4x256xf32>
    %15 = arith.mulf %12, %14 : vector<4x256xf32>
    %c16_i32 = arith.constant 16 : i32
    %16 = tpu.dynamic_rotate %8 by %c16_i32 dim 1 : vector<4x256xf32>, i32 -> vector<4x256xf32>
    %c1 = arith.constant 1 : index
    %c0_11 = arith.constant 0 : index
    %17 = vector.load %arg4[%c1, %c0_11] : memref<9x256xf32, #tpu.memory_space<vmem>>, vector<1x256xf32>
    %18 = vector.broadcast %17 : vector<1x256xf32> to vector<4x256xf32>
    %19 = arith.mulf %16, %18 : vector<4x256xf32>
    %c0_12 = arith.constant 0 : index
    %c1_13 = arith.constant 1 : index
    %20 = vector.load %arg9[%c0_12, %c1_13] : memref<4x9xf32, #tpu.memory_space<vmem>>, vector<4x1xf32>
    %21 = vector.broadcast %20 : vector<4x1xf32> to vector<4x256xf32>
    %22 = arith.mulf %19, %21 : vector<4x256xf32>
    %23 = arith.addf %15, %22 : vector<4x256xf32>
    %c15_i32 = arith.constant 15 : i32
    %24 = tpu.dynamic_rotate %8 by %c15_i32 dim 1 : vector<4x256xf32>, i32 -> vector<4x256xf32>
    %c2 = arith.constant 2 : index
    %c0_14 = arith.constant 0 : index
    %25 = vector.load %arg4[%c2, %c0_14] : memref<9x256xf32, #tpu.memory_space<vmem>>, vector<1x256xf32>
    %26 = vector.broadcast %25 : vector<1x256xf32> to vector<4x256xf32>
    %27 = arith.mulf %24, %26 : vector<4x256xf32>
    %c0_15 = arith.constant 0 : index
    %c2_16 = arith.constant 2 : index
    %28 = vector.load %arg9[%c0_15, %c2_16] : memref<4x9xf32, #tpu.memory_space<vmem>>, vector<4x1xf32>
    %29 = vector.broadcast %28 : vector<4x1xf32> to vector<4x256xf32>
    %30 = arith.mulf %27, %29 : vector<4x256xf32>
    %31 = arith.addf %23, %30 : vector<4x256xf32>
    %c1_i32 = arith.constant 1 : i32
    %32 = tpu.dynamic_rotate %8 by %c1_i32 dim 1 : vector<4x256xf32>, i32 -> vector<4x256xf32>
    %c3 = arith.constant 3 : index
    %c0_17 = arith.constant 0 : index
    %33 = vector.load %arg4[%c3, %c0_17] : memref<9x256xf32, #tpu.memory_space<vmem>>, vector<1x256xf32>
    %34 = vector.broadcast %33 : vector<1x256xf32> to vector<4x256xf32>
    %35 = arith.mulf %32, %34 : vector<4x256xf32>
    %c0_18 = arith.constant 0 : index
    %c3_19 = arith.constant 3 : index
    %36 = vector.load %arg9[%c0_18, %c3_19] : memref<4x9xf32, #tpu.memory_space<vmem>>, vector<4x1xf32>
    %37 = vector.broadcast %36 : vector<4x1xf32> to vector<4x256xf32>
    %38 = arith.mulf %35, %37 : vector<4x256xf32>
    %39 = arith.addf %31, %38 : vector<4x256xf32>
    %c4 = arith.constant 4 : index
    %c0_20 = arith.constant 0 : index
    %40 = vector.load %arg4[%c4, %c0_20] : memref<9x256xf32, #tpu.memory_space<vmem>>, vector<1x256xf32>
    %41 = vector.broadcast %40 : vector<1x256xf32> to vector<4x256xf32>
    %42 = arith.mulf %8, %41 : vector<4x256xf32>
    %c0_21 = arith.constant 0 : index
    %c4_22 = arith.constant 4 : index
    %43 = vector.load %arg9[%c0_21, %c4_22] : memref<4x9xf32, #tpu.memory_space<vmem>>, vector<4x1xf32>
    %44 = vector.broadcast %43 : vector<4x1xf32> to vector<4x256xf32>
    %45 = arith.mulf %42, %44 : vector<4x256xf32>
    %46 = arith.addf %39, %45 : vector<4x256xf32>
    %c255_i32 = arith.constant 255 : i32
    %47 = tpu.dynamic_rotate %8 by %c255_i32 dim 1 : vector<4x256xf32>, i32 -> vector<4x256xf32>
    %c5 = arith.constant 5 : index
    %c0_23 = arith.constant 0 : index
    %48 = vector.load %arg4[%c5, %c0_23] : memref<9x256xf32, #tpu.memory_space<vmem>>, vector<1x256xf32>
    %49 = vector.broadcast %48 : vector<1x256xf32> to vector<4x256xf32>
    %50 = arith.mulf %47, %49 : vector<4x256xf32>
    %c0_24 = arith.constant 0 : index
    %c5_25 = arith.constant 5 : index
    %51 = vector.load %arg9[%c0_24, %c5_25] : memref<4x9xf32, #tpu.memory_space<vmem>>, vector<4x1xf32>
    %52 = vector.broadcast %51 : vector<4x1xf32> to vector<4x256xf32>
    %53 = arith.mulf %50, %52 : vector<4x256xf32>
    %54 = arith.addf %46, %53 : vector<4x256xf32>
    %c241_i32 = arith.constant 241 : i32
    %55 = tpu.dynamic_rotate %8 by %c241_i32 dim 1 : vector<4x256xf32>, i32 -> vector<4x256xf32>
    %c6 = arith.constant 6 : index
    %c0_26 = arith.constant 0 : index
    %56 = vector.load %arg4[%c6, %c0_26] : memref<9x256xf32, #tpu.memory_space<vmem>>, vector<1x256xf32>
    %57 = vector.broadcast %56 : vector<1x256xf32> to vector<4x256xf32>
    %58 = arith.mulf %55, %57 : vector<4x256xf32>
    %c0_27 = arith.constant 0 : index
    %c6_28 = arith.constant 6 : index
    %59 = vector.load %arg9[%c0_27, %c6_28] : memref<4x9xf32, #tpu.memory_space<vmem>>, vector<4x1xf32>
    %60 = vector.broadcast %59 : vector<4x1xf32> to vector<4x256xf32>
    %61 = arith.mulf %58, %60 : vector<4x256xf32>
    %62 = arith.addf %54, %61 : vector<4x256xf32>
    %c240_i32 = arith.constant 240 : i32
    %63 = tpu.dynamic_rotate %8 by %c240_i32 dim 1 : vector<4x256xf32>, i32 -> vector<4x256xf32>
    %c7 = arith.constant 7 : index
    %c0_29 = arith.constant 0 : index
    %64 = vector.load %arg4[%c7, %c0_29] : memref<9x256xf32, #tpu.memory_space<vmem>>, vector<1x256xf32>
    %65 = vector.broadcast %64 : vector<1x256xf32> to vector<4x256xf32>
    %66 = arith.mulf %63, %65 : vector<4x256xf32>
    %c0_30 = arith.constant 0 : index
    %c7_31 = arith.constant 7 : index
    %67 = vector.load %arg9[%c0_30, %c7_31] : memref<4x9xf32, #tpu.memory_space<vmem>>, vector<4x1xf32>
    %68 = vector.broadcast %67 : vector<4x1xf32> to vector<4x256xf32>
    %69 = arith.mulf %66, %68 : vector<4x256xf32>
    %70 = arith.addf %62, %69 : vector<4x256xf32>
    %c239_i32 = arith.constant 239 : i32
    %71 = tpu.dynamic_rotate %8 by %c239_i32 dim 1 : vector<4x256xf32>, i32 -> vector<4x256xf32>
    %c8 = arith.constant 8 : index
    %c0_32 = arith.constant 0 : index
    %72 = vector.load %arg4[%c8, %c0_32] : memref<9x256xf32, #tpu.memory_space<vmem>>, vector<1x256xf32>
    %73 = vector.broadcast %72 : vector<1x256xf32> to vector<4x256xf32>
    %74 = arith.mulf %71, %73 : vector<4x256xf32>
    %c0_33 = arith.constant 0 : index
    %c8_34 = arith.constant 8 : index
    %75 = vector.load %arg9[%c0_33, %c8_34] : memref<4x9xf32, #tpu.memory_space<vmem>>, vector<4x1xf32>
    %76 = vector.broadcast %75 : vector<4x1xf32> to vector<4x256xf32>
    %77 = arith.mulf %74, %76 : vector<4x256xf32>
    %78 = arith.addf %70, %77 : vector<4x256xf32>
    %c0_35 = arith.constant 0 : index
    %c0_36 = arith.constant 0 : index
    %79 = vector.load %arg10[%c0_35, %c0_36] : memref<4x1xf32, #tpu.memory_space<vmem>>, vector<4x1xf32>
    %80 = vector.broadcast %79 : vector<4x1xf32> to vector<4x256xf32>
    %81 = arith.addf %78, %80 : vector<4x256xf32>
    %cst_37 = arith.constant 0.000000e+00 : f32
    %82 = vector.broadcast %cst_37 : f32 to vector<4x256xf32>
    %83 = arith.maximumf %81, %82 : vector<4x256xf32>
    %84 = tpu.concatenate %8, %83 in 0 : vector<4x256xf32>, vector<4x256xf32> -> vector<8x256xf32>
    %c0_38 = arith.constant 0 : index
    %c0_39 = arith.constant 0 : index
    %85 = vector.load %arg2[%c0_38, %c0_39] : memref<256x64xf32, #tpu.memory_space<vmem>>, vector<256x64xf32>
    %cst_40 = arith.constant dense<0.000000e+00> : vector<4x64xf32>
    %86 = tpu.matmul %1, %85, %cst_40 {dimension_numbers = #tpu.dot_dimension_numbers<[1], [0], [0], [1], [0, 0, 1, 1], [], []>} : vector<4x256xf32>, vector<256x64xf32>, vector<4x64xf32> -> vector<4x64xf32>
    %cst_41 = arith.constant 2.500000e-01 : f32
    %87 = vector.broadcast %cst_41 : f32 to vector<4x64xf32>
    %88 = arith.mulf %86, %87 : vector<4x64xf32>
    %c0_42 = arith.constant 0 : index
    %c0_43 = arith.constant 0 : index
    %89 = vector.load %arg11[%c0_42, %c0_43] : memref<8x4xf32, #tpu.memory_space<vmem>>, vector<8x4xf32>
    %cst_44 = arith.constant dense<0.000000e+00> : vector<8x64xf32>
    %90 = tpu.matmul %89, %88, %cst_44 {dimension_numbers = #tpu.dot_dimension_numbers<[1], [0], [0], [1], [0, 0, 1, 1], [], []>} : vector<8x4xf32>, vector<4x64xf32>, vector<8x64xf32> -> vector<8x64xf32>
    %c0_45 = arith.constant 0 : index
    %c0_46 = arith.constant 0 : index
    %91 = vector.load %arg12[%c0_45, %c0_46] : memref<8x1xf32, #tpu.memory_space<vmem>>, vector<8x1xf32>
    %92 = vector.broadcast %91 : vector<8x1xf32> to vector<8x64xf32>
    %93 = arith.addf %90, %92 : vector<8x64xf32>
    %c0_47 = arith.constant 0 : index
    %c0_48 = arith.constant 0 : index
    %c0_49 = arith.constant 0 : index
    %94 = vector.load %arg5[%c0_47, %c0_48, %c0_49] : memref<5x64x64xf32, #tpu.memory_space<vmem>>, vector<1x64x64xf32>
    %95 = vector.shape_cast %94 : vector<1x64x64xf32> to vector<64x64xf32>
    %cst_50 = arith.constant dense<0.000000e+00> : vector<8x64xf32>
    %96 = tpu.matmul %93, %95, %cst_50 {dimension_numbers = #tpu.dot_dimension_numbers<[1], [0], [0], [1], [0, 0, 1, 1], [], []>} : vector<8x64xf32>, vector<64x64xf32>, vector<8x64xf32> -> vector<8x64xf32>
    %c0_51 = arith.constant 0 : index
    %c0_52 = arith.constant 0 : index
    %97 = vector.load %arg13[%c0_51, %c0_52] : memref<8x5xf32, #tpu.memory_space<vmem>>, vector<8x1xf32>
    %98 = vector.broadcast %97 : vector<8x1xf32> to vector<8x64xf32>
    %99 = arith.mulf %96, %98 : vector<8x64xf32>
    %c1_53 = arith.constant 1 : index
    %c0_54 = arith.constant 0 : index
    %c0_55 = arith.constant 0 : index
    %100 = vector.load %arg5[%c1_53, %c0_54, %c0_55] : memref<5x64x64xf32, #tpu.memory_space<vmem>>, vector<1x64x64xf32>
    %101 = vector.shape_cast %100 : vector<1x64x64xf32> to vector<64x64xf32>
    %cst_56 = arith.constant dense<0.000000e+00> : vector<8x64xf32>
    %102 = tpu.matmul %93, %101, %cst_56 {dimension_numbers = #tpu.dot_dimension_numbers<[1], [0], [0], [1], [0, 0, 1, 1], [], []>} : vector<8x64xf32>, vector<64x64xf32>, vector<8x64xf32> -> vector<8x64xf32>
    %c0_57 = arith.constant 0 : index
    %c1_58 = arith.constant 1 : index
    %103 = vector.load %arg13[%c0_57, %c1_58] : memref<8x5xf32, #tpu.memory_space<vmem>>, vector<8x1xf32>
    %104 = vector.broadcast %103 : vector<8x1xf32> to vector<8x64xf32>
    %105 = arith.mulf %102, %104 : vector<8x64xf32>
    %106 = arith.addf %99, %105 : vector<8x64xf32>
    %c2_59 = arith.constant 2 : index
    %c0_60 = arith.constant 0 : index
    %c0_61 = arith.constant 0 : index
    %107 = vector.load %arg5[%c2_59, %c0_60, %c0_61] : memref<5x64x64xf32, #tpu.memory_space<vmem>>, vector<1x64x64xf32>
    %108 = vector.shape_cast %107 : vector<1x64x64xf32> to vector<64x64xf32>
    %cst_62 = arith.constant dense<0.000000e+00> : vector<8x64xf32>
    %109 = tpu.matmul %93, %108, %cst_62 {dimension_numbers = #tpu.dot_dimension_numbers<[1], [0], [0], [1], [0, 0, 1, 1], [], []>} : vector<8x64xf32>, vector<64x64xf32>, vector<8x64xf32> -> vector<8x64xf32>
    %c0_63 = arith.constant 0 : index
    %c2_64 = arith.constant 2 : index
    %110 = vector.load %arg13[%c0_63, %c2_64] : memref<8x5xf32, #tpu.memory_space<vmem>>, vector<8x1xf32>
    %111 = vector.broadcast %110 : vector<8x1xf32> to vector<8x64xf32>
    %112 = arith.mulf %109, %111 : vector<8x64xf32>
    %113 = arith.addf %106, %112 : vector<8x64xf32>
    %c3_65 = arith.constant 3 : index
    %c0_66 = arith.constant 0 : index
    %c0_67 = arith.constant 0 : index
    %114 = vector.load %arg5[%c3_65, %c0_66, %c0_67] : memref<5x64x64xf32, #tpu.memory_space<vmem>>, vector<1x64x64xf32>
    %115 = vector.shape_cast %114 : vector<1x64x64xf32> to vector<64x64xf32>
    %cst_68 = arith.constant dense<0.000000e+00> : vector<8x64xf32>
    %116 = tpu.matmul %93, %115, %cst_68 {dimension_numbers = #tpu.dot_dimension_numbers<[1], [0], [0], [1], [0, 0, 1, 1], [], []>} : vector<8x64xf32>, vector<64x64xf32>, vector<8x64xf32> -> vector<8x64xf32>
    %c0_69 = arith.constant 0 : index
    %c3_70 = arith.constant 3 : index
    %117 = vector.load %arg13[%c0_69, %c3_70] : memref<8x5xf32, #tpu.memory_space<vmem>>, vector<8x1xf32>
    %118 = vector.broadcast %117 : vector<8x1xf32> to vector<8x64xf32>
    %119 = arith.mulf %116, %118 : vector<8x64xf32>
    %120 = arith.addf %113, %119 : vector<8x64xf32>
    %c4_71 = arith.constant 4 : index
    %c0_72 = arith.constant 0 : index
    %c0_73 = arith.constant 0 : index
    %121 = vector.load %arg5[%c4_71, %c0_72, %c0_73] : memref<5x64x64xf32, #tpu.memory_space<vmem>>, vector<1x64x64xf32>
    %122 = vector.shape_cast %121 : vector<1x64x64xf32> to vector<64x64xf32>
    %cst_74 = arith.constant dense<0.000000e+00> : vector<8x64xf32>
    %123 = tpu.matmul %93, %122, %cst_74 {dimension_numbers = #tpu.dot_dimension_numbers<[1], [0], [0], [1], [0, 0, 1, 1], [], []>} : vector<8x64xf32>, vector<64x64xf32>, vector<8x64xf32> -> vector<8x64xf32>
    %c0_75 = arith.constant 0 : index
    %c4_76 = arith.constant 4 : index
    %124 = vector.load %arg13[%c0_75, %c4_76] : memref<8x5xf32, #tpu.memory_space<vmem>>, vector<8x1xf32>
    %125 = vector.broadcast %124 : vector<8x1xf32> to vector<8x64xf32>
    %126 = arith.mulf %123, %125 : vector<8x64xf32>
    %127 = arith.addf %120, %126 : vector<8x64xf32>
    %c0_77 = arith.constant 0 : index
    %c0_78 = arith.constant 0 : index
    %128 = vector.load %arg14[%c0_77, %c0_78] : memref<8x1xf32, #tpu.memory_space<vmem>>, vector<8x1xf32>
    %129 = vector.broadcast %128 : vector<8x1xf32> to vector<8x64xf32>
    %130 = arith.addf %127, %129 : vector<8x64xf32>
    %c0_79 = arith.constant 0 : index
    %c0_80 = arith.constant 0 : index
    %c0_81 = arith.constant 0 : index
    %131 = vector.load %arg6[%c0_79, %c0_80, %c0_81] : memref<5x64x64xf32, #tpu.memory_space<vmem>>, vector<1x64x64xf32>
    %132 = vector.shape_cast %131 : vector<1x64x64xf32> to vector<64x64xf32>
    %cst_82 = arith.constant dense<0.000000e+00> : vector<8x64xf32>
    %133 = tpu.matmul %130, %132, %cst_82 {dimension_numbers = #tpu.dot_dimension_numbers<[1], [0], [0], [1], [0, 0, 1, 1], [], []>} : vector<8x64xf32>, vector<64x64xf32>, vector<8x64xf32> -> vector<8x64xf32>
    %c0_83 = arith.constant 0 : index
    %c0_84 = arith.constant 0 : index
    %134 = vector.load %arg15[%c0_83, %c0_84] : memref<8x5xf32, #tpu.memory_space<vmem>>, vector<8x1xf32>
    %135 = vector.broadcast %134 : vector<8x1xf32> to vector<8x64xf32>
    %136 = arith.mulf %133, %135 : vector<8x64xf32>
    %c1_85 = arith.constant 1 : index
    %c0_86 = arith.constant 0 : index
    %c0_87 = arith.constant 0 : index
    %137 = vector.load %arg6[%c1_85, %c0_86, %c0_87] : memref<5x64x64xf32, #tpu.memory_space<vmem>>, vector<1x64x64xf32>
    %138 = vector.shape_cast %137 : vector<1x64x64xf32> to vector<64x64xf32>
    %cst_88 = arith.constant dense<0.000000e+00> : vector<8x64xf32>
    %139 = tpu.matmul %130, %138, %cst_88 {dimension_numbers = #tpu.dot_dimension_numbers<[1], [0], [0], [1], [0, 0, 1, 1], [], []>} : vector<8x64xf32>, vector<64x64xf32>, vector<8x64xf32> -> vector<8x64xf32>
    %c0_89 = arith.constant 0 : index
    %c1_90 = arith.constant 1 : index
    %140 = vector.load %arg15[%c0_89, %c1_90] : memref<8x5xf32, #tpu.memory_space<vmem>>, vector<8x1xf32>
    %141 = vector.broadcast %140 : vector<8x1xf32> to vector<8x64xf32>
    %142 = arith.mulf %139, %141 : vector<8x64xf32>
    %143 = arith.addf %136, %142 : vector<8x64xf32>
    %c2_91 = arith.constant 2 : index
    %c0_92 = arith.constant 0 : index
    %c0_93 = arith.constant 0 : index
    %144 = vector.load %arg6[%c2_91, %c0_92, %c0_93] : memref<5x64x64xf32, #tpu.memory_space<vmem>>, vector<1x64x64xf32>
    %145 = vector.shape_cast %144 : vector<1x64x64xf32> to vector<64x64xf32>
    %cst_94 = arith.constant dense<0.000000e+00> : vector<8x64xf32>
    %146 = tpu.matmul %130, %145, %cst_94 {dimension_numbers = #tpu.dot_dimension_numbers<[1], [0], [0], [1], [0, 0, 1, 1], [], []>} : vector<8x64xf32>, vector<64x64xf32>, vector<8x64xf32> -> vector<8x64xf32>
    %c0_95 = arith.constant 0 : index
    %c2_96 = arith.constant 2 : index
    %147 = vector.load %arg15[%c0_95, %c2_96] : memref<8x5xf32, #tpu.memory_space<vmem>>, vector<8x1xf32>
    %148 = vector.broadcast %147 : vector<8x1xf32> to vector<8x64xf32>
    %149 = arith.mulf %146, %148 : vector<8x64xf32>
    %150 = arith.addf %143, %149 : vector<8x64xf32>
    %c3_97 = arith.constant 3 : index
    %c0_98 = arith.constant 0 : index
    %c0_99 = arith.constant 0 : index
    %151 = vector.load %arg6[%c3_97, %c0_98, %c0_99] : memref<5x64x64xf32, #tpu.memory_space<vmem>>, vector<1x64x64xf32>
    %152 = vector.shape_cast %151 : vector<1x64x64xf32> to vector<64x64xf32>
    %cst_100 = arith.constant dense<0.000000e+00> : vector<8x64xf32>
    %153 = tpu.matmul %130, %152, %cst_100 {dimension_numbers = #tpu.dot_dimension_numbers<[1], [0], [0], [1], [0, 0, 1, 1], [], []>} : vector<8x64xf32>, vector<64x64xf32>, vector<8x64xf32> -> vector<8x64xf32>
    %c0_101 = arith.constant 0 : index
    %c3_102 = arith.constant 3 : index
    %154 = vector.load %arg15[%c0_101, %c3_102] : memref<8x5xf32, #tpu.memory_space<vmem>>, vector<8x1xf32>
    %155 = vector.broadcast %154 : vector<8x1xf32> to vector<8x64xf32>
    %156 = arith.mulf %153, %155 : vector<8x64xf32>
    %157 = arith.addf %150, %156 : vector<8x64xf32>
    %c4_103 = arith.constant 4 : index
    %c0_104 = arith.constant 0 : index
    %c0_105 = arith.constant 0 : index
    %158 = vector.load %arg6[%c4_103, %c0_104, %c0_105] : memref<5x64x64xf32, #tpu.memory_space<vmem>>, vector<1x64x64xf32>
    %159 = vector.shape_cast %158 : vector<1x64x64xf32> to vector<64x64xf32>
    %cst_106 = arith.constant dense<0.000000e+00> : vector<8x64xf32>
    %160 = tpu.matmul %130, %159, %cst_106 {dimension_numbers = #tpu.dot_dimension_numbers<[1], [0], [0], [1], [0, 0, 1, 1], [], []>} : vector<8x64xf32>, vector<64x64xf32>, vector<8x64xf32> -> vector<8x64xf32>
    %c0_107 = arith.constant 0 : index
    %c4_108 = arith.constant 4 : index
    %161 = vector.load %arg15[%c0_107, %c4_108] : memref<8x5xf32, #tpu.memory_space<vmem>>, vector<8x1xf32>
    %162 = vector.broadcast %161 : vector<8x1xf32> to vector<8x64xf32>
    %163 = arith.mulf %160, %162 : vector<8x64xf32>
    %164 = arith.addf %157, %163 : vector<8x64xf32>
    %c0_109 = arith.constant 0 : index
    %c0_110 = arith.constant 0 : index
    %165 = vector.load %arg16[%c0_109, %c0_110] : memref<8x1xf32, #tpu.memory_space<vmem>>, vector<8x1xf32>
    %166 = vector.broadcast %165 : vector<8x1xf32> to vector<8x64xf32>
    %167 = arith.addf %164, %166 : vector<8x64xf32>
    %168 = arith.negf %167 : vector<8x64xf32>
    %169 = math.exp %168 : vector<8x64xf32>
    %cst_111 = arith.constant 1.000000e+00 : f32
    %170 = vector.broadcast %cst_111 : f32 to vector<8x64xf32>
    %171 = arith.addf %170, %169 : vector<8x64xf32>
    %172 = arith.divf %170, %171 : vector<8x64xf32>
    %c0_112 = arith.constant 0 : index
    %c0_113 = arith.constant 0 : index
    %173 = vector.load %arg3[%c0_112, %c0_113] : memref<64x256xf32, #tpu.memory_space<vmem>>, vector<64x256xf32>
    %cst_114 = arith.constant dense<0.000000e+00> : vector<8x256xf32>
    %174 = tpu.matmul %172, %173, %cst_114 {dimension_numbers = #tpu.dot_dimension_numbers<[1], [0], [0], [1], [0, 0, 1, 1], [], []>} : vector<8x64xf32>, vector<64x256xf32>, vector<8x256xf32> -> vector<8x256xf32>
    %175 = arith.mulf %84, %174 : vector<8x256xf32>
    %c0_115 = arith.constant 0 : index
    %c0_116 = arith.constant 0 : index
    %176 = vector.load %arg17[%c0_115, %c0_116] : memref<2x8xf32, #tpu.memory_space<vmem>>, vector<2x8xf32>
    %cst_117 = arith.constant dense<0.000000e+00> : vector<2x256xf32>
    %177 = tpu.matmul %176, %175, %cst_117 {dimension_numbers = #tpu.dot_dimension_numbers<[1], [0], [0], [1], [0, 0, 1, 1], [], []>} : vector<2x8xf32>, vector<8x256xf32>, vector<2x256xf32> -> vector<2x256xf32>
    %c0_118 = arith.constant 0 : index
    %c0_119 = arith.constant 0 : index
    %178 = vector.load %arg18[%c0_118, %c0_119] : memref<2x1xf32, #tpu.memory_space<vmem>>, vector<2x1xf32>
    %179 = vector.broadcast %178 : vector<2x1xf32> to vector<2x256xf32>
    %180 = arith.addf %177, %179 : vector<2x256xf32>
    %c17_i32_120 = arith.constant 17 : i32
    %181 = tpu.dynamic_rotate %180 by %c17_i32_120 dim 1 : vector<2x256xf32>, i32 -> vector<2x256xf32>
    %c0_121 = arith.constant 0 : index
    %c0_122 = arith.constant 0 : index
    %182 = vector.load %arg4[%c0_121, %c0_122] : memref<9x256xf32, #tpu.memory_space<vmem>>, vector<1x256xf32>
    %183 = vector.broadcast %182 : vector<1x256xf32> to vector<2x256xf32>
    %184 = arith.mulf %181, %183 : vector<2x256xf32>
    %c0_123 = arith.constant 0 : index
    %c0_124 = arith.constant 0 : index
    %185 = vector.load %arg19[%c0_123, %c0_124] : memref<2x9xf32, #tpu.memory_space<vmem>>, vector<2x1xf32>
    %186 = vector.broadcast %185 : vector<2x1xf32> to vector<2x256xf32>
    %187 = arith.mulf %184, %186 : vector<2x256xf32>
    %c16_i32_125 = arith.constant 16 : i32
    %188 = tpu.dynamic_rotate %180 by %c16_i32_125 dim 1 : vector<2x256xf32>, i32 -> vector<2x256xf32>
    %c1_126 = arith.constant 1 : index
    %c0_127 = arith.constant 0 : index
    %189 = vector.load %arg4[%c1_126, %c0_127] : memref<9x256xf32, #tpu.memory_space<vmem>>, vector<1x256xf32>
    %190 = vector.broadcast %189 : vector<1x256xf32> to vector<2x256xf32>
    %191 = arith.mulf %188, %190 : vector<2x256xf32>
    %c0_128 = arith.constant 0 : index
    %c1_129 = arith.constant 1 : index
    %192 = vector.load %arg19[%c0_128, %c1_129] : memref<2x9xf32, #tpu.memory_space<vmem>>, vector<2x1xf32>
    %193 = vector.broadcast %192 : vector<2x1xf32> to vector<2x256xf32>
    %194 = arith.mulf %191, %193 : vector<2x256xf32>
    %195 = arith.addf %187, %194 : vector<2x256xf32>
    %c15_i32_130 = arith.constant 15 : i32
    %196 = tpu.dynamic_rotate %180 by %c15_i32_130 dim 1 : vector<2x256xf32>, i32 -> vector<2x256xf32>
    %c2_131 = arith.constant 2 : index
    %c0_132 = arith.constant 0 : index
    %197 = vector.load %arg4[%c2_131, %c0_132] : memref<9x256xf32, #tpu.memory_space<vmem>>, vector<1x256xf32>
    %198 = vector.broadcast %197 : vector<1x256xf32> to vector<2x256xf32>
    %199 = arith.mulf %196, %198 : vector<2x256xf32>
    %c0_133 = arith.constant 0 : index
    %c2_134 = arith.constant 2 : index
    %200 = vector.load %arg19[%c0_133, %c2_134] : memref<2x9xf32, #tpu.memory_space<vmem>>, vector<2x1xf32>
    %201 = vector.broadcast %200 : vector<2x1xf32> to vector<2x256xf32>
    %202 = arith.mulf %199, %201 : vector<2x256xf32>
    %203 = arith.addf %195, %202 : vector<2x256xf32>
    %c1_i32_135 = arith.constant 1 : i32
    %204 = tpu.dynamic_rotate %180 by %c1_i32_135 dim 1 : vector<2x256xf32>, i32 -> vector<2x256xf32>
    %c3_136 = arith.constant 3 : index
    %c0_137 = arith.constant 0 : index
    %205 = vector.load %arg4[%c3_136, %c0_137] : memref<9x256xf32, #tpu.memory_space<vmem>>, vector<1x256xf32>
    %206 = vector.broadcast %205 : vector<1x256xf32> to vector<2x256xf32>
    %207 = arith.mulf %204, %206 : vector<2x256xf32>
    %c0_138 = arith.constant 0 : index
    %c3_139 = arith.constant 3 : index
    %208 = vector.load %arg19[%c0_138, %c3_139] : memref<2x9xf32, #tpu.memory_space<vmem>>, vector<2x1xf32>
    %209 = vector.broadcast %208 : vector<2x1xf32> to vector<2x256xf32>
    %210 = arith.mulf %207, %209 : vector<2x256xf32>
    %211 = arith.addf %203, %210 : vector<2x256xf32>
    %c4_140 = arith.constant 4 : index
    %c0_141 = arith.constant 0 : index
    %212 = vector.load %arg4[%c4_140, %c0_141] : memref<9x256xf32, #tpu.memory_space<vmem>>, vector<1x256xf32>
    %213 = vector.broadcast %212 : vector<1x256xf32> to vector<2x256xf32>
    %214 = arith.mulf %180, %213 : vector<2x256xf32>
    %c0_142 = arith.constant 0 : index
    %c4_143 = arith.constant 4 : index
    %215 = vector.load %arg19[%c0_142, %c4_143] : memref<2x9xf32, #tpu.memory_space<vmem>>, vector<2x1xf32>
    %216 = vector.broadcast %215 : vector<2x1xf32> to vector<2x256xf32>
    %217 = arith.mulf %214, %216 : vector<2x256xf32>
    %218 = arith.addf %211, %217 : vector<2x256xf32>
    %c255_i32_144 = arith.constant 255 : i32
    %219 = tpu.dynamic_rotate %180 by %c255_i32_144 dim 1 : vector<2x256xf32>, i32 -> vector<2x256xf32>
    %c5_145 = arith.constant 5 : index
    %c0_146 = arith.constant 0 : index
    %220 = vector.load %arg4[%c5_145, %c0_146] : memref<9x256xf32, #tpu.memory_space<vmem>>, vector<1x256xf32>
    %221 = vector.broadcast %220 : vector<1x256xf32> to vector<2x256xf32>
    %222 = arith.mulf %219, %221 : vector<2x256xf32>
    %c0_147 = arith.constant 0 : index
    %c5_148 = arith.constant 5 : index
    %223 = vector.load %arg19[%c0_147, %c5_148] : memref<2x9xf32, #tpu.memory_space<vmem>>, vector<2x1xf32>
    %224 = vector.broadcast %223 : vector<2x1xf32> to vector<2x256xf32>
    %225 = arith.mulf %222, %224 : vector<2x256xf32>
    %226 = arith.addf %218, %225 : vector<2x256xf32>
    %c241_i32_149 = arith.constant 241 : i32
    %227 = tpu.dynamic_rotate %180 by %c241_i32_149 dim 1 : vector<2x256xf32>, i32 -> vector<2x256xf32>
    %c6_150 = arith.constant 6 : index
    %c0_151 = arith.constant 0 : index
    %228 = vector.load %arg4[%c6_150, %c0_151] : memref<9x256xf32, #tpu.memory_space<vmem>>, vector<1x256xf32>
    %229 = vector.broadcast %228 : vector<1x256xf32> to vector<2x256xf32>
    %230 = arith.mulf %227, %229 : vector<2x256xf32>
    %c0_152 = arith.constant 0 : index
    %c6_153 = arith.constant 6 : index
    %231 = vector.load %arg19[%c0_152, %c6_153] : memref<2x9xf32, #tpu.memory_space<vmem>>, vector<2x1xf32>
    %232 = vector.broadcast %231 : vector<2x1xf32> to vector<2x256xf32>
    %233 = arith.mulf %230, %232 : vector<2x256xf32>
    %234 = arith.addf %226, %233 : vector<2x256xf32>
    %c240_i32_154 = arith.constant 240 : i32
    %235 = tpu.dynamic_rotate %180 by %c240_i32_154 dim 1 : vector<2x256xf32>, i32 -> vector<2x256xf32>
    %c7_155 = arith.constant 7 : index
    %c0_156 = arith.constant 0 : index
    %236 = vector.load %arg4[%c7_155, %c0_156] : memref<9x256xf32, #tpu.memory_space<vmem>>, vector<1x256xf32>
    %237 = vector.broadcast %236 : vector<1x256xf32> to vector<2x256xf32>
    %238 = arith.mulf %235, %237 : vector<2x256xf32>
    %c0_157 = arith.constant 0 : index
    %c7_158 = arith.constant 7 : index
    %239 = vector.load %arg19[%c0_157, %c7_158] : memref<2x9xf32, #tpu.memory_space<vmem>>, vector<2x1xf32>
    %240 = vector.broadcast %239 : vector<2x1xf32> to vector<2x256xf32>
    %241 = arith.mulf %238, %240 : vector<2x256xf32>
    %242 = arith.addf %234, %241 : vector<2x256xf32>
    %c239_i32_159 = arith.constant 239 : i32
    %243 = tpu.dynamic_rotate %180 by %c239_i32_159 dim 1 : vector<2x256xf32>, i32 -> vector<2x256xf32>
    %c8_160 = arith.constant 8 : index
    %c0_161 = arith.constant 0 : index
    %244 = vector.load %arg4[%c8_160, %c0_161] : memref<9x256xf32, #tpu.memory_space<vmem>>, vector<1x256xf32>
    %245 = vector.broadcast %244 : vector<1x256xf32> to vector<2x256xf32>
    %246 = arith.mulf %243, %245 : vector<2x256xf32>
    %c0_162 = arith.constant 0 : index
    %c8_163 = arith.constant 8 : index
    %247 = vector.load %arg19[%c0_162, %c8_163] : memref<2x9xf32, #tpu.memory_space<vmem>>, vector<2x1xf32>
    %248 = vector.broadcast %247 : vector<2x1xf32> to vector<2x256xf32>
    %249 = arith.mulf %246, %248 : vector<2x256xf32>
    %250 = arith.addf %242, %249 : vector<2x256xf32>
    %c0_164 = arith.constant 0 : index
    %c0_165 = arith.constant 0 : index
    %251 = vector.load %arg20[%c0_164, %c0_165] : memref<2x1xf32, #tpu.memory_space<vmem>>, vector<2x1xf32>
    %252 = vector.broadcast %251 : vector<2x1xf32> to vector<2x256xf32>
    %253 = arith.addf %250, %252 : vector<2x256xf32>
    %254 = tpu.concatenate %180, %253 in 0 : vector<2x256xf32>, vector<2x256xf32> -> vector<4x256xf32>
    %c0_166 = arith.constant 0 : index
    %c0_167 = arith.constant 0 : index
    %c0_168 = arith.constant 0 : index
    %255 = vector.load %arg1[%c0_166, %c0_167, %c0_168] : memref<1x4x256xf32, #tpu.memory_space<vmem>>, vector<1x4x256xf32>
    %256 = vector.shape_cast %255 : vector<1x4x256xf32> to vector<4x256xf32>
    %257 = arith.addf %254, %256 : vector<4x256xf32>
    %c0_169 = arith.constant 0 : index
    %c0_170 = arith.constant 0 : index
    %c0_171 = arith.constant 0 : index
    %258 = vector.load %arg21[%c0_169, %c0_170, %c0_171] : memref<1x4x256xf32, #tpu.memory_space<vmem>>, vector<1x4x256xf32>
    %259 = vector.shape_cast %258 : vector<1x4x256xf32> to vector<4x256xf32>
    %260 = vector.shape_cast %257 : vector<4x256xf32> to vector<1x4x256xf32>
    tpu.vector_store %arg21[%c0_169, %c0_170, %c0_171], %260 {strides = array<i32>} : memref<1x4x256xf32, #tpu.memory_space<vmem>>, vector<1x4x256xf32>,
    return
  }
  func.func @transform_0(%arg0: i32) -> (i32, i32, i32) {
    %c0_i32 = arith.constant 0 : i32
    %c0_i32_0 = arith.constant 0 : i32
    %c0_i32_1 = arith.constant 0 : i32
    return %arg0, %c0_i32, %c0_i32_0 : i32, i32, i32
  }
  func.func @transform_1(%arg0: i32) -> (i32, i32) {
    %c0_i32 = arith.constant 0 : i32
    %c0_i32_0 = arith.constant 0 : i32
    %c0_i32_1 = arith.constant 0 : i32
    return %c0_i32, %c0_i32_0 : i32, i32
  }
  func.func @transform_2(%arg0: i32) -> (i32, i32) {
    %c0_i32 = arith.constant 0 : i32
    %c0_i32_0 = arith.constant 0 : i32
    %c0_i32_1 = arith.constant 0 : i32
    return %c0_i32, %c0_i32_0 : i32, i32
  }
  func.func @transform_3(%arg0: i32) -> (i32, i32) {
    %c0_i32 = arith.constant 0 : i32
    %c0_i32_0 = arith.constant 0 : i32
    %c0_i32_1 = arith.constant 0 : i32
    return %c0_i32, %c0_i32_0 : i32, i32
  }
  func.func @transform_4(%arg0: i32) -> (i32, i32, i32) {
    %c0_i32 = arith.constant 0 : i32
    %c0_i32_0 = arith.constant 0 : i32
    %c0_i32_1 = arith.constant 0 : i32
    %c0_i32_2 = arith.constant 0 : i32
    return %c0_i32, %c0_i32_0, %c0_i32_1 : i32, i32, i32
  }
  func.func @transform_5(%arg0: i32) -> (i32, i32, i32) {
    %c0_i32 = arith.constant 0 : i32
    %c0_i32_0 = arith.constant 0 : i32
    %c0_i32_1 = arith.constant 0 : i32
    %c0_i32_2 = arith.constant 0 : i32
    return %c0_i32, %c0_i32_0, %c0_i32_1 : i32, i32, i32
  }
  func.func @transform_6(%arg0: i32) -> (i32, i32) {
    %c0_i32 = arith.constant 0 : i32
    %c0_i32_0 = arith.constant 0 : i32
    %c0_i32_1 = arith.constant 0 : i32
    return %c0_i32, %c0_i32_0 : i32, i32
  }
  func.func @transform_7(%arg0: i32) -> (i32, i32) {
    %c0_i32 = arith.constant 0 : i32
    %c0_i32_0 = arith.constant 0 : i32
    %c0_i32_1 = arith.constant 0 : i32
    return %c0_i32, %c0_i32_0 : i32, i32
  }
  func.func @transform_8(%arg0: i32) -> (i32, i32) {
    %c0_i32 = arith.constant 0 : i32
    %c0_i32_0 = arith.constant 0 : i32
    %c0_i32_1 = arith.constant 0 : i32
    return %c0_i32, %c0_i32_0 : i32, i32
  }
  func.func @transform_9(%arg0: i32) -> (i32, i32) {
    %c0_i32 = arith.constant 0 : i32
    %c0_i32_0 = arith.constant 0 : i32
    %c0_i32_1 = arith.constant 0 : i32
    return %c0_i32, %c0_i32_0 : i32, i32
  }
  func.func @transform_10(%arg0: i32) -> (i32, i32) {
    %c0_i32 = arith.constant 0 : i32
    %c0_i32_0 = arith.constant 0 : i32
    %c0_i32_1 = arith.constant 0 : i32
    return %c0_i32, %c0_i32_0 : i32, i32
  }
  func.func @transform_11(%arg0: i32) -> (i32, i32) {
    %c0_i32 = arith.constant 0 : i32
    %c0_i32_0 = arith.constant 0 : i32
    %c0_i32_1 = arith.constant 0 : i32
    return %c0_i32, %c0_i32_0 : i32, i32
  }
  func.func @transform_12(%arg0: i32) -> (i32, i32) {
    %c0_i32 = arith.constant 0 : i32
    %c0_i32_0 = arith.constant 0 : i32
    %c0_i32_1 = arith.constant 0 : i32
    return %c0_i32, %c0_i32_0 : i32, i32
  }
  func.func @transform_13(%arg0: i32) -> (i32, i32) {
    %c0_i32 = arith.constant 0 : i32
    %c0_i32_0 = arith.constant 0 : i32
    %c0_i32_1 = arith.constant 0 : i32
    return %c0_i32, %c0_i32_0 : i32, i32
  }
  func.func @transform_14(%arg0: i32) -> (i32, i32) {
    %c0_i32 = arith.constant 0 : i32
    %c0_i32_0 = arith.constant 0 : i32
    %c0_i32_1 = arith.constant 0 : i32
    return %c0_i32, %c0_i32_0 : i32, i32
  }
  func.func @transform_15(%arg0: i32) -> (i32, i32) {
    %c0_i32 = arith.constant 0 : i32
    %c0_i32_0 = arith.constant 0 : i32
    %c0_i32_1 = arith.constant 0 : i32
    return %c0_i32, %c0_i32_0 : i32, i32
  }
  func.func @transform_16(%arg0: i32) -> (i32, i32) {
    %c0_i32 = arith.constant 0 : i32
    %c0_i32_0 = arith.constant 0 : i32
    %c0_i32_1 = arith.constant 0 : i32
    return %c0_i32, %c0_i32_0 : i32, i32
  }
  func.func @transform_17(%arg0: i32) -> (i32, i32) {
    %c0_i32 = arith.constant 0 : i32
    %c0_i32_0 = arith.constant 0 : i32
    %c0_i32_1 = arith.constant 0 : i32
    return %c0_i32, %c0_i32_0 : i32, i32
  }
  func.func @transform_18(%arg0: i32) -> (i32, i32) {
    %c0_i32 = arith.constant 0 : i32
    %c0_i32_0 = arith.constant 0 : i32
    %c0_i32_1 = arith.constant 0 : i32
    return %c0_i32, %c0_i32_0 : i32, i32
  }
  func.func @transform_19(%arg0: i32) -> (i32, i32) {
    %c0_i32 = arith.constant 0 : i32
    %c0_i32_0 = arith.constant 0 : i32
    %c0_i32_1 = arith.constant 0 : i32
    return %c0_i32, %c0_i32_0 : i32, i32
  }
  func.func @transform_20(%arg0: i32) -> (i32, i32, i32) {
    %c0_i32 = arith.constant 0 : i32
    %c0_i32_0 = arith.constant 0 : i32
    %c0_i32_1 = arith.constant 0 : i32
    return %arg0, %c0_i32, %c0_i32_0 : i32, i32, i32
  }
}

</mosaic_0001>

<llo_original>
// kernel: ghost_bottleneck_v2.1
$region0: #{ghost_bottleneck_v2.1}
  #allocation0 [shape = 'u32[]', space=smem, size = 0x4, offset = 0x4, fixed_abs, tag = 'smem constant byte address 0x4 - core index']
  #allocation1 [shape = 'u32[144,128]{1,0:T(1,128)}', space=vmem, size = 0x12000, scoped, tag = 'internal scratch']
  %s0 = inlined_call_operand.vmem [shape: f32[2,4,256], index: 0, kind: input, shape index: {}]
  %s1 = inlined_call_operand.vmem [shape: f32[256,64], index: 1, kind: input, shape index: {}]
  %s2 = inlined_call_operand.vmem [shape: f32[64,256], index: 2, kind: input, shape index: {}]
  %s3 = inlined_call_operand.vmem [shape: f32[9,256], index: 3, kind: input, shape index: {}]
  %s4 = inlined_call_operand.vmem [shape: f32[5,64,64], index: 4, kind: input, shape index: {}]
  %s5 = inlined_call_operand.vmem [shape: f32[5,64,64], index: 5, kind: input, shape index: {}]
  %s6 = inlined_call_operand.vmem [shape: f32[4,4], index: 6, kind: input, shape index: {}]
  %s7 = inlined_call_operand.vmem [shape: f32[4,1], index: 7, kind: input, shape index: {}]
  %s8 = inlined_call_operand.vmem [shape: f32[4,9], index: 8, kind: input, shape index: {}]
  %s9 = inlined_call_operand.vmem [shape: f32[4,1], index: 9, kind: input, shape index: {}]
  %s10 = inlined_call_operand.vmem [shape: f32[8,4], index: 10, kind: input, shape index: {}]
  %s11 = inlined_call_operand.vmem [shape: f32[8,1], index: 11, kind: input, shape index: {}]
  %s12 = inlined_call_operand.vmem [shape: f32[8,5], index: 12, kind: input, shape index: {}]
  %s13 = inlined_call_operand.vmem [shape: f32[8,1], index: 13, kind: input, shape index: {}]
  %s14 = inlined_call_operand.vmem [shape: f32[8,5], index: 14, kind: input, shape index: {}]
  %s15 = inlined_call_operand.vmem [shape: f32[8,1], index: 15, kind: input, shape index: {}]
  %s16 = inlined_call_operand.vmem [shape: f32[2,8], index: 16, kind: input, shape index: {}]
  %s17 = inlined_call_operand.vmem [shape: f32[2,1], index: 17, kind: input, shape index: {}]
  %s18 = inlined_call_operand.vmem [shape: f32[2,9], index: 18, kind: input, shape index: {}]
  %s19 = inlined_call_operand.vmem [shape: f32[2,1], index: 19, kind: input, shape index: {}]
  %s20 = inlined_call_operand.vmem [shape: f32[2,4,256], index: 20, kind: output, shape index: {}]
  %s21 = sld [smem:[#allocation0]]
  $region113: #{ghost_bottleneck_v2.1} parent=0
    _
  %s23 = ssub.s32 1, %s21
  %s24 = scalar_select 0, %s23, %s21
  loop: start=0, step=1, limit=4
  $region2: #{ghost_bottleneck_v2.1} parent=0 // loop_pre_header
    _
  $region3: #{ghost_bottleneck_v2.1} parent=0 // loop_header
    %s26 = sphi 0, %s30
    %p27 = scmp.ge.s32.totalorder %s26, 4
    %s36 = sphi 0, %s38
    %s39 = sphi 0, %s36
    %s40 = sphi 0, %s39
    %s56 = sphi 0, %s40
    %s60 = sphi 0, %s60
    %s62 = sphi 0, %s60
    %s63 = sphi 0, %s62
    %s77 = sphi 0, %s63
    %s81 = sphi 0, %s81
    %s83 = sphi 0, %s81
    %s84 = sphi 0, %s83
    %s98 = sphi 0, %s84
    %s102 = sphi 0, %s102
    %s104 = sphi 0, %s102
    %s105 = sphi 0, %s104
    %s119 = sphi 0, %s105
    %s123 = sphi 0, %s123
    %s125 = sphi 0, %s123
    %s126 = sphi 0, %s125
    %s140 = sphi 0, %s126
    %s144 = sphi 0, %s144
    %s146 = sphi 0, %s144
    %s147 = sphi 0, %s146
    %s161 = sphi 0, %s147
    %s165 = sphi 0, %s165
    %s167 = sphi 0, %s165
    %s168 = sphi 0, %s167
    %s182 = sphi 0, %s168
    %s186 = sphi 0, %s186
    %s188 = sphi 0, %s186
    %s189 = sphi 0, %s188
    %s203 = sphi 0, %s189
    %s207 = sphi 0, %s207
    %s209 = sphi 0, %s207
    %s210 = sphi 0, %s209
    %s224 = sphi 0, %s210
    %s228 = sphi 0, %s228
    %s230 = sphi 0, %s228
    %s231 = sphi 0, %s230
    %s245 = sphi 0, %s231
    %s249 = sphi 0, %s249
    %s251 = sphi 0, %s249
    %s252 = sphi 0, %s251
    %s266 = sphi 0, %s252
    %s270 = sphi 0, %s270
    %s272 = sphi 0, %s270
    %s273 = sphi 0, %s272
    %s287 = sphi 0, %s273
    %s291 = sphi 0, %s291
    %s293 = sphi 0, %s291
    %s294 = sphi 0, %s293
    %s308 = sphi 0, %s294
    %s312 = sphi 0, %s312
    %s314 = sphi 0, %s312
    %s315 = sphi 0, %s314
    %s329 = sphi 0, %s315
    %s333 = sphi 0, %s333
    %s335 = sphi 0, %s333
    %s336 = sphi 0, %s335
    %s350 = sphi 0, %s336
    %s354 = sphi 0, %s354
    %s356 = sphi 0, %s354
    %s357 = sphi 0, %s356
    %s371 = sphi 0, %s357
    %s375 = sphi 0, %s375
    %s377 = sphi 0, %s375
    %s378 = sphi 0, %s377
    %s392 = sphi 0, %s378
    %s396 = sphi 0, %s396
    %s398 = sphi 0, %s396
    %s399 = sphi 0, %s398
    %s413 = sphi 0, %s399
    %s417 = sphi 0, %s417
    %s419 = sphi 0, %s417
    %s420 = sphi 0, %s419
    %s434 = sphi 0, %s420
    %s438 = sphi 0, %s438
    %s440 = sphi 0, %s438
    %s441 = sphi 0, %s440
    %s455 = sphi 0, %s441
    %s461 = sphi 0, %s463
    %s464 = sphi 0, %s461
    %s465 = sphi 0, %s464
    %s481 = sphi 0, %s465
  $region4: #{ghost_bottleneck_v2.1} parent=0 // loop_header_branch
    %29 = sbr.rel (%p27) target = $region8
  $region5: #{ghost_bottleneck_v2.1} parent=0 // loop_body
    %s31 = ssub.s32 %s26, 1
    %s32 = ssub.s32 %s26, 2
    %s33 = sadd.s32 %s26, 1
    %s34 = ssub.s32 %s26, %s33
    %p35 = scmp.eq.s32.totalorder %s34, 0
    %s37 = sadd.s32 %s36, 1
    %s38 = scalar_select %p35, %s36, %s37
    %p41 = pneg %p35
    %p42 = scmp.eq.s32.totalorder %s26, 1
    %p43 = por %p41, %p42
    %p44 = scmp.ne.s32.totalorder %s36, %s39
    %p45 = scmp.eq.s32.totalorder %s26, 0
    %p46 = por %p44, %p45
    %p47 = scmp.ne.s32.totalorder %s36, %s39
    %p48 = scmp.eq.s32.totalorder %s31, 1
    %p49 = por %p47, %p48
    %p50 = scmp.ne.s32.totalorder %s39, %s40
    %p51 = scmp.eq.s32.totalorder %s31, 0
    %p52 = por %p50, %p51
    %p53 = scmp.ne.s32.totalorder %s39, %s40
    %p54 = scmp.eq.s32.totalorder %s32, 1
    %p55 = por %p53, %p54
    %p57 = scmp.ne.s32.totalorder %s40, %s56
    %p58 = scmp.eq.s32.totalorder %s32, 0
    %p59 = por %p57, %p58
    %s61 = sadd.s32 %s60, 1
    %p64 = scmp.eq.s32.totalorder %s26, 1
    %p65 = scmp.ne.s32.totalorder %s60, %s62
    %p66 = scmp.eq.s32.totalorder %s26, 0
    %p67 = por %p65, %p66
    %p68 = scmp.ne.s32.totalorder %s60, %s62
    %p69 = scmp.eq.s32.totalorder %s31, 1
    %p70 = por %p68, %p69
    %p71 = scmp.ne.s32.totalorder %s62, %s63
    %p72 = scmp.eq.s32.totalorder %s31, 0
    %p73 = por %p71, %p72
    %p74 = scmp.ne.s32.totalorder %s62, %s63
    %p75 = scmp.eq.s32.totalorder %s32, 1
    %p76 = por %p74, %p75
    %p78 = scmp.ne.s32.totalorder %s63, %s77
    %p79 = scmp.eq.s32.totalorder %s32, 0
    %p80 = por %p78, %p79
    %s82 = sadd.s32 %s81, 1
    %p85 = scmp.eq.s32.totalorder %s26, 1
    %p86 = scmp.ne.s32.totalorder %s81, %s83
    %p87 = scmp.eq.s32.totalorder %s26, 0
    %p88 = por %p86, %p87
    %p89 = scmp.ne.s32.totalorder %s81, %s83
    %p90 = scmp.eq.s32.totalorder %s31, 1
    %p91 = por %p89, %p90
    %p92 = scmp.ne.s32.totalorder %s83, %s84
    %p93 = scmp.eq.s32.totalorder %s31, 0
    %p94 = por %p92, %p93
    %p95 = scmp.ne.s32.totalorder %s83, %s84
    %p96 = scmp.eq.s32.totalorder %s32, 1
    %p97 = por %p95, %p96
    %p99 = scmp.ne.s32.totalorder %s84, %s98
    %p100 = scmp.eq.s32.totalorder %s32, 0
    %p101 = por %p99, %p100
    %s103 = sadd.s32 %s102, 1
    %p106 = scmp.eq.s32.totalorder %s26, 1
    %p107 = scmp.ne.s32.totalorder %s102, %s104
    %p108 = scmp.eq.s32.totalorder %s26, 0
    %p109 = por %p107, %p108
    %p110 = scmp.ne.s32.totalorder %s102, %s104
    %p111 = scmp.eq.s32.totalorder %s31, 1
    %p112 = por %p110, %p111
    %p113 = scmp.ne.s32.totalorder %s104, %s105
    %p114 = scmp.eq.s32.totalorder %s31, 0
    %p115 = por %p113, %p114
    %p116 = scmp.ne.s32.totalorder %s104, %s105
    %p117 = scmp.eq.s32.totalorder %s32, 1
    %p118 = por %p116, %p117
    %p120 = scmp.ne.s32.totalorder %s105, %s119
    %p121 = scmp.eq.s32.totalorder %s32, 0
    %p122 = por %p120, %p121
    %s124 = sadd.s32 %s123, 1
    %p127 = scmp.eq.s32.totalorder %s26, 1
    %p128 = scmp.ne.s32.totalorder %s123, %s125
    %p129 = scmp.eq.s32.totalorder %s26, 0
    %p130 = por %p128, %p129
    %p131 = scmp.ne.s32.totalorder %s123, %s125
    %p132 = scmp.eq.s32.totalorder %s31, 1
    %p133 = por %p131, %p132
    %p134 = scmp.ne.s32.totalorder %s125, %s126
    %p135 = scmp.eq.s32.totalorder %s31, 0
    %p136 = por %p134, %p135
    %p137 = scmp.ne.s32.totalorder %s125, %s126
    %p138 = scmp.eq.s32.totalorder %s32, 1
    %p139 = por %p137, %p138
    %p141 = scmp.ne.s32.totalorder %s126, %s140
    %p142 = scmp.eq.s32.totalorder %s32, 0
    %p143 = por %p141, %p142
    %s145 = sadd.s32 %s144, 1
    %p148 = scmp.eq.s32.totalorder %s26, 1
    %p149 = scmp.ne.s32.totalorder %s144, %s146
    %p150 = scmp.eq.s32.totalorder %s26, 0
    %p151 = por %p149, %p150
    %p152 = scmp.ne.s32.totalorder %s144, %s146
    %p153 = scmp.eq.s32.totalorder %s31, 1
    %p154 = por %p152, %p153
    %p155 = scmp.ne.s32.totalorder %s146, %s147
    %p156 = scmp.eq.s32.totalorder %s31, 0
    %p157 = por %p155, %p156
    %p158 = scmp.ne.s32.totalorder %s146, %s147
    %p159 = scmp.eq.s32.totalorder %s32, 1
    %p160 = por %p158, %p159
    %p162 = scmp.ne.s32.totalorder %s147, %s161
    %p163 = scmp.eq.s32.totalorder %s32, 0
    %p164 = por %p162, %p163
    %s166 = sadd.s32 %s165, 1
    %p169 = scmp.eq.s32.totalorder %s26, 1
    %p170 = scmp.ne.s32.totalorder %s165, %s167
    %p171 = scmp.eq.s32.totalorder %s26, 0
    %p172 = por %p170, %p171
    %p173 = scmp.ne.s32.totalorder %s165, %s167
    %p174 = scmp.eq.s32.totalorder %s31, 1
    %p175 = por %p173, %p174
    %p176 = scmp.ne.s32.totalorder %s167, %s168
    %p177 = scmp.eq.s32.totalorder %s31, 0
    %p178 = por %p176, %p177
    %p179 = scmp.ne.s32.totalorder %s167, %s168
    %p180 = scmp.eq.s32.totalorder %s32, 1
    %p181 = por %p179, %p180
    %p183 = scmp.ne.s32.totalorder %s168, %s182
    %p184 = scmp.eq.s32.totalorder %s32, 0
    %p185 = por %p183, %p184
    %s187 = sadd.s32 %s186, 1
    %p190 = scmp.eq.s32.totalorder %s26, 1
    %p191 = scmp.ne.s32.totalorder %s186, %s188
    %p192 = scmp.eq.s32.totalorder %s26, 0
    %p193 = por %p191, %p192
    %p194 = scmp.ne.s32.totalorder %s186, %s188
    %p195 = scmp.eq.s32.totalorder %s31, 1
    %p196 = por %p194, %p195
    %p197 = scmp.ne.s32.totalorder %s188, %s189
    %p198 = scmp.eq.s32.totalorder %s31, 0
    %p199 = por %p197, %p198
    %p200 = scmp.ne.s32.totalorder %s188, %s189
    %p201 = scmp.eq.s32.totalorder %s32, 1
    %p202 = por %p200, %p201
    %p204 = scmp.ne.s32.totalorder %s189, %s203
    %p205 = scmp.eq.s32.totalorder %s32, 0
    %p206 = por %p204, %p205
    %s208 = sadd.s32 %s207, 1
    %p211 = scmp.eq.s32.totalorder %s26, 1
    %p212 = scmp.ne.s32.totalorder %s207, %s209
    %p213 = scmp.eq.s32.totalorder %s26, 0
    %p214 = por %p212, %p213
    %p215 = scmp.ne.s32.totalorder %s207, %s209
    %p216 = scmp.eq.s32.totalorder %s31, 1
    %p217 = por %p215, %p216
    %p218 = scmp.ne.s32.totalorder %s209, %s210
    %p219 = scmp.eq.s32.totalorder %s31, 0
    %p220 = por %p218, %p219
    %p221 = scmp.ne.s32.totalorder %s209, %s210
    %p222 = scmp.eq.s32.totalorder %s32, 1
    %p223 = por %p221, %p222
    %p225 = scmp.ne.s32.totalorder %s210, %s224
    %p226 = scmp.eq.s32.totalorder %s32, 0
    %p227 = por %p225, %p226
    %s229 = sadd.s32 %s228, 1
    %p232 = scmp.eq.s32.totalorder %s26, 1
    %p233 = scmp.ne.s32.totalorder %s228, %s230
    %p234 = scmp.eq.s32.totalorder %s26, 0
    %p235 = por %p233, %p234
    %p236 = scmp.ne.s32.totalorder %s228, %s230
    %p237 = scmp.eq.s32.totalorder %s31, 1
    %p238 = por %p236, %p237
    %p239 = scmp.ne.s32.totalorder %s230, %s231
    %p240 = scmp.eq.s32.totalorder %s31, 0
    %p241 = por %p239, %p240
    %p242 = scmp.ne.s32.totalorder %s230, %s231
    %p243 = scmp.eq.s32.totalorder %s32, 1
    %p244 = por %p242, %p243
    %p246 = scmp.ne.s32.totalorder %s231, %s245
    %p247 = scmp.eq.s32.totalorder %s32, 0
    %p248 = por %p246, %p247
    %s250 = sadd.s32 %s249, 1
    %p253 = scmp.eq.s32.totalorder %s26, 1
    %p254 = scmp.ne.s32.totalorder %s249, %s251
    %p255 = scmp.eq.s32.totalorder %s26, 0
    %p256 = por %p254, %p255
    %p257 = scmp.ne.s32.totalorder %s249, %s251
    %p258 = scmp.eq.s32.totalorder %s31, 1
    %p259 = por %p257, %p258
    %p260 = scmp.ne.s32.totalorder %s251, %s252
    %p261 = scmp.eq.s32.totalorder %s31, 0
    %p262 = por %p260, %p261
    %p263 = scmp.ne.s32.totalorder %s251, %s252
    %p264 = scmp.eq.s32.totalorder %s32, 1
    %p265 = por %p263, %p264
    %p267 = scmp.ne.s32.totalorder %s252, %s266
    %p268 = scmp.eq.s32.totalorder %s32, 0
    %p269 = por %p267, %p268
    %s271 = sadd.s32 %s270, 1
    %p274 = scmp.eq.s32.totalorder %s26, 1
    %p275 = scmp.ne.s32.totalorder %s270, %s272
    %p276 = scmp.eq.s32.totalorder %s26, 0
    %p277 = por %p275, %p276
    %p278 = scmp.ne.s32.totalorder %s270, %s272
    %p279 = scmp.eq.s32.totalorder %s31, 1
    %p280 = por %p278, %p279
    %p281 = scmp.ne.s32.totalorder %s272, %s273
    %p282 = scmp.eq.s32.totalorder %s31, 0
    %p283 = por %p281, %p282
    %p284 = scmp.ne.s32.totalorder %s272, %s273
    %p285 = scmp.eq.s32.totalorder %s32, 1
    %p286 = por %p284, %p285
    %p288 = scmp.ne.s32.totalorder %s273, %s287
    %p289 = scmp.eq.s32.totalorder %s32, 0
    %p290 = por %p288, %p289
    %s292 = sadd.s32 %s291, 1
    %p295 = scmp.eq.s32.totalorder %s26, 1
    %p296 = scmp.ne.s32.totalorder %s291, %s293
    %p297 = scmp.eq.s32.totalorder %s26, 0
    %p298 = por %p296, %p297
    %p299 = scmp.ne.s32.totalorder %s291, %s293
    %p300 = scmp.eq.s32.totalorder %s31, 1
    %p301 = por %p299, %p300
    %p302 = scmp.ne.s32.totalorder %s293, %s294
    %p303 = scmp.eq.s32.totalorder %s31, 0
    %p304 = por %p302, %p303
    %p305 = scmp.ne.s32.totalorder %s293, %s294
    %p306 = scmp.eq.s32.totalorder %s32, 1
    %p307 = por %p305, %p306
    %p309 = scmp.ne.s32.totalorder %s294, %s308
    %p310 = scmp.eq.s32.totalorder %s32, 0
    %p311 = por %p309, %p310
    %s313 = sadd.s32 %s312, 1
    %p316 = scmp.eq.s32.totalorder %s26, 1
    %p317 = scmp.ne.s32.totalorder %s312, %s314
    %p318 = scmp.eq.s32.totalorder %s26, 0
    %p319 = por %p317, %p318
    %p320 = scmp.ne.s32.totalorder %s312, %s314
    %p321 = scmp.eq.s32.totalorder %s31, 1
    %p322 = por %p320, %p321
    %p323 = scmp.ne.s32.totalorder %s314, %s315
    %p324 = scmp.eq.s32.totalorder %s31, 0
    %p325 = por %p323, %p324
    %p326 = scmp.ne.s32.totalorder %s314, %s315
    %p327 = scmp.eq.s32.totalorder %s32, 1
    %p328 = por %p326, %p327
    %p330 = scmp.ne.s32.totalorder %s315, %s329
    %p331 = scmp.eq.s32.totalorder %s32, 0
    %p332 = por %p330, %p331
    %s334 = sadd.s32 %s333, 1
    %p337 = scmp.eq.s32.totalorder %s26, 1
    %p338 = scmp.ne.s32.totalorder %s333, %s335
    %p339 = scmp.eq.s32.totalorder %s26, 0
    %p340 = por %p338, %p339
    %p341 = scmp.ne.s32.totalorder %s333, %s335
    %p342 = scmp.eq.s32.totalorder %s31, 1
    %p343 = por %p341, %p342
    %p344 = scmp.ne.s32.totalorder %s335, %s336
    %p345 = scmp.eq.s32.totalorder %s31, 0
    %p346 = por %p344, %p345
    %p347 = scmp.ne.s32.totalorder %s335, %s336
    %p348 = scmp.eq.s32.totalorder %s32, 1
    %p349 = por %p347, %p348
    %p351 = scmp.ne.s32.totalorder %s336, %s350
    %p352 = scmp.eq.s32.totalorder %s32, 0
    %p353 = por %p351, %p352
    %s355 = sadd.s32 %s354, 1
    %p358 = scmp.eq.s32.totalorder %s26, 1
    %p359 = scmp.ne.s32.totalorder %s354, %s356
    %p360 = scmp.eq.s32.totalorder %s26, 0
    %p361 = por %p359, %p360
    %p362 = scmp.ne.s32.totalorder %s354, %s356
    %p363 = scmp.eq.s32.totalorder %s31, 1
    %p364 = por %p362, %p363
    %p365 = scmp.ne.s32.totalorder %s356, %s357
    %p366 = scmp.eq.s32.totalorder %s31, 0
    %p367 = por %p365, %p366
    %p368 = scmp.ne.s32.totalorder %s356, %s357
    %p369 = scmp.eq.s32.totalorder %s32, 1
    %p370 = por %p368, %p369
    %p372 = scmp.ne.s32.totalorder %s357, %s371
    %p373 = scmp.eq.s32.totalorder %s32, 0
    %p374 = por %p372, %p373
    %s376 = sadd.s32 %s375, 1
    %p379 = scmp.eq.s32.totalorder %s26, 1
    %p380 = scmp.ne.s32.totalorder %s375, %s377
    %p381 = scmp.eq.s32.totalorder %s26, 0
    %p382 = por %p380, %p381
    %p383 = scmp.ne.s32.totalorder %s375, %s377
    %p384 = scmp.eq.s32.totalorder %s31, 1
    %p385 = por %p383, %p384
    %p386 = scmp.ne.s32.totalorder %s377, %s378
    %p387 = scmp.eq.s32.totalorder %s31, 0
    %p388 = por %p386, %p387
    %p389 = scmp.ne.s32.totalorder %s377, %s378
    %p390 = scmp.eq.s32.totalorder %s32, 1
    %p391 = por %p389, %p390
    %p393 = scmp.ne.s32.totalorder %s378, %s392
    %p394 = scmp.eq.s32.totalorder %s32, 0
    %p395 = por %p393, %p394
    %s397 = sadd.s32 %s396, 1
    %p400 = scmp.eq.s32.totalorder %s26, 1
    %p401 = scmp.ne.s32.totalorder %s396, %s398
    %p402 = scmp.eq.s32.totalorder %s26, 0
    %p403 = por %p401, %p402
    %p404 = scmp.ne.s32.totalorder %s396, %s398
    %p405 = scmp.eq.s32.totalorder %s31, 1
    %p406 = por %p404, %p405
    %p407 = scmp.ne.s32.totalorder %s398, %s399
    %p408 = scmp.eq.s32.totalorder %s31, 0
    %p409 = por %p407, %p408
    %p410 = scmp.ne.s32.totalorder %s398, %s399
    %p411 = scmp.eq.s32.totalorder %s32, 1
    %p412 = por %p410, %p411
    %p414 = scmp.ne.s32.totalorder %s399, %s413
    %p415 = scmp.eq.s32.totalorder %s32, 0
    %p416 = por %p414, %p415
    %s418 = sadd.s32 %s417, 1
    %p421 = scmp.eq.s32.totalorder %s26, 1
    %p422 = scmp.ne.s32.totalorder %s417, %s419
    %p423 = scmp.eq.s32.totalorder %s26, 0
    %p424 = por %p422, %p423
    %p425 = scmp.ne.s32.totalorder %s417, %s419
    %p426 = scmp.eq.s32.totalorder %s31, 1
    %p427 = por %p425, %p426
    %p428 = scmp.ne.s32.totalorder %s419, %s420
    %p429 = scmp.eq.s32.totalorder %s31, 0
    %p430 = por %p428, %p429
    %p431 = scmp.ne.s32.totalorder %s419, %s420
    %p432 = scmp.eq.s32.totalorder %s32, 1
    %p433 = por %p431, %p432
    %p435 = scmp.ne.s32.totalorder %s420, %s434
    %p436 = scmp.eq.s32.totalorder %s32, 0
    %p437 = por %p435, %p436
    %s439 = sadd.s32 %s438, 1
    %p442 = scmp.eq.s32.totalorder %s26, 1
    %p443 = scmp.ne.s32.totalorder %s438, %s440
    %p444 = scmp.eq.s32.totalorder %s26, 0
    %p445 = por %p443, %p444
    %p446 = scmp.ne.s32.totalorder %s438, %s440
    %p447 = scmp.eq.s32.totalorder %s31, 1
    %p448 = por %p446, %p447
    %p449 = scmp.ne.s32.totalorder %s440, %s441
    %p450 = scmp.eq.s32.totalorder %s31, 0
    %p451 = por %p449, %p450
    %p452 = scmp.ne.s32.totalorder %s440, %s441
    %p453 = scmp.eq.s32.totalorder %s32, 1
    %p454 = por %p452, %p453
    %p456 = scmp.ne.s32.totalorder %s441, %s455
    %p457 = scmp.eq.s32.totalorder %s32, 0
    %p458 = por %p456, %p457
    %s459 = ssub.s32 %s26, %s33
    %p460 = scmp.eq.s32.totalorder %s459, 0
    %s462 = sadd.s32 %s461, 1
    %s463 = scalar_select %p460, %s461, %s462
    %p466 = pneg %p460
    %p467 = scmp.eq.s32.totalorder %s26, 1
    %p468 = por %p466, %p467
    %p469 = scmp.ne.s32.totalorder %s461, %s464
    %p470 = scmp.eq.s32.totalorder %s26, 0
    %p471 = por %p469, %p470
    %p472 = scmp.ne.s32.totalorder %s461, %s464
    %p473 = scmp.eq.s32.totalorder %s31, 1
    %p474 = por %p472, %p473
    %p475 = scmp.ne.s32.totalorder %s464, %s465
    %p476 = scmp.eq.s32.totalorder %s31, 0
    %p477 = por %p475, %p476
    %p478 = scmp.ne.s32.totalorder %s464, %s465
    %p479 = scmp.eq.s32.totalorder %s32, 1
    %p480 = por %p478, %p479
    %p482 = scmp.ne.s32.totalorder %s465, %s481
    %p483 = scmp.eq.s32.totalorder %s32, 0
    %p484 = por %p482, %p483
    %p485 = scmp.le.s32.totalorder 1, %s26
    %p486 = scmp.lt.s32.totalorder %s26, 3
    %p487 = pnand %p485, %p486
    %p488 = pneg %p487
    // Predicated region
    $region9: #{ghost_bottleneck_v2.1} parent=5 // pred_check
      _
    $region10: #{ghost_bottleneck_v2.1} parent=5 // pred_check_branch
      %490 = sbr.rel (%p487) target = $region12
    $region11: #{ghost_bottleneck_v2.1} parent=5 // pred_region
      %s491 = ssub.s32 %s26, 1
      // Predicated region
      $region13: #{ghost_bottleneck_v2.1} parent=11 // pred_check
        %p492 = pneg %p73
      $region14: #{ghost_bottleneck_v2.1} parent=11 // pred_check_branch
        %494 = sbr.rel (%p492) target = $region16
      $region15: #{ghost_bottleneck_v2.1} parent=11 // pred_region
        _
      $region16: #{ghost_bottleneck_v2.1} parent=11 // pred_fallthru
        _
      // Predicated region
      $region17: #{ghost_bottleneck_v2.1} parent=11 // pred_check
        %p495 = pneg %p94
      $region18: #{ghost_bottleneck_v2.1} parent=11 // pred_check_branch
        %497 = sbr.rel (%p495) target = $region20
      $region19: #{ghost_bottleneck_v2.1} parent=11 // pred_region
        _
      $region20: #{ghost_bottleneck_v2.1} parent=11 // pred_fallthru
        _
      // Predicated region
      $region21: #{ghost_bottleneck_v2.1} parent=11 // pred_check
        %p498 = pneg %p115
      $region22: #{ghost_bottleneck_v2.1} parent=11 // pred_check_branch
        %500 = sbr.rel (%p498) target = $region24
      $region23: #{ghost_bottleneck_v2.1} parent=11 // pred_region
        _
      $region24: #{ghost_bottleneck_v2.1} parent=11 // pred_fallthru
        _
      // Predicated region
      $region25: #{ghost_bottleneck_v2.1} parent=11 // pred_check
        %p501 = pneg %p136
      $region26: #{ghost_bottleneck_v2.1} parent=11 // pred_check_branch
        %503 = sbr.rel (%p501) target = $region28
      $region27: #{ghost_bottleneck_v2.1} parent=11 // pred_region
        _
      $region28: #{ghost_bottleneck_v2.1} parent=11 // pred_fallthru
        _
      // Predicated region
      $region29: #{ghost_bottleneck_v2.1} parent=11 // pred_check
        %p504 = pneg %p157
      $region30: #{ghost_bottleneck_v2.1} parent=11 // pred_check_branch
        %506 = sbr.rel (%p504) target = $region32
      $region31: #{ghost_bottleneck_v2.1} parent=11 // pred_region
        _
      $region32: #{ghost_bottleneck_v2.1} parent=11 // pred_fallthru
        _
      // Predicated region
      $region33: #{ghost_bottleneck_v2.1} parent=11 // pred_check
        %p507 = pneg %p178
      $region34: #{ghost_bottleneck_v2.1} parent=11 // pred_check_branch
        %509 = sbr.rel (%p507) target = $region36
      $region35: #{ghost_bottleneck_v2.1} parent=11 // pred_region
        _
      $region36: #{ghost_bottleneck_v2.1} parent=11 // pred_fallthru
        _
      // Predicated region
      $region37: #{ghost_bottleneck_v2.1} parent=11 // pred_check
        %p510 = pneg %p199
      $region38: #{ghost_bottleneck_v2.1} parent=11 // pred_check_branch
        %512 = sbr.rel (%p510) target = $region40
      $region39: #{ghost_bottleneck_v2.1} parent=11 // pred_region
        _
      $region40: #{ghost_bottleneck_v2.1} parent=11 // pred_fallthru
        _
      // Predicated region
      $region41: #{ghost_bottleneck_v2.1} parent=11 // pred_check
        %p513 = pneg %p220
      $region42: #{ghost_bottleneck_v2.1} parent=11 // pred_check_branch
        %515 = sbr.rel (%p513) target = $region44
      $region43: #{ghost_bottleneck_v2.1} parent=11 // pred_region
        _
      $region44: #{ghost_bottleneck_v2.1} parent=11 // pred_fallthru
        _
      // Predicated region
      $region45: #{ghost_bottleneck_v2.1} parent=11 // pred_check
        %p516 = pneg %p241
      $region46: #{ghost_bottleneck_v2.1} parent=11 // pred_check_branch
        %518 = sbr.rel (%p516) target = $region48
      $region47: #{ghost_bottleneck_v2.1} parent=11 // pred_region
        _
      $region48: #{ghost_bottleneck_v2.1} parent=11 // pred_fallthru
        _
      // Predicated region
      $region49: #{ghost_bottleneck_v2.1} parent=11 // pred_check
        %p519 = pneg %p262
      $region50: #{ghost_bottleneck_v2.1} parent=11 // pred_check_branch
        %521 = sbr.rel (%p519) target = $region52
      $region51: #{ghost_bottleneck_v2.1} parent=11 // pred_region
        _
      $region52: #{ghost_bottleneck_v2.1} parent=11 // pred_fallthru
        _
      // Predicated region
      $region53: #{ghost_bottleneck_v2.1} parent=11 // pred_check
        %p522 = pneg %p283
      $region54: #{ghost_bottleneck_v2.1} parent=11 // pred_check_branch
        %524 = sbr.rel (%p522) target = $region56
      $region55: #{ghost_bottleneck_v2.1} parent=11 // pred_region
        _
      $region56: #{ghost_bottleneck_v2.1} parent=11 // pred_fallthru
        _
      // Predicated region
      $region57: #{ghost_bottleneck_v2.1} parent=11 // pred_check
        %p525 = pneg %p304
      $region58: #{ghost_bottleneck_v2.1} parent=11 // pred_check_branch
        %527 = sbr.rel (%p525) target = $region60
      $region59: #{ghost_bottleneck_v2.1} parent=11 // pred_region
        _
      $region60: #{ghost_bottleneck_v2.1} parent=11 // pred_fallthru
        _
      // Predicated region
      $region61: #{ghost_bottleneck_v2.1} parent=11 // pred_check
        %p528 = pneg %p325
      $region62: #{ghost_bottleneck_v2.1} parent=11 // pred_check_branch
        %530 = sbr.rel (%p528) target = $region64
      $region63: #{ghost_bottleneck_v2.1} parent=11 // pred_region
        _
      $region64: #{ghost_bottleneck_v2.1} parent=11 // pred_fallthru
        _
      // Predicated region
      $region65: #{ghost_bottleneck_v2.1} parent=11 // pred_check
        %p531 = pneg %p346
      $region66: #{ghost_bottleneck_v2.1} parent=11 // pred_check_branch
        %533 = sbr.rel (%p531) target = $region68
      $region67: #{ghost_bottleneck_v2.1} parent=11 // pred_region
        _
      $region68: #{ghost_bottleneck_v2.1} parent=11 // pred_fallthru
        _
      // Predicated region
      $region69: #{ghost_bottleneck_v2.1} parent=11 // pred_check
        %p534 = pneg %p367
      $region70: #{ghost_bottleneck_v2.1} parent=11 // pred_check_branch
        %536 = sbr.rel (%p534) target = $region72
      $region71: #{ghost_bottleneck_v2.1} parent=11 // pred_region
        _
      $region72: #{ghost_bottleneck_v2.1} parent=11 // pred_fallthru
        _
      // Predicated region
      $region73: #{ghost_bottleneck_v2.1} parent=11 // pred_check
        %p537 = pneg %p388
      $region74: #{ghost_bottleneck_v2.1} parent=11 // pred_check_branch
        %539 = sbr.rel (%p537) target = $region76
      $region75: #{ghost_bottleneck_v2.1} parent=11 // pred_region
        _
      $region76: #{ghost_bottleneck_v2.1} parent=11 // pred_fallthru
        _
      // Predicated region
      $region77: #{ghost_bottleneck_v2.1} parent=11 // pred_check
        %p540 = pneg %p409
      $region78: #{ghost_bottleneck_v2.1} parent=11 // pred_check_branch
        %542 = sbr.rel (%p540) target = $region80
      $region79: #{ghost_bottleneck_v2.1} parent=11 // pred_region
        _
      $region80: #{ghost_bottleneck_v2.1} parent=11 // pred_fallthru
        _
      // Predicated region
      $region81: #{ghost_bottleneck_v2.1} parent=11 // pred_check
        %p543 = pneg %p430
      $region82: #{ghost_bottleneck_v2.1} parent=11 // pred_check_branch
        %545 = sbr.rel (%p543) target = $region84
      $region83: #{ghost_bottleneck_v2.1} parent=11 // pred_region
        _
      $region84: #{ghost_bottleneck_v2.1} parent=11 // pred_fallthru
        _
      // Predicated region
      $region85: #{ghost_bottleneck_v2.1} parent=11 // pred_check
        %p546 = pneg %p451
      $region86: #{ghost_bottleneck_v2.1} parent=11 // pred_check_branch
        %548 = sbr.rel (%p546) target = $region88
      $region87: #{ghost_bottleneck_v2.1} parent=11 // pred_region
        _
      $region88: #{ghost_bottleneck_v2.1} parent=11 // pred_fallthru
        _
    $region12: #{ghost_bottleneck_v2.1} parent=5 // pred_fallthru
      _
    %p549 = scmp.lt.s32.totalorder %s26, 2
    // Predicated region
    $region89: #{ghost_bottleneck_v2.1} parent=5 // pred_check
      %p550 = pneg %p549
    $region90: #{ghost_bottleneck_v2.1} parent=5 // pred_check_branch
      %552 = sbr.rel (%p550) target = $region92
    $region91: #{ghost_bottleneck_v2.1} parent=5 // pred_region
      // Predicated region
      $region93: #{ghost_bottleneck_v2.1} parent=91 // pred_check
        %p553 = pneg %p46
      $region94: #{ghost_bottleneck_v2.1} parent=91 // pred_check_branch
        %555 = sbr.rel (%p553) target = $region96
      $region95: #{ghost_bottleneck_v2.1} parent=91 // pred_region
        %p556 = scmp.lt.s32.totalorder %s26, 1
        %s557 = scalar_select %p556, %s26, 1
        %s558 = smul.addr %s557, 2
        %s559 = smul.addr %s558, 4
        %s560 = scalar_lea.vmem %s0, %s559
      $region96: #{ghost_bottleneck_v2.1} parent=91 // pred_fallthru
        _
    $region92: #{ghost_bottleneck_v2.1} parent=5 // pred_fallthru
      _
    %p561 = scmp.le.s32.totalorder 1, %s26
    %p562 = scmp.lt.s32.totalorder %s26, 3
    %p563 = pnand %p561, %p562
    %p564 = pneg %p563
    // Predicated region
    $region97: #{ghost_bottleneck_v2.1} parent=5 // pred_check
      _
    $region98: #{ghost_bottleneck_v2.1} parent=5 // pred_check_branch
      %566 = sbr.rel (%p563) target = $region100
    $region99: #{ghost_bottleneck_v2.1} parent=5 // pred_region
      %s567 = ssub.s32 %s26, 1
      %p568 = scmp.lt.s32.totalorder %s31, 1
      %s569 = scalar_select %p568, %s31, 1
      %s570 = smul.addr %s569, 2
      %s571 = smul.addr %s570, 4
      %s572 = scalar_lea.vmem %s0, %s571
      %p573 = pneg %p52
      %p574 = pneg %p49
      %p575 = pneg %p73
      %p576 = pneg %p70
      %p577 = pneg %p94
      %p578 = pneg %p91
      %p579 = pneg %p115
      %p580 = pneg %p112
      %p581 = pneg %p136
      %p582 = pneg %p133
      %p583 = pneg %p157
      %p584 = pneg %p154
      %p585 = pneg %p178
      %p586 = pneg %p175
      %p587 = pneg %p199
      %p588 = pneg %p196
      %p589 = pneg %p220
      %p590 = pneg %p217
      %p591 = pneg %p241
      %p592 = pneg %p238
      %p593 = pneg %p262
      %p594 = pneg %p259
      %p595 = pneg %p283
      %p596 = pneg %p280
      %p597 = pneg %p304
      %p598 = pneg %p301
      %p599 = pneg %p325
      %p600 = pneg %p322
      %p601 = pneg %p346
      %p602 = pneg %p343
      %p603 = pneg %p367
      %p604 = pneg %p364
      %p605 = pneg %p388
      %p606 = pneg %p385
      %p607 = pneg %p409
      %p608 = pneg %p406
      %p609 = pneg %p430
      %p610 = pneg %p427
      %p611 = pneg %p451
      %p612 = pneg %p448
      %p613 = pneg %p477
      %p614 = pneg %p474
      %p615 = scmp.lt.s32.totalorder %s31, 1
      %s616 = scalar_select %p615, %s31, 1
      %s617 = smul.addr %s616, 2
      %s618 = smul.addr %s617, 4
      %s619 = scalar_lea.vmem %s20, %s618
      %p620 = scmp.lt.s32.totalorder %s31, 1
      %s621 = scalar_select %p620, %s31, 1
      %s622 = smul.addr %s621, 2
      %s623 = smul.addr %s622, 4
      %s624 = scalar_lea.vmem %s0, %s623
      %p625 = scmp.lt.s32.totalorder %s31, 1
      %s626 = scalar_select %p625, %s31, 1
      %s627 = smul.addr %s626, 2
      %s628 = smul.addr %s627, 4
      %s629 = scalar_lea.vmem %s20, %s628
      %v630 = vld [vmem:[%s624] sm:$0xff]
      %v631 = vld [vmem:[%s6] sm:$0xf]
      %v632 = vld [vmem:[%s7] sm:$0xf]
      %634 = vset.pattern.permute.xlu0 0
      %635 = vperm.xlu0 %634, %v632
      %v636 = vpop.permute.xlu0 %635
      %v639 = vcombine.high %v630, %v630
      %vm640 = vcmask 31744
      %v642 = vsel %vm640, %v631, 0
      %vm644 = vcmask 1043456
      %v645 = vsel %vm644, %v630, 0
      %v647 = vsel %vm644, %v639, 0
      %649 = vmatprep.subr.mxu0 %v647
      %650 = vmatpush1.msra.mxu0 %v645
      %651 = vmatprep.subr.mxu0 0.0
      %652 = vmatpush1.msra.mxu0 0.0
      %653 = vmatprep.subr.mxu0 0.0
      %654 = vmatpush1.msra.mxu0 0.0
      %655 = vmatprep.subr.mxu0 0.0
      %656 = vmatpush1.msra.mxu0 0.0
      %657 = vmatprep.subr.mxu0 0.0
      %658 = vmatpush1.msra.mxu0 0.0
      %659 = vmatprep.subr.mxu0 0.0
      %660 = vmatpush1.msra.mxu0 0.0
      %661 = vmatprep.subr.mxu0 0.0
      %662 = vmatpush1.msra.mxu0 0.0
      %663 = vmatprep.subr.mxu0 0.0
      %664 = vmatpush1.msra.mxu0 0.0
      %665 = vmatprep.subr.mxu0 0.0
      %666 = vmatpush1.msra.mxu0 0.0
      %667 = vmatprep.subr.mxu0 0.0
      %668 = vmatpush1.msra.mxu0 0.0
      %669 = vmatprep.subr.mxu0 0.0
      %670 = vmatpush1.msra.mxu0 0.0
      %671 = vmatprep.subr.mxu0 0.0
      %672 = vmatpush1.msra.mxu0 0.0
      %673 = vmatprep.subr.mxu0 0.0
      %674 = vmatpush1.msra.mxu0 0.0
      %675 = vmatprep.subr.mxu0 0.0
      %676 = vmatpush1.msra.mxu0 0.0
      %677 = vmatprep.subr.mxu0 0.0
      %678 = vmatpush1.msra.mxu0 0.0
      %679 = vmatprep.subr.mxu0 0.0
      %680 = vmatpush1.msra.mxu0 0.0
      %681 = vmatprep.subr.mxu0 0.0
      %682 = vmatpush1.msra.mxu0 0.0
      %683 = vmatprep.subr.mxu0 0.0
      %684 = vmatpush1.msra.mxu0 0.0
      %685 = vmatprep.subr.mxu0 0.0
      %686 = vmatpush1.msra.mxu0 0.0
      %687 = vmatprep.subr.mxu0 0.0
      %688 = vmatpush1.msra.mxu0 0.0
      %689 = vmatprep.subr.mxu0 0.0
      %690 = vmatpush1.msra.mxu0 0.0
      %691 = vmatprep.subr.mxu0 0.0
      %692 = vmatpush1.msra.mxu0 0.0
      %693 = vmatprep.subr.mxu0 0.0
      %694 = vmatpush1.msra.mxu0 0.0
      %695 = vmatprep.subr.mxu0 0.0
      %696 = vmatpush1.msra.mxu0 0.0
      %697 = vmatprep.subr.mxu0 0.0
      %698 = vmatpush1.msra.mxu0 0.0
      %699 = vmatprep.subr.mxu0 0.0
      %700 = vmatpush1.msra.mxu0 0.0
      %701 = vmatprep.subr.mxu0 0.0
      %702 = vmatpush1.msra.mxu0 0.0
      %703 = vmatprep.subr.mxu0 0.0
      %704 = vmatpush1.msra.mxu0 0.0
      %705 = vmatprep.subr.mxu0 0.0
      %706 = vmatpush1.msra.mxu0 0.0
      %707 = vmatprep.subr.mxu0 0.0
      %708 = vmatpush1.msra.mxu0 0.0
      %709 = vmatprep.subr.mxu0 0.0
      %710 = vmatpush1.msra.mxu0 0.0
      %711 = vmatprep.subr.mxu0 0.0
      %712 = vmatpush1.msra.mxu0 0.0
      %713 = vmatprep.mubr.f32.mxu0 0.0
      %714 = vmatmul.mubr.f32.gmra.mrb[0].mxu0 %v642
      %v715 = vpop.f32.mrb[0].mxu0
      %v716 = vadd.f32 %v636, %v715
      %v717 = vpop.f32.mrb[0].mxu0
      %v718 = vadd.f32 %v636, %v717
      %719 = vdwg.mxu0
      %v720 = vmax.f32 %v716, 0.0
      %v721 = vmax.f32 %v718, 0.0
      %722 = vrot.lane.b32.xlu0 %v720, 17
      %v723 = vpop.permute.xlu0 %722
      %724 = vrot.lane.b32.xlu0 %v721, 17
      %v725 = vpop.permute.xlu0 %724
      %v726 = vlaneseq
      %v727 = vand.u32 %v726, 127
      %vm728 = vcmp.lt.s32.totalorder %v727, 17
      %v729 = vsel %vm728, %v723, %v725
      %v730 = vsel %vm728, %v725, %v723
      %v731 = vld [vmem:[%s3] ss:$8 sm:$0x3]
      %v733 = vlaneseq
      %v734 = vshrl.u32 %v733, 7
      %v735 = vsub.s32 0, %v734
      %v736 = vrot.slane %v731, %v735
      %v737 = vlaneseq
      %v738 = vshrl.u32 %v737, 7
      %v739 = vsub.s32 1, %v738
      %v740 = vrot.slane %v731, %v739
      %v743 = vmul.f32 %v730, %v736
      %v744 = vmul.f32 %v729, %v740
      %v745 = vld [vmem:[%s8] sm:$0xf]
      %747 = vset.pattern.permute.xlu0 0
      %748 = vperm.xlu0 %747, %v745
      %v749 = vpop.permute.xlu0 %748
      %v751 = vmul.f32 %v743, %v749
      %v752 = vmul.f32 %v744, %v749
      %753 = vrot.lane.b32.xlu0 %v720, 16
      %v754 = vpop.permute.xlu0 %753
      %755 = vrot.lane.b32.xlu0 %v721, 16
      %v756 = vpop.permute.xlu0 %755
      %vm757 = vcmp.lt.s32.totalorder %v727, 16
      %v758 = vsel %vm757, %v754, %v756
      %v759 = vsel %vm757, %v756, %v754
      %s760 = scalar_lea.vmem %s3, 1
      %v761 = vld [vmem:[%s760] ss:$8 sm:$0x3]
      %v763 = vlaneseq
      %v764 = vshrl.u32 %v763, 7
      %v765 = vsub.s32 0, %v764
      %v766 = vrot.slane %v761, %v765
      %v767 = vlaneseq
      %v768 = vshrl.u32 %v767, 7
      %v769 = vsub.s32 1, %v768
      %v770 = vrot.slane %v761, %v769
      %v773 = vmul.f32 %v759, %v766
      %v774 = vmul.f32 %v758, %v770
      %775 = vset.pattern.permute.xlu0 1
      %776 = vperm.xlu0 %775, %v745
      %v777 = vpop.permute.xlu0 %776
      %v779 = vmul.f32 %v773, %v777
      %v780 = vmul.f32 %v774, %v777
      %v781 = vadd.f32 %v751, %v779
      %v782 = vadd.f32 %v752, %v780
      %783 = vrot.lane.b32.xlu0 %v720, 15
      %v784 = vpop.permute.xlu0 %783
      %785 = vrot.lane.b32.xlu0 %v721, 15
      %v786 = vpop.permute.xlu0 %785
      %vm787 = vcmp.lt.s32.totalorder %v727, 15
      %v788 = vsel %vm787, %v784, %v786
      %v789 = vsel %vm787, %v786, %v784
      %s790 = scalar_lea.vmem %s3, 2
      %v791 = vld [vmem:[%s790] ss:$8 sm:$0x3]
      %v793 = vlaneseq
      %v794 = vshrl.u32 %v793, 7
      %v795 = vsub.s32 0, %v794
      %v796 = vrot.slane %v791, %v795
      %v797 = vlaneseq
      %v798 = vshrl.u32 %v797, 7
      %v799 = vsub.s32 1, %v798
      %v800 = vrot.slane %v791, %v799
      %v803 = vmul.f32 %v789, %v796
      %v804 = vmul.f32 %v788, %v800
      %805 = vset.pattern.permute.xlu0 2
      %806 = vperm.xlu0 %805, %v745
      %v807 = vpop.permute.xlu0 %806
      %v809 = vmul.f32 %v803, %v807
      %v810 = vmul.f32 %v804, %v807
      %v811 = vadd.f32 %v781, %v809
      %v812 = vadd.f32 %v782, %v810
      %813 = vrot.lane.b32.xlu0 %v720, 1
      %v814 = vpop.permute.xlu0 %813
      %815 = vrot.lane.b32.xlu0 %v721, 1
      %v816 = vpop.permute.xlu0 %815
      %vm817 = vcmp.lt.s32.totalorder %v727, 1
      %v818 = vsel %vm817, %v814, %v816
      %v819 = vsel %vm817, %v816, %v814
      %s820 = scalar_lea.vmem %s3, 3
      %v821 = vld [vmem:[%s820] ss:$8 sm:$0x3]
      %v823 = vlaneseq
      %v824 = vshrl.u32 %v823, 7
      %v825 = vsub.s32 0, %v824
      %v826 = vrot.slane %v821, %v825
      %v827 = vlaneseq
      %v828 = vshrl.u32 %v827, 7
      %v829 = vsub.s32 1, %v828
      %v830 = vrot.slane %v821, %v829
      %v833 = vmul.f32 %v819, %v826
      %v834 = vmul.f32 %v818, %v830
      %835 = vset.pattern.permute.xlu0 3
      %836 = vperm.xlu0 %835, %v745
      %v837 = vpop.permute.xlu0 %836
      %v839 = vmul.f32 %v833, %v837
      %v840 = vmul.f32 %v834, %v837
      %v841 = vadd.f32 %v811, %v839
      %v842 = vadd.f32 %v812, %v840
      %s843 = scalar_lea.vmem %s3, 4
      %v844 = vld [vmem:[%s843] ss:$8 sm:$0x3]
      %v846 = vlaneseq
      %v847 = vshrl.u32 %v846, 7
      %v848 = vsub.s32 0, %v847
      %v849 = vrot.slane %v844, %v848
      %v850 = vlaneseq
      %v851 = vshrl.u32 %v850, 7
      %v852 = vsub.s32 1, %v851
      %v853 = vrot.slane %v844, %v852
      %v856 = vmul.f32 %v720, %v849
      %v857 = vmul.f32 %v721, %v853
      %858 = vset.pattern.permute.xlu0 4
      %859 = vperm.xlu0 %858, %v745
      %v860 = vpop.permute.xlu0 %859
      %v862 = vmul.f32 %v856, %v860
      %v863 = vmul.f32 %v857, %v860
      %v864 = vadd.f32 %v841, %v862
      %v865 = vadd.f32 %v842, %v863
      %866 = vrot.lane.b32.xlu0 %v720, 127
      %v867 = vpop.permute.xlu0 %866
      %868 = vrot.lane.b32.xlu0 %v721, 127
      %v869 = vpop.permute.xlu0 %868
      %vm870 = vcmp.lt.s32.totalorder %v727, 127
      %v871 = vsel %vm870, %v867, %v869
      %v872 = vsel %vm870, %v869, %v867
      %s873 = scalar_lea.vmem %s3, 5
      %v874 = vld [vmem:[%s873] ss:$8 sm:$0x3]
      %v876 = vlaneseq
      %v877 = vshrl.u32 %v876, 7
      %v878 = vsub.s32 0, %v877
      %v879 = vrot.slane %v874, %v878
      %v880 = vlaneseq
      %v881 = vshrl.u32 %v880, 7
      %v882 = vsub.s32 1, %v881
      %v883 = vrot.slane %v874, %v882
      %v886 = vmul.f32 %v871, %v879
      %v887 = vmul.f32 %v872, %v883
      %888 = vset.pattern.permute.xlu0 5
      %889 = vperm.xlu0 %888, %v745
      %v890 = vpop.permute.xlu0 %889
      %v892 = vmul.f32 %v886, %v890
      %v893 = vmul.f32 %v887, %v890
      %v894 = vadd.f32 %v864, %v892
      %v895 = vadd.f32 %v865, %v893
      %896 = vrot.lane.b32.xlu0 %v720, 113
      %v897 = vpop.permute.xlu0 %896
      %898 = vrot.lane.b32.xlu0 %v721, 113
      %v899 = vpop.permute.xlu0 %898
      %vm900 = vcmp.lt.s32.totalorder %v727, 113
      %v901 = vsel %vm900, %v897, %v899
      %v902 = vsel %vm900, %v899, %v897
      %s903 = scalar_lea.vmem %s3, 6
      %v904 = vld [vmem:[%s903] ss:$8 sm:$0x3]
      %v906 = vlaneseq
      %v907 = vshrl.u32 %v906, 7
      %v908 = vsub.s32 0, %v907
      %v909 = vrot.slane %v904, %v908
      %v910 = vlaneseq
      %v911 = vshrl.u32 %v910, 7
      %v912 = vsub.s32 1, %v911
      %v913 = vrot.slane %v904, %v912
      %v916 = vmul.f32 %v901, %v909
      %v917 = vmul.f32 %v902, %v913
      %918 = vset.pattern.permute.xlu0 6
      %919 = vperm.xlu0 %918, %v745
      %v920 = vpop.permute.xlu0 %919
      %v922 = vmul.f32 %v916, %v920
      %v923 = vmul.f32 %v917, %v920
      %v924 = vadd.f32 %v894, %v922
      %v925 = vadd.f32 %v895, %v923
      %926 = vrot.lane.b32.xlu0 %v720, 112
      %v927 = vpop.permute.xlu0 %926
      %928 = vrot.lane.b32.xlu0 %v721, 112
      %v929 = vpop.permute.xlu0 %928
      %vm930 = vcmp.lt.s32.totalorder %v727, 112
      %v931 = vsel %vm930, %v927, %v929
      %v932 = vsel %vm930, %v929, %v927
      %s933 = scalar_lea.vmem %s3, 7
      %v934 = vld [vmem:[%s933] ss:$8 sm:$0x3]
      %v936 = vlaneseq
      %v937 = vshrl.u32 %v936, 7
      %v938 = vsub.s32 0, %v937
      %v939 = vrot.slane %v934, %v938
      %v940 = vlaneseq
      %v941 = vshrl.u32 %v940, 7
      %v942 = vsub.s32 1, %v941
      %v943 = vrot.slane %v934, %v942
      %v946 = vmul.f32 %v931, %v939
      %v947 = vmul.f32 %v932, %v943
      %948 = vset.pattern.permute.xlu0 7
      %949 = vperm.xlu0 %948, %v745
      %v950 = vpop.permute.xlu0 %949
      %v952 = vmul.f32 %v946, %v950
      %v953 = vmul.f32 %v947, %v950
      %v954 = vadd.f32 %v924, %v952
      %v955 = vadd.f32 %v925, %v953
      %956 = vrot.lane.b32.xlu0 %v720, 111
      %v957 = vpop.permute.xlu0 %956
      %958 = vrot.lane.b32.xlu0 %v721, 111
      %v959 = vpop.permute.xlu0 %958
      %vm960 = vcmp.lt.s32.totalorder %v727, 111
      %v961 = vsel %vm960, %v957, %v959
      %v962 = vsel %vm960, %v959, %v957
      %s963 = scalar_lea.vmem %s3, 16
      %v964 = vld [vmem:[%s963] ss:$8 sm:$0x3]
      %v966 = vlaneseq
      %v967 = vshrl.u32 %v966, 7
      %v968 = vsub.s32 0, %v967
      %v969 = vrot.slane %v964, %v968
      %v970 = vlaneseq
      %v971 = vshrl.u32 %v970, 7
      %v972 = vsub.s32 1, %v971
      %v973 = vrot.slane %v964, %v972
      %v976 = vmul.f32 %v961, %v969
      %v977 = vmul.f32 %v962, %v973
      %978 = vset.pattern.permute.xlu0 8
      %979 = vperm.xlu0 %978, %v745
      %v980 = vpop.permute.xlu0 %979
      %v982 = vmul.f32 %v976, %v980
      %v983 = vmul.f32 %v977, %v980
      %v984 = vadd.f32 %v954, %v982
      %v985 = vadd.f32 %v955, %v983
      %v986 = vld [vmem:[%s9] sm:$0xf]
      %988 = vset.pattern.permute.xlu0 0
      %989 = vperm.xlu0 %988, %v986
      %v990 = vpop.permute.xlu0 %989
      %v992 = vadd.f32 %v984, %v990
      %v993 = vadd.f32 %v985, %v990
      %v994 = vmax.f32 %v992, 0.0
      %v995 = vmax.f32 %v993, 0.0
      %v998 = vrot.slane %v994, 4
      %v999 = vrot.slane %v995, 4
      %v1002 = vsel %vm644, %v720, %v998
      %v1003 = vsel %vm644, %v721, %v999
      %v1004 = vld [vmem:[%s1] sm:$0xff]
      %v1005 = vld [vmem:[%s1 + $0x8] sm:$0xff]
      %v1006 = vld [vmem:[%s1 + $0x10] sm:$0xff]
      %v1007 = vld [vmem:[%s1 + $0x18] sm:$0xff]
      %v1008 = vld [vmem:[%s1 + $0x20] sm:$0xff]
      %v1009 = vld [vmem:[%s1 + $0x28] sm:$0xff]
      %v1010 = vld [vmem:[%s1 + $0x30] sm:$0xff]
      %v1011 = vld [vmem:[%s1 + $0x38] sm:$0xff]
      %v1012 = vld [vmem:[%s1 + $0x40] sm:$0xff]
      %v1013 = vld [vmem:[%s1 + $0x48] sm:$0xff]
      %v1014 = vld [vmem:[%s1 + $0x50] sm:$0xff]
      %v1015 = vld [vmem:[%s1 + $0x58] sm:$0xff]
      %v1016 = vld [vmem:[%s1 + $0x60] sm:$0xff]
      %v1017 = vld [vmem:[%s1 + $0x68] sm:$0xff]
      %v1018 = vld [vmem:[%s1 + $0x70] sm:$0xff]
      %v1019 = vld [vmem:[%s1 + $0x78] sm:$0xff]
      %v1020 = vld [vmem:[%s1 + $0x80] sm:$0xff]
      %v1021 = vld [vmem:[%s1 + $0x88] sm:$0xff]
      %v1022 = vld [vmem:[%s1 + $0x90] sm:$0xff]
      %v1023 = vld [vmem:[%s1 + $0x98] sm:$0xff]
      %v1024 = vld [vmem:[%s1 + $0xa0] sm:$0xff]
      %v1025 = vld [vmem:[%s1 + $0xa8] sm:$0xff]
      %v1026 = vld [vmem:[%s1 + $0xb0] sm:$0xff]
      %v1027 = vld [vmem:[%s1 + $0xb8] sm:$0xff]
      %v1028 = vld [vmem:[%s1 + $0xc0] sm:$0xff]
      %v1029 = vld [vmem:[%s1 + $0xc8] sm:$0xff]
      %v1030 = vld [vmem:[%s1 + $0xd0] sm:$0xff]
      %v1031 = vld [vmem:[%s1 + $0xd8] sm:$0xff]
      %v1032 = vld [vmem:[%s1 + $0xe0] sm:$0xff]
      %v1033 = vld [vmem:[%s1 + $0xe8] sm:$0xff]
      %v1034 = vld [vmem:[%s1 + $0xf0] sm:$0xff]
      %v1035 = vld [vmem:[%s1 + $0xf8] sm:$0xff]
      %1037 = vmatprep.subr.mxu0 0.0
      %1038 = vmatpush1.msra.mxu0 %v1004
      %1039 = vmatprep.subr.mxu0 0.0
      %1040 = vmatpush1.msra.mxu0 %v1005
      %1041 = vmatprep.subr.mxu0 0.0
      %1042 = vmatpush1.msra.mxu0 %v1006
      %1043 = vmatprep.subr.mxu0 0.0
      %1044 = vmatpush1.msra.mxu0 %v1007
      %1045 = vmatprep.subr.mxu0 0.0
      %1046 = vmatpush1.msra.mxu0 %v1008
      %1047 = vmatprep.subr.mxu0 0.0
      %1048 = vmatpush1.msra.mxu0 %v1009
      %1049 = vmatprep.subr.mxu0 0.0
      %1050 = vmatpush1.msra.mxu0 %v1010
      %1051 = vmatprep.subr.mxu0 0.0
      %1052 = vmatpush1.msra.mxu0 %v1011
      %1053 = vmatprep.subr.mxu0 0.0
      %1054 = vmatpush1.msra.mxu0 %v1012
      %1055 = vmatprep.subr.mxu0 0.0
      %1056 = vmatpush1.msra.mxu0 %v1013
      %1057 = vmatprep.subr.mxu0 0.0
      %1058 = vmatpush1.msra.mxu0 %v1014
      %1059 = vmatprep.subr.mxu0 0.0
      %1060 = vmatpush1.msra.mxu0 %v1015
      %1061 = vmatprep.subr.mxu0 0.0
      %1062 = vmatpush1.msra.mxu0 %v1016
      %1063 = vmatprep.subr.mxu0 0.0
      %1064 = vmatpush1.msra.mxu0 %v1017
      %1065 = vmatprep.subr.mxu0 0.0
      %1066 = vmatpush1.msra.mxu0 %v1018
      %1067 = vmatprep.subr.mxu0 0.0
      %1068 = vmatpush1.msra.mxu0 %v1019
      %1069 = vmatprep.subr.mxu0 0.0
      %1070 = vmatpush1.msra.mxu0 %v1020
      %1071 = vmatprep.subr.mxu0 0.0
      %1072 = vmatpush1.msra.mxu0 %v1021
      %1073 = vmatprep.subr.mxu0 0.0
      %1074 = vmatpush1.msra.mxu0 %v1022
      %1075 = vmatprep.subr.mxu0 0.0
      %1076 = vmatpush1.msra.mxu0 %v1023
      %1077 = vmatprep.subr.mxu0 0.0
      %1078 = vmatpush1.msra.mxu0 %v1024
      %1079 = vmatprep.subr.mxu0 0.0
      %1080 = vmatpush1.msra.mxu0 %v1025
      %1081 = vmatprep.subr.mxu0 0.0
      %1082 = vmatpush1.msra.mxu0 %v1026
      %1083 = vmatprep.subr.mxu0 0.0
      %1084 = vmatpush1.msra.mxu0 %v1027
      %1085 = vmatprep.subr.mxu0 0.0
      %1086 = vmatpush1.msra.mxu0 %v1028
      %1087 = vmatprep.subr.mxu0 0.0
      %1088 = vmatpush1.msra.mxu0 %v1029
      %1089 = vmatprep.subr.mxu0 0.0
      %1090 = vmatpush1.msra.mxu0 %v1030
      %1091 = vmatprep.subr.mxu0 0.0
      %1092 = vmatpush1.msra.mxu0 %v1031
      %1093 = vmatprep.subr.mxu0 0.0
      %1094 = vmatpush1.msra.mxu0 %v1032
      %1095 = vmatprep.subr.mxu0 0.0
      %1096 = vmatpush1.msra.mxu0 %v1033
      %1097 = vmatprep.subr.mxu0 0.0
      %1098 = vmatpush1.msra.mxu0 %v1034
      %1099 = vmatprep.subr.mxu0 0.0
      %1100 = vmatpush1.msra.mxu0 %v1035
      %1101 = vmatprep.mubr.f32.mxu0 %v639
      %1102 = vmatmul.mubr.f32.gmra.mrb[0].mxu0 %v630
      %v1103 = vpop.f32.mrb[0].mxu0
      %v1104 = vadd.f32 0.0, %v1103
      %v1105 = vpop.f32.mrb[0].mxu0
      %1106 = vdwg.mxu0
      %v1107 = vmul.f32 %v1104, 0.25
      %v1108 = vld [vmem:[%s10] sm:$0xff]
      %v1109 = vld [vmem:[%s11] sm:$0xff]
      %1111 = vset.pattern.permute.xlu0 0
      %1112 = vperm.xlu0 %1111, %v1109
      %v1113 = vpop.permute.xlu0 %1112
      %v1116 = vsel %vm640, %v1108, 0
      %v1119 = vsel %vm644, %v1107, 0
      %1121 = vmatprep.subr.mxu0 0.0
      %1122 = vmatpush1.msra.mxu0 %v1119
      %1123 = vmatprep.subr.mxu0 0.0
      %1124 = vmatpush1.msra.mxu0 0.0
      %1125 = vmatprep.subr.mxu0 0.0
      %1126 = vmatpush1.msra.mxu0 0.0
      %1127 = vmatprep.subr.mxu0 0.0
      %1128 = vmatpush1.msra.mxu0 0.0
      %1129 = vmatprep.subr.mxu0 0.0
      %1130 = vmatpush1.msra.mxu0 0.0
      %1131 = vmatprep.subr.mxu0 0.0
      %1132 = vmatpush1.msra.mxu0 0.0
      %1133 = vmatprep.subr.mxu0 0.0
      %1134 = vmatpush1.msra.mxu0 0.0
      %1135 = vmatprep.subr.mxu0 0.0
      %1136 = vmatpush1.msra.mxu0 0.0
      %1137 = vmatprep.subr.mxu0 0.0
      %1138 = vmatpush1.msra.mxu0 0.0
      %1139 = vmatprep.subr.mxu0 0.0
      %1140 = vmatpush1.msra.mxu0 0.0
      %1141 = vmatprep.subr.mxu0 0.0
      %1142 = vmatpush1.msra.mxu0 0.0
      %1143 = vmatprep.subr.mxu0 0.0
      %1144 = vmatpush1.msra.mxu0 0.0
      %1145 = vmatprep.subr.mxu0 0.0
      %1146 = vmatpush1.msra.mxu0 0.0
      %1147 = vmatprep.subr.mxu0 0.0
      %1148 = vmatpush1.msra.mxu0 0.0
      %1149 = vmatprep.subr.mxu0 0.0
      %1150 = vmatpush1.msra.mxu0 0.0
      %1151 = vmatprep.subr.mxu0 0.0
      %1152 = vmatpush1.msra.mxu0 0.0
      %1153 = vmatprep.subr.mxu0 0.0
      %1154 = vmatpush1.msra.mxu0 0.0
      %1155 = vmatprep.subr.mxu0 0.0
      %1156 = vmatpush1.msra.mxu0 0.0
      %1157 = vmatprep.subr.mxu0 0.0
      %1158 = vmatpush1.msra.mxu0 0.0
      %1159 = vmatprep.subr.mxu0 0.0
      %1160 = vmatpush1.msra.mxu0 0.0
      %1161 = vmatprep.subr.mxu0 0.0
      %1162 = vmatpush1.msra.mxu0 0.0
      %1163 = vmatprep.subr.mxu0 0.0
      %1164 = vmatpush1.msra.mxu0 0.0
      %1165 = vmatprep.subr.mxu0 0.0
      %1166 = vmatpush1.msra.mxu0 0.0
      %1167 = vmatprep.subr.mxu0 0.0
      %1168 = vmatpush1.msra.mxu0 0.0
      %1169 = vmatprep.subr.mxu0 0.0
      %1170 = vmatpush1.msra.mxu0 0.0
      %1171 = vmatprep.subr.mxu0 0.0
      %1172 = vmatpush1.msra.mxu0 0.0
      %1173 = vmatprep.subr.mxu0 0.0
      %1174 = vmatpush1.msra.mxu0 0.0
      %1175 = vmatprep.subr.mxu0 0.0
      %1176 = vmatpush1.msra.mxu0 0.0
      %1177 = vmatprep.subr.mxu0 0.0
      %1178 = vmatpush1.msra.mxu0 0.0
      %1179 = vmatprep.subr.mxu0 0.0
      %1180 = vmatpush1.msra.mxu0 0.0
      %1181 = vmatprep.subr.mxu0 0.0
      %1182 = vmatpush1.msra.mxu0 0.0
      %1183 = vmatprep.subr.mxu0 0.0
      %1184 = vmatpush1.msra.mxu0 0.0
      %1185 = vmatprep.mubr.f32.mxu0 0.0
      %1186 = vmatmul.mubr.f32.gmra.mrb[0].mxu0 %v1116
      %v1187 = vpop.f32.mrb[0].mxu0
      %v1188 = vadd.f32 %v1113, %v1187
      %v1189 = vpop.f32.mrb[0].mxu0
      %1190 = vdwg.mxu0
      %v1191 = vld [vmem:[%s4] sm:$0xff]
      %v1192 = vld [vmem:[%s4 + $0x8] sm:$0xff]
      %v1193 = vld [vmem:[%s4 + $0x10] sm:$0xff]
      %v1194 = vld [vmem:[%s4 + $0x18] sm:$0xff]
      %v1195 = vld [vmem:[%s4 + $0x20] sm:$0xff]
      %v1196 = vld [vmem:[%s4 + $0x28] sm:$0xff]
      %v1197 = vld [vmem:[%s4 + $0x30] sm:$0xff]
      %v1198 = vld [vmem:[%s4 + $0x38] sm:$0xff]
      %vm1199 = vcmask 523264
      %v1201 = vsel %vm1199, %v1188, 0
      %1203 = vmatprep.subr.mxu0 0.0
      %1204 = vmatpush1.msra.mxu0 %v1191
      %1205 = vmatprep.subr.mxu0 0.0
      %1206 = vmatpush1.msra.mxu0 %v1192
      %1207 = vmatprep.subr.mxu0 0.0
      %1208 = vmatpush1.msra.mxu0 %v1193
      %1209 = vmatprep.subr.mxu0 0.0
      %1210 = vmatpush1.msra.mxu0 %v1194
      %1211 = vmatprep.subr.mxu0 0.0
      %1212 = vmatpush1.msra.mxu0 %v1195
      %1213 = vmatprep.subr.mxu0 0.0
      %1214 = vmatpush1.msra.mxu0 %v1196
      %1215 = vmatprep.subr.mxu0 0.0
      %1216 = vmatpush1.msra.mxu0 %v1197
      %1217 = vmatprep.subr.mxu0 0.0
      %1218 = vmatpush1.msra.mxu0 %v1198
      %1219 = vmatprep.subr.mxu0 0.0
      %1220 = vmatpush1.msra.mxu0 0.0
      %1221 = vmatprep.subr.mxu0 0.0
      %1222 = vmatpush1.msra.mxu0 0.0
      %1223 = vmatprep.subr.mxu0 0.0
      %1224 = vmatpush1.msra.mxu0 0.0
      %1225 = vmatprep.subr.mxu0 0.0
      %1226 = vmatpush1.msra.mxu0 0.0
      %1227 = vmatprep.subr.mxu0 0.0
      %1228 = vmatpush1.msra.mxu0 0.0
      %1229 = vmatprep.subr.mxu0 0.0
      %1230 = vmatpush1.msra.mxu0 0.0
      %1231 = vmatprep.subr.mxu0 0.0
      %1232 = vmatpush1.msra.mxu0 0.0
      %1233 = vmatprep.subr.mxu0 0.0
      %1234 = vmatpush1.msra.mxu0 0.0
      %1235 = vmatprep.subr.mxu0 0.0
      %1236 = vmatpush1.msra.mxu0 0.0
      %1237 = vmatprep.subr.mxu0 0.0
      %1238 = vmatpush1.msra.mxu0 0.0
      %1239 = vmatprep.subr.mxu0 0.0
      %1240 = vmatpush1.msra.mxu0 0.0
      %1241 = vmatprep.subr.mxu0 0.0
      %1242 = vmatpush1.msra.mxu0 0.0
      %1243 = vmatprep.subr.mxu0 0.0
      %1244 = vmatpush1.msra.mxu0 0.0
      %1245 = vmatprep.subr.mxu0 0.0
      %1246 = vmatpush1.msra.mxu0 0.0
      %1247 = vmatprep.subr.mxu0 0.0
      %1248 = vmatpush1.msra.mxu0 0.0
      %1249 = vmatprep.subr.mxu0 0.0
      %1250 = vmatpush1.msra.mxu0 0.0
      %1251 = vmatprep.subr.mxu0 0.0
      %1252 = vmatpush1.msra.mxu0 0.0
      %1253 = vmatprep.subr.mxu0 0.0
      %1254 = vmatpush1.msra.mxu0 0.0
      %1255 = vmatprep.subr.mxu0 0.0
      %1256 = vmatpush1.msra.mxu0 0.0
      %1257 = vmatprep.subr.mxu0 0.0
      %1258 = vmatpush1.msra.mxu0 0.0
      %1259 = vmatprep.subr.mxu0 0.0
      %1260 = vmatpush1.msra.mxu0 0.0
      %1261 = vmatprep.subr.mxu0 0.0
      %1262 = vmatpush1.msra.mxu0 0.0
      %1263 = vmatprep.subr.mxu0 0.0
      %1264 = vmatpush1.msra.mxu0 0.0
      %1265 = vmatprep.subr.mxu0 0.0
      %1266 = vmatpush1.msra.mxu0 0.0
      %1267 = vmatprep.mubr.f32.mxu0 0.0
      %1268 = vmatmul.mubr.f32.gmra.mrb[0].mxu0 %v1201
      %v1269 = vpop.f32.mrb[0].mxu0
      %v1270 = vadd.f32 0.0, %v1269
      %v1271 = vpop.f32.mrb[0].mxu0
      %1272 = vdwg.mxu0
      %v1273 = vld [vmem:[%s12] sm:$0xff]
      %1275 = vset.pattern.permute.xlu0 0
      %1276 = vperm.xlu0 %1275, %v1273
      %v1277 = vpop.permute.xlu0 %1276
      %v1279 = vmul.f32 %v1270, %v1277
      %s1280 = scalar_lea.vmem %s4, 64
      %v1281 = vld [vmem:[%s1280] sm:$0xff]
      %v1282 = vld [vmem:[%s1280 + $0x8] sm:$0xff]
      %v1283 = vld [vmem:[%s1280 + $0x10] sm:$0xff]
      %v1284 = vld [vmem:[%s1280 + $0x18] sm:$0xff]
      %v1285 = vld [vmem:[%s1280 + $0x20] sm:$0xff]
      %v1286 = vld [vmem:[%s1280 + $0x28] sm:$0xff]
      %v1287 = vld [vmem:[%s1280 + $0x30] sm:$0xff]
      %v1288 = vld [vmem:[%s1280 + $0x38] sm:$0xff]
      %1289 = vmatprep.subr.mxu0 0.0
      %1290 = vmatpush1.msra.mxu0 %v1281
      %1291 = vmatprep.subr.mxu0 0.0
      %1292 = vmatpush1.msra.mxu0 %v1282
      %1293 = vmatprep.subr.mxu0 0.0
      %1294 = vmatpush1.msra.mxu0 %v1283
      %1295 = vmatprep.subr.mxu0 0.0
      %1296 = vmatpush1.msra.mxu0 %v1284
      %1297 = vmatprep.subr.mxu0 0.0
      %1298 = vmatpush1.msra.mxu0 %v1285
      %1299 = vmatprep.subr.mxu0 0.0
      %1300 = vmatpush1.msra.mxu0 %v1286
      %1301 = vmatprep.subr.mxu0 0.0
      %1302 = vmatpush1.msra.mxu0 %v1287
      %1303 = vmatprep.subr.mxu0 0.0
      %1304 = vmatpush1.msra.mxu0 %v1288
      %1305 = vmatprep.subr.mxu0 0.0
      %1306 = vmatpush1.msra.mxu0 0.0
      %1307 = vmatprep.subr.mxu0 0.0
      %1308 = vmatpush1.msra.mxu0 0.0
      %1309 = vmatprep.subr.mxu0 0.0
      %1310 = vmatpush1.msra.mxu0 0.0
      %1311 = vmatprep.subr.mxu0 0.0
      %1312 = vmatpush1.msra.mxu0 0.0
      %1313 = vmatprep.subr.mxu0 0.0
      %1314 = vmatpush1.msra.mxu0 0.0
      %1315 = vmatprep.subr.mxu0 0.0
      %1316 = vmatpush1.msra.mxu0 0.0
      %1317 = vmatprep.subr.mxu0 0.0
      %1318 = vmatpush1.msra.mxu0 0.0
      %1319 = vmatprep.subr.mxu0 0.0
      %1320 = vmatpush1.msra.mxu0 0.0
      %1321 = vmatprep.subr.mxu0 0.0
      %1322 = vmatpush1.msra.mxu0 0.0
      %1323 = vmatprep.subr.mxu0 0.0
      %1324 = vmatpush1.msra.mxu0 0.0
      %1325 = vmatprep.subr.mxu0 0.0
      %1326 = vmatpush1.msra.mxu0 0.0
      %1327 = vmatprep.subr.mxu0 0.0
      %1328 = vmatpush1.msra.mxu0 0.0
      %1329 = vmatprep.subr.mxu0 0.0
      %1330 = vmatpush1.msra.mxu0 0.0
      %1331 = vmatprep.subr.mxu0 0.0
      %1332 = vmatpush1.msra.mxu0 0.0
      %1333 = vmatprep.subr.mxu0 0.0
      %1334 = vmatpush1.msra.mxu0 0.0
      %1335 = vmatprep.subr.mxu0 0.0
      %1336 = vmatpush1.msra.mxu0 0.0
      %1337 = vmatprep.subr.mxu0 0.0
      %1338 = vmatpush1.msra.mxu0 0.0
      %1339 = vmatprep.subr.mxu0 0.0
      %1340 = vmatpush1.msra.mxu0 0.0
      %1341 = vmatprep.subr.mxu0 0.0
      %1342 = vmatpush1.msra.mxu0 0.0
      %1343 = vmatprep.subr.mxu0 0.0
      %1344 = vmatpush1.msra.mxu0 0.0
      %1345 = vmatprep.subr.mxu0 0.0
      %1346 = vmatpush1.msra.mxu0 0.0
      %1347 = vmatprep.subr.mxu0 0.0
      %1348 = vmatpush1.msra.mxu0 0.0
      %1349 = vmatprep.subr.mxu0 0.0
      %1350 = vmatpush1.msra.mxu0 0.0
      %1351 = vmatprep.subr.mxu0 0.0
      %1352 = vmatpush1.msra.mxu0 0.0
      %1353 = vmatprep.mubr.f32.mxu0 0.0
      %1354 = vmatmul.mubr.f32.gmra.mrb[0].mxu0 %v1201
      %v1355 = vpop.f32.mrb[0].mxu0
      %v1356 = vadd.f32 0.0, %v1355
      %v1357 = vpop.f32.mrb[0].mxu0
      %1358 = vdwg.mxu0
      %1359 = vset.pattern.permute.xlu0 1
      %1360 = vperm.xlu0 %1359, %v1273
      %v1361 = vpop.permute.xlu0 %1360
      %v1363 = vmul.f32 %v1356, %v1361
      %v1364 = vadd.f32 %v1279, %v1363
      %s1365 = scalar_lea.vmem %s4, 128
      %v1366 = vld [vmem:[%s1365] sm:$0xff]
      %v1367 = vld [vmem:[%s1365 + $0x8] sm:$0xff]
      %v1368 = vld [vmem:[%s1365 + $0x10] sm:$0xff]
      %v1369 = vld [vmem:[%s1365 + $0x18] sm:$0xff]
      %v1370 = vld [vmem:[%s1365 + $0x20] sm:$0xff]
      %v1371 = vld [vmem:[%s1365 + $0x28] sm:$0xff]
      %v1372 = vld [vmem:[%s1365 + $0x30] sm:$0xff]
      %v1373 = vld [vmem:[%s1365 + $0x38] sm:$0xff]
      %1374 = vmatprep.subr.mxu0 0.0
      %1375 = vmatpush1.msra.mxu0 %v1366
      %1376 = vmatprep.subr.mxu0 0.0
      %1377 = vmatpush1.msra.mxu0 %v1367
      %1378 = vmatprep.subr.mxu0 0.0
      %1379 = vmatpush1.msra.mxu0 %v1368
      %1380 = vmatprep.subr.mxu0 0.0
      %1381 = vmatpush1.msra.mxu0 %v1369
      %1382 = vmatprep.subr.mxu0 0.0
      %1383 = vmatpush1.msra.mxu0 %v1370
      %1384 = vmatprep.subr.mxu0 0.0
      %1385 = vmatpush1.msra.mxu0 %v1371
      %1386 = vmatprep.subr.mxu0 0.0
      %1387 = vmatpush1.msra.mxu0 %v1372
      %1388 = vmatprep.subr.mxu0 0.0
      %1389 = vmatpush1.msra.mxu0 %v1373
      %1390 = vmatprep.subr.mxu0 0.0
      %1391 = vmatpush1.msra.mxu0 0.0
      %1392 = vmatprep.subr.mxu0 0.0
      %1393 = vmatpush1.msra.mxu0 0.0
      %1394 = vmatprep.subr.mxu0 0.0
      %1395 = vmatpush1.msra.mxu0 0.0
      %1396 = vmatprep.subr.mxu0 0.0
      %1397 = vmatpush1.msra.mxu0 0.0
      %1398 = vmatprep.subr.mxu0 0.0
      %1399 = vmatpush1.msra.mxu0 0.0
      %1400 = vmatprep.subr.mxu0 0.0
      %1401 = vmatpush1.msra.mxu0 0.0
      %1402 = vmatprep.subr.mxu0 0.0
      %1403 = vmatpush1.msra.mxu0 0.0
      %1404 = vmatprep.subr.mxu0 0.0
      %1405 = vmatpush1.msra.mxu0 0.0
      %1406 = vmatprep.subr.mxu0 0.0
      %1407 = vmatpush1.msra.mxu0 0.0
      %1408 = vmatprep.subr.mxu0 0.0
      %1409 = vmatpush1.msra.mxu0 0.0
      %1410 = vmatprep.subr.mxu0 0.0
      %1411 = vmatpush1.msra.mxu0 0.0
      %1412 = vmatprep.subr.mxu0 0.0
      %1413 = vmatpush1.msra.mxu0 0.0
      %1414 = vmatprep.subr.mxu0 0.0
      %1415 = vmatpush1.msra.mxu0 0.0
      %1416 = vmatprep.subr.mxu0 0.0
      %1417 = vmatpush1.msra.mxu0 0.0
      %1418 = vmatprep.subr.mxu0 0.0
      %1419 = vmatpush1.msra.mxu0 0.0
      %1420 = vmatprep.subr.mxu0 0.0
      %1421 = vmatpush1.msra.mxu0 0.0
      %1422 = vmatprep.subr.mxu0 0.0
      %1423 = vmatpush1.msra.mxu0 0.0
      %1424 = vmatprep.subr.mxu0 0.0
      %1425 = vmatpush1.msra.mxu0 0.0
      %1426 = vmatprep.subr.mxu0 0.0
      %1427 = vmatpush1.msra.mxu0 0.0
      %1428 = vmatprep.subr.mxu0 0.0
      %1429 = vmatpush1.msra.mxu0 0.0
      %1430 = vmatprep.subr.mxu0 0.0
      %1431 = vmatpush1.msra.mxu0 0.0
      %1432 = vmatprep.subr.mxu0 0.0
      %1433 = vmatpush1.msra.mxu0 0.0
      %1434 = vmatprep.subr.mxu0 0.0
      %1435 = vmatpush1.msra.mxu0 0.0
      %1436 = vmatprep.subr.mxu0 0.0
      %1437 = vmatpush1.msra.mxu0 0.0
      %1438 = vmatprep.mubr.f32.mxu0 0.0
      %1439 = vmatmul.mubr.f32.gmra.mrb[0].mxu0 %v1201
      %v1440 = vpop.f32.mrb[0].mxu0
      %v1441 = vadd.f32 0.0, %v1440
      %v1442 = vpop.f32.mrb[0].mxu0
      %1443 = vdwg.mxu0
      %1444 = vset.pattern.permute.xlu0 2
      %1445 = vperm.xlu0 %1444, %v1273
      %v1446 = vpop.permute.xlu0 %1445
      %v1448 = vmul.f32 %v1441, %v1446
      %v1449 = vadd.f32 %v1364, %v1448
      %s1450 = scalar_lea.vmem %s4, 192
      %v1451 = vld [vmem:[%s1450] sm:$0xff]
      %v1452 = vld [vmem:[%s1450 + $0x8] sm:$0xff]
      %v1453 = vld [vmem:[%s1450 + $0x10] sm:$0xff]
      %v1454 = vld [vmem:[%s1450 + $0x18] sm:$0xff]
      %v1455 = vld [vmem:[%s1450 + $0x20] sm:$0xff]
      %v1456 = vld [vmem:[%s1450 + $0x28] sm:$0xff]
      %v1457 = vld [vmem:[%s1450 + $0x30] sm:$0xff]
      %v1458 = vld [vmem:[%s1450 + $0x38] sm:$0xff]
      %1459 = vmatprep.subr.mxu0 0.0
      %1460 = vmatpush1.msra.mxu0 %v1451
      %1461 = vmatprep.subr.mxu0 0.0
      %1462 = vmatpush1.msra.mxu0 %v1452
      %1463 = vmatprep.subr.mxu0 0.0
      %1464 = vmatpush1.msra.mxu0 %v1453
      %1465 = vmatprep.subr.mxu0 0.0
      %1466 = vmatpush1.msra.mxu0 %v1454
      %1467 = vmatprep.subr.mxu0 0.0
      %1468 = vmatpush1.msra.mxu0 %v1455
      %1469 = vmatprep.subr.mxu0 0.0
      %1470 = vmatpush1.msra.mxu0 %v1456
      %1471 = vmatprep.subr.mxu0 0.0
      %1472 = vmatpush1.msra.mxu0 %v1457
      %1473 = vmatprep.subr.mxu0 0.0
      %1474 = vmatpush1.msra.mxu0 %v1458
      %1475 = vmatprep.subr.mxu0 0.0
      %1476 = vmatpush1.msra.mxu0 0.0
      %1477 = vmatprep.subr.mxu0 0.0
      %1478 = vmatpush1.msra.mxu0 0.0
      %1479 = vmatprep.subr.mxu0 0.0
      %1480 = vmatpush1.msra.mxu0 0.0
      %1481 = vmatprep.subr.mxu0 0.0
      %1482 = vmatpush1.msra.mxu0 0.0
      %1483 = vmatprep.subr.mxu0 0.0
      %1484 = vmatpush1.msra.mxu0 0.0
      %1485 = vmatprep.subr.mxu0 0.0
      %1486 = vmatpush1.msra.mxu0 0.0
      %1487 = vmatprep.subr.mxu0 0.0
      %1488 = vmatpush1.msra.mxu0 0.0
      %1489 = vmatprep.subr.mxu0 0.0
      %1490 = vmatpush1.msra.mxu0 0.0
      %1491 = vmatprep.subr.mxu0 0.0
      %1492 = vmatpush1.msra.mxu0 0.0
      %1493 = vmatprep.subr.mxu0 0.0
      %1494 = vmatpush1.msra.mxu0 0.0
      %1495 = vmatprep.subr.mxu0 0.0
      %1496 = vmatpush1.msra.mxu0 0.0
      %1497 = vmatprep.subr.mxu0 0.0
      %1498 = vmatpush1.msra.mxu0 0.0
      %1499 = vmatprep.subr.mxu0 0.0
      %1500 = vmatpush1.msra.mxu0 0.0
      %1501 = vmatprep.subr.mxu0 0.0
      %1502 = vmatpush1.msra.mxu0 0.0
      %1503 = vmatprep.subr.mxu0 0.0
      %1504 = vmatpush1.msra.mxu0 0.0
      %1505 = vmatprep.subr.mxu0 0.0
      %1506 = vmatpush1.msra.mxu0 0.0
      %1507 = vmatprep.subr.mxu0 0.0
      %1508 = vmatpush1.msra.mxu0 0.0
      %1509 = vmatprep.subr.mxu0 0.0
      %1510 = vmatpush1.msra.mxu0 0.0
      %1511 = vmatprep.subr.mxu0 0.0
      %1512 = vmatpush1.msra.mxu0 0.0
      %1513 = vmatprep.subr.mxu0 0.0
      %1514 = vmatpush1.msra.mxu0 0.0
      %1515 = vmatprep.subr.mxu0 0.0
      %1516 = vmatpush1.msra.mxu0 0.0
      %1517 = vmatprep.subr.mxu0 0.0
      %1518 = vmatpush1.msra.mxu0 0.0
      %1519 = vmatprep.subr.mxu0 0.0
      %1520 = vmatpush1.msra.mxu0 0.0
      %1521 = vmatprep.subr.mxu0 0.0
      %1522 = vmatpush1.msra.mxu0 0.0
      %1523 = vmatprep.mubr.f32.mxu0 0.0
      %1524 = vmatmul.mubr.f32.gmra.mrb[0].mxu0 %v1201
      %v1525 = vpop.f32.mrb[0].mxu0
      %v1526 = vadd.f32 0.0, %v1525
      %v1527 = vpop.f32.mrb[0].mxu0
      %1528 = vdwg.mxu0
      %1529 = vset.pattern.permute.xlu0 3
      %1530 = vperm.xlu0 %1529, %v1273
      %v1531 = vpop.permute.xlu0 %1530
      %v1533 = vmul.f32 %v1526, %v1531
      %v1534 = vadd.f32 %v1449, %v1533
      %s1535 = scalar_lea.vmem %s4, 256
      %v1536 = vld [vmem:[%s1535] sm:$0xff]
      %v1537 = vld [vmem:[%s1535 + $0x8] sm:$0xff]
      %v1538 = vld [vmem:[%s1535 + $0x10] sm:$0xff]
      %v1539 = vld [vmem:[%s1535 + $0x18] sm:$0xff]
      %v1540 = vld [vmem:[%s1535 + $0x20] sm:$0xff]
      %v1541 = vld [vmem:[%s1535 + $0x28] sm:$0xff]
      %v1542 = vld [vmem:[%s1535 + $0x30] sm:$0xff]
      %v1543 = vld [vmem:[%s1535 + $0x38] sm:$0xff]
      %1544 = vmatprep.subr.mxu0 0.0
      %1545 = vmatpush1.msra.mxu0 %v1536
      %1546 = vmatprep.subr.mxu0 0.0
      %1547 = vmatpush1.msra.mxu0 %v1537
      %1548 = vmatprep.subr.mxu0 0.0
      %1549 = vmatpush1.msra.mxu0 %v1538
      %1550 = vmatprep.subr.mxu0 0.0
      %1551 = vmatpush1.msra.mxu0 %v1539
      %1552 = vmatprep.subr.mxu0 0.0
      %1553 = vmatpush1.msra.mxu0 %v1540
      %1554 = vmatprep.subr.mxu0 0.0
      %1555 = vmatpush1.msra.mxu0 %v1541
      %1556 = vmatprep.subr.mxu0 0.0
      %1557 = vmatpush1.msra.mxu0 %v1542
      %1558 = vmatprep.subr.mxu0 0.0
      %1559 = vmatpush1.msra.mxu0 %v1543
      %1560 = vmatprep.subr.mxu0 0.0
      %1561 = vmatpush1.msra.mxu0 0.0
      %1562 = vmatprep.subr.mxu0 0.0
      %1563 = vmatpush1.msra.mxu0 0.0
      %1564 = vmatprep.subr.mxu0 0.0
      %1565 = vmatpush1.msra.mxu0 0.0
      %1566 = vmatprep.subr.mxu0 0.0
      %1567 = vmatpush1.msra.mxu0 0.0
      %1568 = vmatprep.subr.mxu0 0.0
      %1569 = vmatpush1.msra.mxu0 0.0
      %1570 = vmatprep.subr.mxu0 0.0
      %1571 = vmatpush1.msra.mxu0 0.0
      %1572 = vmatprep.subr.mxu0 0.0
      %1573 = vmatpush1.msra.mxu0 0.0
      %1574 = vmatprep.subr.mxu0 0.0
      %1575 = vmatpush1.msra.mxu0 0.0
      %1576 = vmatprep.subr.mxu0 0.0
      %1577 = vmatpush1.msra.mxu0 0.0
      %1578 = vmatprep.subr.mxu0 0.0
      %1579 = vmatpush1.msra.mxu0 0.0
      %1580 = vmatprep.subr.mxu0 0.0
      %1581 = vmatpush1.msra.mxu0 0.0
      %1582 = vmatprep.subr.mxu0 0.0
      %1583 = vmatpush1.msra.mxu0 0.0
      %1584 = vmatprep.subr.mxu0 0.0
      %1585 = vmatpush1.msra.mxu0 0.0
      %1586 = vmatprep.subr.mxu0 0.0
      %1587 = vmatpush1.msra.mxu0 0.0
      %1588 = vmatprep.subr.mxu0 0.0
      %1589 = vmatpush1.msra.mxu0 0.0
      %1590 = vmatprep.subr.mxu0 0.0
      %1591 = vmatpush1.msra.mxu0 0.0
      %1592 = vmatprep.subr.mxu0 0.0
      %1593 = vmatpush1.msra.mxu0 0.0
      %1594 = vmatprep.subr.mxu0 0.0
      %1595 = vmatpush1.msra.mxu0 0.0
      %1596 = vmatprep.subr.mxu0 0.0
      %1597 = vmatpush1.msra.mxu0 0.0
      %1598 = vmatprep.subr.mxu0 0.0
      %1599 = vmatpush1.msra.mxu0 0.0
      %1600 = vmatprep.subr.mxu0 0.0
      %1601 = vmatpush1.msra.mxu0 0.0
      %1602 = vmatprep.subr.mxu0 0.0
      %1603 = vmatpush1.msra.mxu0 0.0
      %1604 = vmatprep.subr.mxu0 0.0
      %1605 = vmatpush1.msra.mxu0 0.0
      %1606 = vmatprep.subr.mxu0 0.0
      %1607 = vmatpush1.msra.mxu0 0.0
      %1608 = vmatprep.mubr.f32.mxu0 0.0
      %1609 = vmatmul.mubr.f32.gmra.mrb[0].mxu0 %v1201
      %v1610 = vpop.f32.mrb[0].mxu0
      %v1611 = vadd.f32 0.0, %v1610
      %v1612 = vpop.f32.mrb[0].mxu0
      %1613 = vdwg.mxu0
      %1614 = vset.pattern.permute.xlu0 4
      %1615 = vperm.xlu0 %1614, %v1273
      %v1616 = vpop.permute.xlu0 %1615
      %v1618 = vmul.f32 %v1611, %v1616
      %v1619 = vadd.f32 %v1534, %v1618
      %v1620 = vld [vmem:[%s13] sm:$0xff]
      %1622 = vset.pattern.permute.xlu0 0
      %1623 = vperm.xlu0 %1622, %v1620
      %v1624 = vpop.permute.xlu0 %1623
      %v1626 = vadd.f32 %v1619, %v1624
      %v1627 = vld [vmem:[%s5] sm:$0xff]
      %v1628 = vld [vmem:[%s5 + $0x8] sm:$0xff]
      %v1629 = vld [vmem:[%s5 + $0x10] sm:$0xff]
      %v1630 = vld [vmem:[%s5 + $0x18] sm:$0xff]
      %v1631 = vld [vmem:[%s5 + $0x20] sm:$0xff]
      %v1632 = vld [vmem:[%s5 + $0x28] sm:$0xff]
      %v1633 = vld [vmem:[%s5 + $0x30] sm:$0xff]
      %v1634 = vld [vmem:[%s5 + $0x38] sm:$0xff]
      %v1636 = vsel %vm1199, %v1626, 0
      %1638 = vmatprep.subr.mxu0 0.0
      %1639 = vmatpush1.msra.mxu0 %v1627
      %1640 = vmatprep.subr.mxu0 0.0
      %1641 = vmatpush1.msra.mxu0 %v1628
      %1642 = vmatprep.subr.mxu0 0.0
      %1643 = vmatpush1.msra.mxu0 %v1629
      %1644 = vmatprep.subr.mxu0 0.0
      %1645 = vmatpush1.msra.mxu0 %v1630
      %1646 = vmatprep.subr.mxu0 0.0
      %1647 = vmatpush1.msra.mxu0 %v1631
      %1648 = vmatprep.subr.mxu0 0.0
      %1649 = vmatpush1.msra.mxu0 %v1632
      %1650 = vmatprep.subr.mxu0 0.0
      %1651 = vmatpush1.msra.mxu0 %v1633
      %1652 = vmatprep.subr.mxu0 0.0
      %1653 = vmatpush1.msra.mxu0 %v1634
      %1654 = vmatprep.subr.mxu0 0.0
      %1655 = vmatpush1.msra.mxu0 0.0
      %1656 = vmatprep.subr.mxu0 0.0
      %1657 = vmatpush1.msra.mxu0 0.0
      %1658 = vmatprep.subr.mxu0 0.0
      %1659 = vmatpush1.msra.mxu0 0.0
      %1660 = vmatprep.subr.mxu0 0.0
      %1661 = vmatpush1.msra.mxu0 0.0
      %1662 = vmatprep.subr.mxu0 0.0
      %1663 = vmatpush1.msra.mxu0 0.0
      %1664 = vmatprep.subr.mxu0 0.0
      %1665 = vmatpush1.msra.mxu0 0.0
      %1666 = vmatprep.subr.mxu0 0.0
      %1667 = vmatpush1.msra.mxu0 0.0
      %1668 = vmatprep.subr.mxu0 0.0
      %1669 = vmatpush1.msra.mxu0 0.0
      %1670 = vmatprep.subr.mxu0 0.0
      %1671 = vmatpush1.msra.mxu0 0.0
      %1672 = vmatprep.subr.mxu0 0.0
      %1673 = vmatpush1.msra.mxu0 0.0
      %1674 = vmatprep.subr.mxu0 0.0
      %1675 = vmatpush1.msra.mxu0 0.0
      %1676 = vmatprep.subr.mxu0 0.0
      %1677 = vmatpush1.msra.mxu0 0.0
      %1678 = vmatprep.subr.mxu0 0.0
      %1679 = vmatpush1.msra.mxu0 0.0
      %1680 = vmatprep.subr.mxu0 0.0
      %1681 = vmatpush1.msra.mxu0 0.0
      %1682 = vmatprep.subr.mxu0 0.0
      %1683 = vmatpush1.msra.mxu0 0.0
      %1684 = vmatprep.subr.mxu0 0.0
      %1685 = vmatpush1.msra.mxu0 0.0
      %1686 = vmatprep.subr.mxu0 0.0
      %1687 = vmatpush1.msra.mxu0 0.0
      %1688 = vmatprep.subr.mxu0 0.0
      %1689 = vmatpush1.msra.mxu0 0.0
      %1690 = vmatprep.subr.mxu0 0.0
      %1691 = vmatpush1.msra.mxu0 0.0
      %1692 = vmatprep.subr.mxu0 0.0
      %1693 = vmatpush1.msra.mxu0 0.0
      %1694 = vmatprep.subr.mxu0 0.0
      %1695 = vmatpush1.msra.mxu0 0.0
      %1696 = vmatprep.subr.mxu0 0.0
      %1697 = vmatpush1.msra.mxu0 0.0
      %1698 = vmatprep.subr.mxu0 0.0
      %1699 = vmatpush1.msra.mxu0 0.0
      %1700 = vmatprep.subr.mxu0 0.0
      %1701 = vmatpush1.msra.mxu0 0.0
      %1702 = vmatprep.mubr.f32.mxu0 0.0
      %1703 = vmatmul.mubr.f32.gmra.mrb[0].mxu0 %v1636
      %v1704 = vpop.f32.mrb[0].mxu0
      %v1705 = vadd.f32 0.0, %v1704
      %v1706 = vpop.f32.mrb[0].mxu0
      %1707 = vdwg.mxu0
      %v1708 = vld [vmem:[%s14] sm:$0xff]
      %1710 = vset.pattern.permute.xlu0 0
      %1711 = vperm.xlu0 %1710, %v1708
      %v1712 = vpop.permute.xlu0 %1711
      %v1714 = vmul.f32 %v1705, %v1712
      %s1715 = scalar_lea.vmem %s5, 64
      %v1716 = vld [vmem:[%s1715] sm:$0xff]
      %v1717 = vld [vmem:[%s1715 + $0x8] sm:$0xff]
      %v1718 = vld [vmem:[%s1715 + $0x10] sm:$0xff]
      %v1719 = vld [vmem:[%s1715 + $0x18] sm:$0xff]
      %v1720 = vld [vmem:[%s1715 + $0x20] sm:$0xff]
      %v1721 = vld [vmem:[%s1715 + $0x28] sm:$0xff]
      %v1722 = vld [vmem:[%s1715 + $0x30] sm:$0xff]
      %v1723 = vld [vmem:[%s1715 + $0x38] sm:$0xff]
      %1724 = vmatprep.subr.mxu0 0.0
      %1725 = vmatpush1.msra.mxu0 %v1716
      %1726 = vmatprep.subr.mxu0 0.0
      %1727 = vmatpush1.msra.mxu0 %v1717
      %1728 = vmatprep.subr.mxu0 0.0
      %1729 = vmatpush1.msra.mxu0 %v1718
      %1730 = vmatprep.subr.mxu0 0.0
      %1731 = vmatpush1.msra.mxu0 %v1719
      %1732 = vmatprep.subr.mxu0 0.0
      %1733 = vmatpush1.msra.mxu0 %v1720
      %1734 = vmatprep.subr.mxu0 0.0
      %1735 = vmatpush1.msra.mxu0 %v1721
      %1736 = vmatprep.subr.mxu0 0.0
      %1737 = vmatpush1.msra.mxu0 %v1722
      %1738 = vmatprep.subr.mxu0 0.0
      %1739 = vmatpush1.msra.mxu0 %v1723
      %1740 = vmatprep.subr.mxu0 0.0
      %1741 = vmatpush1.msra.mxu0 0.0
      %1742 = vmatprep.subr.mxu0 0.0
      %1743 = vmatpush1.msra.mxu0 0.0
      %1744 = vmatprep.subr.mxu0 0.0
      %1745 = vmatpush1.msra.mxu0 0.0
      %1746 = vmatprep.subr.mxu0 0.0
      %1747 = vmatpush1.msra.mxu0 0.0
      %1748 = vmatprep.subr.mxu0 0.0
      %1749 = vmatpush1.msra.mxu0 0.0
      %1750 = vmatprep.subr.mxu0 0.0
      %1751 = vmatpush1.msra.mxu0 0.0
      %1752 = vmatprep.subr.mxu0 0.0
      %1753 = vmatpush1.msra.mxu0 0.0
      %1754 = vmatprep.subr.mxu0 0.0
      %1755 = vmatpush1.msra.mxu0 0.0
      %1756 = vmatprep.subr.mxu0 0.0
      %1757 = vmatpush1.msra.mxu0 0.0
      %1758 = vmatprep.subr.mxu0 0.0
      %1759 = vmatpush1.msra.mxu0 0.0
      %1760 = vmatprep.subr.mxu0 0.0
      %1761 = vmatpush1.msra.mxu0 0.0
      %1762 = vmatprep.subr.mxu0 0.0
      %1763 = vmatpush1.msra.mxu0 0.0
      %1764 = vmatprep.subr.mxu0 0.0
      %1765 = vmatpush1.msra.mxu0 0.0
      %1766 = vmatprep.subr.mxu0 0.0
      %1767 = vmatpush1.msra.mxu0 0.0
      %1768 = vmatprep.subr.mxu0 0.0
      %1769 = vmatpush1.msra.mxu0 0.0
      %1770 = vmatprep.subr.mxu0 0.0
      %1771 = vmatpush1.msra.mxu0 0.0
      %1772 = vmatprep.subr.mxu0 0.0
      %1773 = vmatpush1.msra.mxu0 0.0
      %1774 = vmatprep.subr.mxu0 0.0
      %1775 = vmatpush1.msra.mxu0 0.0
      %1776 = vmatprep.subr.mxu0 0.0
      %1777 = vmatpush1.msra.mxu0 0.0
      %1778 = vmatprep.subr.mxu0 0.0
      %1779 = vmatpush1.msra.mxu0 0.0
      %1780 = vmatprep.subr.mxu0 0.0
      %1781 = vmatpush1.msra.mxu0 0.0
      %1782 = vmatprep.subr.mxu0 0.0
      %1783 = vmatpush1.msra.mxu0 0.0
      %1784 = vmatprep.subr.mxu0 0.0
      %1785 = vmatpush1.msra.mxu0 0.0
      %1786 = vmatprep.subr.mxu0 0.0
      %1787 = vmatpush1.msra.mxu0 0.0
      %1788 = vmatprep.mubr.f32.mxu0 0.0
      %1789 = vmatmul.mubr.f32.gmra.mrb[0].mxu0 %v1636
      %v1790 = vpop.f32.mrb[0].mxu0
      %v1791 = vadd.f32 0.0, %v1790
      %v1792 = vpop.f32.mrb[0].mxu0
      %1793 = vdwg.mxu0
      %1794 = vset.pattern.permute.xlu0 1
      %1795 = vperm.xlu0 %1794, %v1708
      %v1796 = vpop.permute.xlu0 %1795
      %v1798 = vmul.f32 %v1791, %v1796
      %v1799 = vadd.f32 %v1714, %v1798
      %s1800 = scalar_lea.vmem %s5, 128
      %v1801 = vld [vmem:[%s1800] sm:$0xff]
      %v1802 = vld [vmem:[%s1800 + $0x8] sm:$0xff]
      %v1803 = vld [vmem:[%s1800 + $0x10] sm:$0xff]
      %v1804 = vld [vmem:[%s1800 + $0x18] sm:$0xff]
      %v1805 = vld [vmem:[%s1800 + $0x20] sm:$0xff]
      %v1806 = vld [vmem:[%s1800 + $0x28] sm:$0xff]
      %v1807 = vld [vmem:[%s1800 + $0x30] sm:$0xff]
      %v1808 = vld [vmem:[%s1800 + $0x38] sm:$0xff]
      %1809 = vmatprep.subr.mxu0 0.0
      %1810 = vmatpush1.msra.mxu0 %v1801
      %1811 = vmatprep.subr.mxu0 0.0
      %1812 = vmatpush1.msra.mxu0 %v1802
      %1813 = vmatprep.subr.mxu0 0.0
      %1814 = vmatpush1.msra.mxu0 %v1803
      %1815 = vmatprep.subr.mxu0 0.0
      %1816 = vmatpush1.msra.mxu0 %v1804
      %1817 = vmatprep.subr.mxu0 0.0
      %1818 = vmatpush1.msra.mxu0 %v1805
      %1819 = vmatprep.subr.mxu0 0.0
      %1820 = vmatpush1.msra.mxu0 %v1806
      %1821 = vmatprep.subr.mxu0 0.0
      %1822 = vmatpush1.msra.mxu0 %v1807
      %1823 = vmatprep.subr.mxu0 0.0
      %1824 = vmatpush1.msra.mxu0 %v1808
      %1825 = vmatprep.subr.mxu0 0.0
      %1826 = vmatpush1.msra.mxu0 0.0
      %1827 = vmatprep.subr.mxu0 0.0
      %1828 = vmatpush1.msra.mxu0 0.0
      %1829 = vmatprep.subr.mxu0 0.0
      %1830 = vmatpush1.msra.mxu0 0.0
      %1831 = vmatprep.subr.mxu0 0.0
      %1832 = vmatpush1.msra.mxu0 0.0
      %1833 = vmatprep.subr.mxu0 0.0
      %1834 = vmatpush1.msra.mxu0 0.0
      %1835 = vmatprep.subr.mxu0 0.0
      %1836 = vmatpush1.msra.mxu0 0.0
      %1837 = vmatprep.subr.mxu0 0.0
      %1838 = vmatpush1.msra.mxu0 0.0
      %1839 = vmatprep.subr.mxu0 0.0
      %1840 = vmatpush1.msra.mxu0 0.0
      %1841 = vmatprep.subr.mxu0 0.0
      %1842 = vmatpush1.msra.mxu0 0.0
      %1843 = vmatprep.subr.mxu0 0.0
      %1844 = vmatpush1.msra.mxu0 0.0
      %1845 = vmatprep.subr.mxu0 0.0
      %1846 = vmatpush1.msra.mxu0 0.0
      %1847 = vmatprep.subr.mxu0 0.0
      %1848 = vmatpush1.msra.mxu0 0.0
      %1849 = vmatprep.subr.mxu0 0.0
      %1850 = vmatpush1.msra.mxu0 0.0
      %1851 = vmatprep.subr.mxu0 0.0
      %1852 = vmatpush1.msra.mxu0 0.0
      %1853 = vmatprep.subr.mxu0 0.0
      %1854 = vmatpush1.msra.mxu0 0.0
      %1855 = vmatprep.subr.mxu0 0.0
      %1856 = vmatpush1.msra.mxu0 0.0
      %1857 = vmatprep.subr.mxu0 0.0
      %1858 = vmatpush1.msra.mxu0 0.0
      %1859 = vmatprep.subr.mxu0 0.0
      %1860 = vmatpush1.msra.mxu0 0.0
      %1861 = vmatprep.subr.mxu0 0.0
      %1862 = vmatpush1.msra.mxu0 0.0
      %1863 = vmatprep.subr.mxu0 0.0
      %1864 = vmatpush1.msra.mxu0 0.0
      %1865 = vmatprep.subr.mxu0 0.0
      %1866 = vmatpush1.msra.mxu0 0.0
      %1867 = vmatprep.subr.mxu0 0.0
      %1868 = vmatpush1.msra.mxu0 0.0
      %1869 = vmatprep.subr.mxu0 0.0
      %1870 = vmatpush1.msra.mxu0 0.0
      %1871 = vmatprep.subr.mxu0 0.0
      %1872 = vmatpush1.msra.mxu0 0.0
      %1873 = vmatprep.mubr.f32.mxu0 0.0
      %1874 = vmatmul.mubr.f32.gmra.mrb[0].mxu0 %v1636
      %v1875 = vpop.f32.mrb[0].mxu0
      %v1876 = vadd.f32 0.0, %v1875
      %v1877 = vpop.f32.mrb[0].mxu0
      %1878 = vdwg.mxu0
      %1879 = vset.pattern.permute.xlu0 2
      %1880 = vperm.xlu0 %1879, %v1708
      %v1881 = vpop.permute.xlu0 %1880
      %v1883 = vmul.f32 %v1876, %v1881
      %v1884 = vadd.f32 %v1799, %v1883
      %s1885 = scalar_lea.vmem %s5, 192
      %v1886 = vld [vmem:[%s1885] sm:$0xff]
      %v1887 = vld [vmem:[%s1885 + $0x8] sm:$0xff]
      %v1888 = vld [vmem:[%s1885 + $0x10] sm:$0xff]
      %v1889 = vld [vmem:[%s1885 + $0x18] sm:$0xff]
      %v1890 = vld [vmem:[%s1885 + $0x20] sm:$0xff]
      %v1891 = vld [vmem:[%s1885 + $0x28] sm:$0xff]
      %v1892 = vld [vmem:[%s1885 + $0x30] sm:$0xff]
      %v1893 = vld [vmem:[%s1885 + $0x38] sm:$0xff]
      %1894 = vmatprep.subr.mxu0 0.0
      %1895 = vmatpush1.msra.mxu0 %v1886
      %1896 = vmatprep.subr.mxu0 0.0
      %1897 = vmatpush1.msra.mxu0 %v1887
      %1898 = vmatprep.subr.mxu0 0.0
      %1899 = vmatpush1.msra.mxu0 %v1888
      %1900 = vmatprep.subr.mxu0 0.0
      %1901 = vmatpush1.msra.mxu0 %v1889
      %1902 = vmatprep.subr.mxu0 0.0
      %1903 = vmatpush1.msra.mxu0 %v1890
      %1904 = vmatprep.subr.mxu0 0.0
      %1905 = vmatpush1.msra.mxu0 %v1891
      %1906 = vmatprep.subr.mxu0 0.0
      %1907 = vmatpush1.msra.mxu0 %v1892
      %1908 = vmatprep.subr.mxu0 0.0
      %1909 = vmatpush1.msra.mxu0 %v1893
      %1910 = vmatprep.subr.mxu0 0.0
      %1911 = vmatpush1.msra.mxu0 0.0
      %1912 = vmatprep.subr.mxu0 0.0
      %1913 = vmatpush1.msra.mxu0 0.0
      %1914 = vmatprep.subr.mxu0 0.0
      %1915 = vmatpush1.msra.mxu0 0.0
      %1916 = vmatprep.subr.mxu0 0.0
      %1917 = vmatpush1.msra.mxu0 0.0
      %1918 = vmatprep.subr.mxu0 0.0
      %1919 = vmatpush1.msra.mxu0 0.0
      %1920 = vmatprep.subr.mxu0 0.0
      %1921 = vmatpush1.msra.mxu0 0.0
      %1922 = vmatprep.subr.mxu0 0.0
      %1923 = vmatpush1.msra.mxu0 0.0
      %1924 = vmatprep.subr.mxu0 0.0
      %1925 = vmatpush1.msra.mxu0 0.0
      %1926 = vmatprep.subr.mxu0 0.0
      %1927 = vmatpush1.msra.mxu0 0.0
      %1928 = vmatprep.subr.mxu0 0.0
      %1929 = vmatpush1.msra.mxu0 0.0
      %1930 = vmatprep.subr.mxu0 0.0
      %1931 = vmatpush1.msra.mxu0 0.0
      %1932 = vmatprep.subr.mxu0 0.0
      %1933 = vmatpush1.msra.mxu0 0.0
      %1934 = vmatprep.subr.mxu0 0.0
      %1935 = vmatpush1.msra.mxu0 0.0
      %1936 = vmatprep.subr.mxu0 0.0
      %1937 = vmatpush1.msra.mxu0 0.0
      %1938 = vmatprep.subr.mxu0 0.0
      %1939 = vmatpush1.msra.mxu0 0.0
      %1940 = vmatprep.subr.mxu0 0.0
      %1941 = vmatpush1.msra.mxu0 0.0
      %1942 = vmatprep.subr.mxu0 0.0
      %1943 = vmatpush1.msra.mxu0 0.0
      %1944 = vmatprep.subr.mxu0 0.0
      %1945 = vmatpush1.msra.mxu0 0.0
      %1946 = vmatprep.subr.mxu0 0.0
      %1947 = vmatpush1.msra.mxu0 0.0
      %1948 = vmatprep.subr.mxu0 0.0
      %1949 = vmatpush1.msra.mxu0 0.0
      %1950 = vmatprep.subr.mxu0 0.0
      %1951 = vmatpush1.msra.mxu0 0.0
      %1952 = vmatprep.subr.mxu0 0.0
      %1953 = vmatpush1.msra.mxu0 0.0
      %1954 = vmatprep.subr.mxu0 0.0
      %1955 = vmatpush1.msra.mxu0 0.0
      %1956 = vmatprep.subr.mxu0 0.0
      %1957 = vmatpush1.msra.mxu0 0.0
      %1958 = vmatprep.mubr.f32.mxu0 0.0
      %1959 = vmatmul.mubr.f32.gmra.mrb[0].mxu0 %v1636
      %v1960 = vpop.f32.mrb[0].mxu0
      %v1961 = vadd.f32 0.0, %v1960
      %v1962 = vpop.f32.mrb[0].mxu0
      %1963 = vdwg.mxu0
      %1964 = vset.pattern.permute.xlu0 3
      %1965 = vperm.xlu0 %1964, %v1708
      %v1966 = vpop.permute.xlu0 %1965
      %v1968 = vmul.f32 %v1961, %v1966
      %v1969 = vadd.f32 %v1884, %v1968
      %s1970 = scalar_lea.vmem %s5, 256
      %v1971 = vld [vmem:[%s1970] sm:$0xff]
      %v1972 = vld [vmem:[%s1970 + $0x8] sm:$0xff]
      %v1973 = vld [vmem:[%s1970 + $0x10] sm:$0xff]
      %v1974 = vld [vmem:[%s1970 + $0x18] sm:$0xff]
      %v1975 = vld [vmem:[%s1970 + $0x20] sm:$0xff]
      %v1976 = vld [vmem:[%s1970 + $0x28] sm:$0xff]
      %v1977 = vld [vmem:[%s1970 + $0x30] sm:$0xff]
      %v1978 = vld [vmem:[%s1970 + $0x38] sm:$0xff]
      %1979 = vmatprep.subr.mxu0 0.0
      %1980 = vmatpush1.msra.mxu0 %v1971
      %1981 = vmatprep.subr.mxu0 0.0
      %1982 = vmatpush1.msra.mxu0 %v1972
      %1983 = vmatprep.subr.mxu0 0.0
      %1984 = vmatpush1.msra.mxu0 %v1973
      %1985 = vmatprep.subr.mxu0 0.0
      %1986 = vmatpush1.msra.mxu0 %v1974
      %1987 = vmatprep.subr.mxu0 0.0
      %1988 = vmatpush1.msra.mxu0 %v1975
      %1989 = vmatprep.subr.mxu0 0.0
      %1990 = vmatpush1.msra.mxu0 %v1976
      %1991 = vmatprep.subr.mxu0 0.0
      %1992 = vmatpush1.msra.mxu0 %v1977
      %1993 = vmatprep.subr.mxu0 0.0
      %1994 = vmatpush1.msra.mxu0 %v1978
      %1995 = vmatprep.subr.mxu0 0.0
      %1996 = vmatpush1.msra.mxu0 0.0
      %1997 = vmatprep.subr.mxu0 0.0
      %1998 = vmatpush1.msra.mxu0 0.0
      %1999 = vmatprep.subr.mxu0 0.0
      %2000 = vmatpush1.msra.mxu0 0.0
      %2001 = vmatprep.subr.mxu0 0.0
      %2002 = vmatpush1.msra.mxu0 0.0
      %2003 = vmatprep.subr.mxu0 0.0
      %2004 = vmatpush1.msra.mxu0 0.0
      %2005 = vmatprep.subr.mxu0 0.0
      %2006 = vmatpush1.msra.mxu0 0.0
      %2007 = vmatprep.subr.mxu0 0.0
      %2008 = vmatpush1.msra.mxu0 0.0
      %2009 = vmatprep.subr.mxu0 0.0
      %2010 = vmatpush1.msra.mxu0 0.0
      %2011 = vmatprep.subr.mxu0 0.0
      %2012 = vmatpush1.msra.mxu0 0.0
      %2013 = vmatprep.subr.mxu0 0.0
      %2014 = vmatpush1.msra.mxu0 0.0
      %2015 = vmatprep.subr.mxu0 0.0
      %2016 = vmatpush1.msra.mxu0 0.0
      %2017 = vmatprep.subr.mxu0 0.0
      %2018 = vmatpush1.msra.mxu0 0.0
      %2019 = vmatprep.subr.mxu0 0.0
      %2020 = vmatpush1.msra.mxu0 0.0
      %2021 = vmatprep.subr.mxu0 0.0
      %2022 = vmatpush1.msra.mxu0 0.0
      %2023 = vmatprep.subr.mxu0 0.0
      %2024 = vmatpush1.msra.mxu0 0.0
      %2025 = vmatprep.subr.mxu0 0.0
      %2026 = vmatpush1.msra.mxu0 0.0
      %2027 = vmatprep.subr.mxu0 0.0
      %2028 = vmatpush1.msra.mxu0 0.0
      %2029 = vmatprep.subr.mxu0 0.0
      %2030 = vmatpush1.msra.mxu0 0.0
      %2031 = vmatprep.subr.mxu0 0.0
      %2032 = vmatpush1.msra.mxu0 0.0
      %2033 = vmatprep.subr.mxu0 0.0
      %2034 = vmatpush1.msra.mxu0 0.0
      %2035 = vmatprep.subr.mxu0 0.0
      %2036 = vmatpush1.msra.mxu0 0.0
      %2037 = vmatprep.subr.mxu0 0.0
      %2038 = vmatpush1.msra.mxu0 0.0
      %2039 = vmatprep.subr.mxu0 0.0
      %2040 = vmatpush1.msra.mxu0 0.0
      %2041 = vmatprep.subr.mxu0 0.0
      %2042 = vmatpush1.msra.mxu0 0.0
      %2043 = vmatprep.mubr.f32.mxu0 0.0
      %2044 = vmatmul.mubr.f32.gmra.mrb[0].mxu0 %v1636
      %v2045 = vpop.f32.mrb[0].mxu0
      %v2046 = vadd.f32 0.0, %v2045
      %v2047 = vpop.f32.mrb[0].mxu0
      %2048 = vdwg.mxu0
      %2049 = vset.pattern.permute.xlu0 4
      %2050 = vperm.xlu0 %2049, %v1708
      %v2051 = vpop.permute.xlu0 %2050
      %v2053 = vmul.f32 %v2046, %v2051
      %v2054 = vadd.f32 %v1969, %v2053
      %v2055 = vld [vmem:[%s15] sm:$0xff]
      %2057 = vset.pattern.permute.xlu0 0
      %2058 = vperm.xlu0 %2057, %v2055
      %v2059 = vpop.permute.xlu0 %2058
      %v2061 = vadd.f32 %v2054, %v2059
      %v2062 = vxor.u32 %v2061, 2147483648
      %v2063 = vmul.f32 %v2062, 1.442695
      %v2064 = vpow.pop %v2063
      %v2065 = vadd.f32 %v2064, 1.0
      %v2066 = vrcp.pop %v2065
      %v2067 = vmul.f32 1.0, %v2066
      %v2068 = vld [vmem:[%s2] sm:$0xff]
      %v2069 = vld [vmem:[%s2 + $0x8] sm:$0xff]
      %v2070 = vld [vmem:[%s2 + $0x10] sm:$0xff]
      %v2071 = vld [vmem:[%s2 + $0x18] sm:$0xff]
      %v2072 = vld [vmem:[%s2 + $0x20] sm:$0xff]
      %v2073 = vld [vmem:[%s2 + $0x28] sm:$0xff]
      %v2074 = vld [vmem:[%s2 + $0x30] sm:$0xff]
      %v2075 = vld [vmem:[%s2 + $0x38] sm:$0xff]
      %v2076 = vld [vmem:[%s2 + $0x40] sm:$0xff]
      %v2077 = vld [vmem:[%s2 + $0x48] sm:$0xff]
      %v2078 = vld [vmem:[%s2 + $0x50] sm:$0xff]
      %v2079 = vld [vmem:[%s2 + $0x58] sm:$0xff]
      %v2080 = vld [vmem:[%s2 + $0x60] sm:$0xff]
      %v2081 = vld [vmem:[%s2 + $0x68] sm:$0xff]
      %v2082 = vld [vmem:[%s2 + $0x70] sm:$0xff]
      %v2083 = vld [vmem:[%s2 + $0x78] sm:$0xff]
      %v2085 = vsel %vm1199, %v2067, 0
      %2087 = vmatprep.subr.mxu0 %v2069
      %2088 = vmatpush1.msra.mxu0 %v2068
      %2089 = vmatprep.subr.mxu0 %v2071
      %2090 = vmatpush1.msra.mxu0 %v2070
      %2091 = vmatprep.subr.mxu0 %v2073
      %2092 = vmatpush1.msra.mxu0 %v2072
      %2093 = vmatprep.subr.mxu0 %v2075
      %2094 = vmatpush1.msra.mxu0 %v2074
      %2095 = vmatprep.subr.mxu0 %v2077
      %2096 = vmatpush1.msra.mxu0 %v2076
      %2097 = vmatprep.subr.mxu0 %v2079
      %2098 = vmatpush1.msra.mxu0 %v2078
      %2099 = vmatprep.subr.mxu0 %v2081
      %2100 = vmatpush1.msra.mxu0 %v2080
      %2101 = vmatprep.subr.mxu0 %v2083
      %2102 = vmatpush1.msra.mxu0 %v2082
      %2103 = vmatprep.subr.mxu0 0.0
      %2104 = vmatpush1.msra.mxu0 0.0
      %2105 = vmatprep.subr.mxu0 0.0
      %2106 = vmatpush1.msra.mxu0 0.0
      %2107 = vmatprep.subr.mxu0 0.0
      %2108 = vmatpush1.msra.mxu0 0.0
      %2109 = vmatprep.subr.mxu0 0.0
      %2110 = vmatpush1.msra.mxu0 0.0
      %2111 = vmatprep.subr.mxu0 0.0
      %2112 = vmatpush1.msra.mxu0 0.0
      %2113 = vmatprep.subr.mxu0 0.0
      %2114 = vmatpush1.msra.mxu0 0.0
      %2115 = vmatprep.subr.mxu0 0.0
      %2116 = vmatpush1.msra.mxu0 0.0
      %2117 = vmatprep.subr.mxu0 0.0
      %2118 = vmatpush1.msra.mxu0 0.0
      %2119 = vmatprep.subr.mxu0 0.0
      %2120 = vmatpush1.msra.mxu0 0.0
      %2121 = vmatprep.subr.mxu0 0.0
      %2122 = vmatpush1.msra.mxu0 0.0
      %2123 = vmatprep.subr.mxu0 0.0
      %2124 = vmatpush1.msra.mxu0 0.0
      %2125 = vmatprep.subr.mxu0 0.0
      %2126 = vmatpush1.msra.mxu0 0.0
      %2127 = vmatprep.subr.mxu0 0.0
      %2128 = vmatpush1.msra.mxu0 0.0
      %2129 = vmatprep.subr.mxu0 0.0
      %2130 = vmatpush1.msra.mxu0 0.0
      %2131 = vmatprep.subr.mxu0 0.0
      %2132 = vmatpush1.msra.mxu0 0.0
      %2133 = vmatprep.subr.mxu0 0.0
      %2134 = vmatpush1.msra.mxu0 0.0
      %2135 = vmatprep.subr.mxu0 0.0
      %2136 = vmatpush1.msra.mxu0 0.0
      %2137 = vmatprep.subr.mxu0 0.0
      %2138 = vmatpush1.msra.mxu0 0.0
      %2139 = vmatprep.subr.mxu0 0.0
      %2140 = vmatpush1.msra.mxu0 0.0
      %2141 = vmatprep.subr.mxu0 0.0
      %2142 = vmatpush1.msra.mxu0 0.0
      %2143 = vmatprep.subr.mxu0 0.0
      %2144 = vmatpush1.msra.mxu0 0.0
      %2145 = vmatprep.subr.mxu0 0.0
      %2146 = vmatpush1.msra.mxu0 0.0
      %2147 = vmatprep.subr.mxu0 0.0
      %2148 = vmatpush1.msra.mxu0 0.0
      %2149 = vmatprep.subr.mxu0 0.0
      %2150 = vmatpush1.msra.mxu0 0.0
      %2151 = vmatprep.mubr.f32.mxu0 0.0
      %2152 = vmatmul.mubr.f32.gmra.mrb[0].mxu0 %v2085
      %v2153 = vpop.f32.mrb[0].mxu0
      %v2154 = vadd.f32 0.0, %v2153
      %v2155 = vpop.f32.mrb[0].mxu0
      %v2156 = vadd.f32 0.0, %v2155
      %2157 = vdwg.mxu0
      %v2158 = vmul.f32 %v1002, %v2154
      %v2159 = vmul.f32 %v1003, %v2156
      %v2160 = vld [vmem:[%s16] sm:$0x3]
      %v2161 = vld [vmem:[%s17] sm:$0x3]
      %2163 = vset.pattern.permute.xlu0 0
      %2164 = vperm.xlu0 %2163, %v2161
      %v2165 = vpop.permute.xlu0 %2164
      %vm2167 = vcmask 64512
      %v2169 = vsel %vm2167, %v2160, 0
      %2171 = vmatprep.subr.mxu0 %v2159
      %2172 = vmatpush1.msra.mxu0 %v2158
      %2173 = vmatprep.subr.mxu0 0.0
      %2174 = vmatpush1.msra.mxu0 0.0
      %2175 = vmatprep.subr.mxu0 0.0
      %2176 = vmatpush1.msra.mxu0 0.0
      %2177 = vmatprep.subr.mxu0 0.0
      %2178 = vmatpush1.msra.mxu0 0.0
      %2179 = vmatprep.subr.mxu0 0.0
      %2180 = vmatpush1.msra.mxu0 0.0
      %2181 = vmatprep.subr.mxu0 0.0
      %2182 = vmatpush1.msra.mxu0 0.0
      %2183 = vmatprep.subr.mxu0 0.0
      %2184 = vmatpush1.msra.mxu0 0.0
      %2185 = vmatprep.subr.mxu0 0.0
      %2186 = vmatpush1.msra.mxu0 0.0
      %2187 = vmatprep.subr.mxu0 0.0
      %2188 = vmatpush1.msra.mxu0 0.0
      %2189 = vmatprep.subr.mxu0 0.0
      %2190 = vmatpush1.msra.mxu0 0.0
      %2191 = vmatprep.subr.mxu0 0.0
      %2192 = vmatpush1.msra.mxu0 0.0
      %2193 = vmatprep.subr.mxu0 0.0
      %2194 = vmatpush1.msra.mxu0 0.0
      %2195 = vmatprep.subr.mxu0 0.0
      %2196 = vmatpush1.msra.mxu0 0.0
      %2197 = vmatprep.subr.mxu0 0.0
      %2198 = vmatpush1.msra.mxu0 0.0
      %2199 = vmatprep.subr.mxu0 0.0
      %2200 = vmatpush1.msra.mxu0 0.0
      %2201 = vmatprep.subr.mxu0 0.0
      %2202 = vmatpush1.msra.mxu0 0.0
      %2203 = vmatprep.subr.mxu0 0.0
      %2204 = vmatpush1.msra.mxu0 0.0
      %2205 = vmatprep.subr.mxu0 0.0
      %2206 = vmatpush1.msra.mxu0 0.0
      %2207 = vmatprep.subr.mxu0 0.0
      %2208 = vmatpush1.msra.mxu0 0.0
      %2209 = vmatprep.subr.mxu0 0.0
      %2210 = vmatpush1.msra.mxu0 0.0
      %2211 = vmatprep.subr.mxu0 0.0
      %2212 = vmatpush1.msra.mxu0 0.0
      %2213 = vmatprep.subr.mxu0 0.0
      %2214 = vmatpush1.msra.mxu0 0.0
      %2215 = vmatprep.subr.mxu0 0.0
      %2216 = vmatpush1.msra.mxu0 0.0
      %2217 = vmatprep.subr.mxu0 0.0
      %2218 = vmatpush1.msra.mxu0 0.0
      %2219 = vmatprep.subr.mxu0 0.0
      %2220 = vmatpush1.msra.mxu0 0.0
      %2221 = vmatprep.subr.mxu0 0.0
      %2222 = vmatpush1.msra.mxu0 0.0
      %2223 = vmatprep.subr.mxu0 0.0
      %2224 = vmatpush1.msra.mxu0 0.0
      %2225 = vmatprep.subr.mxu0 0.0
      %2226 = vmatpush1.msra.mxu0 0.0
      %2227 = vmatprep.subr.mxu0 0.0
      %2228 = vmatpush1.msra.mxu0 0.0
      %2229 = vmatprep.subr.mxu0 0.0
      %2230 = vmatpush1.msra.mxu0 0.0
      %2231 = vmatprep.subr.mxu0 0.0
      %2232 = vmatpush1.msra.mxu0 0.0
      %2233 = vmatprep.subr.mxu0 0.0
      %2234 = vmatpush1.msra.mxu0 0.0
      %2235 = vmatprep.mubr.f32.mxu0 0.0
      %2236 = vmatmul.mubr.f32.gmra.mrb[0].mxu0 %v2169
      %v2237 = vpop.f32.mrb[0].mxu0
      %v2238 = vadd.f32 %v2165, %v2237
      %v2239 = vpop.f32.mrb[0].mxu0
      %v2240 = vadd.f32 %v2165, %v2239
      %2241 = vdwg.mxu0
      %2242 = vrot.lane.b32.xlu0 %v2238, 17
      %v2243 = vpop.permute.xlu0 %2242
      %2244 = vrot.lane.b32.xlu0 %v2240, 17
      %v2245 = vpop.permute.xlu0 %2244
      %v2246 = vsel %vm728, %v2243, %v2245
      %v2247 = vsel %vm728, %v2245, %v2243
      %v2248 = vmul.f32 %v2247, %v736
      %v2249 = vmul.f32 %v2246, %v740
      %v2250 = vld [vmem:[%s18] sm:$0x3]
      %2252 = vset.pattern.permute.xlu0 0
      %2253 = vperm.xlu0 %2252, %v2250
      %v2254 = vpop.permute.xlu0 %2253
      %v2256 = vmul.f32 %v2248, %v2254
      %v2257 = vmul.f32 %v2249, %v2254
      %2258 = vrot.lane.b32.xlu0 %v2238, 16
      %v2259 = vpop.permute.xlu0 %2258
      %2260 = vrot.lane.b32.xlu0 %v2240, 16
      %v2261 = vpop.permute.xlu0 %2260
      %v2262 = vsel %vm757, %v2259, %v2261
      %v2263 = vsel %vm757, %v2261, %v2259
      %v2264 = vmul.f32 %v2263, %v766
      %v2265 = vmul.f32 %v2262, %v770
      %2266 = vset.pattern.permute.xlu0 1
      %2267 = vperm.xlu0 %2266, %v2250
      %v2268 = vpop.permute.xlu0 %2267
      %v2270 = vmul.f32 %v2264, %v2268
      %v2271 = vmul.f32 %v2265, %v2268
      %v2272 = vadd.f32 %v2256, %v2270
      %v2273 = vadd.f32 %v2257, %v2271
      %2274 = vrot.lane.b32.xlu0 %v2238, 15
      %v2275 = vpop.permute.xlu0 %2274
      %2276 = vrot.lane.b32.xlu0 %v2240, 15
      %v2277 = vpop.permute.xlu0 %2276
      %v2278 = vsel %vm787, %v2275, %v2277
      %v2279 = vsel %vm787, %v2277, %v2275
      %v2280 = vmul.f32 %v2279, %v796
      %v2281 = vmul.f32 %v2278, %v800
      %2282 = vset.pattern.permute.xlu0 2
      %2283 = vperm.xlu0 %2282, %v2250
      %v2284 = vpop.permute.xlu0 %2283
      %v2286 = vmul.f32 %v2280, %v2284
      %v2287 = vmul.f32 %v2281, %v2284
      %v2288 = vadd.f32 %v2272, %v2286
      %v2289 = vadd.f32 %v2273, %v2287
      %2290 = vrot.lane.b32.xlu0 %v2238, 1
      %v2291 = vpop.permute.xlu0 %2290
      %2292 = vrot.lane.b32.xlu0 %v2240, 1
      %v2293 = vpop.permute.xlu0 %2292
      %v2294 = vsel %vm817, %v2291, %v2293
      %v2295 = vsel %vm817, %v2293, %v2291
      %v2296 = vmul.f32 %v2295, %v826
      %v2297 = vmul.f32 %v2294, %v830
      %2298 = vset.pattern.permute.xlu0 3
      %2299 = vperm.xlu0 %2298, %v2250
      %v2300 = vpop.permute.xlu0 %2299
      %v2302 = vmul.f32 %v2296, %v2300
      %v2303 = vmul.f32 %v2297, %v2300
      %v2304 = vadd.f32 %v2288, %v2302
      %v2305 = vadd.f32 %v2289, %v2303
      %v2306 = vmul.f32 %v2238, %v849
      %v2307 = vmul.f32 %v2240, %v853
      %2308 = vset.pattern.permute.xlu0 4
      %2309 = vperm.xlu0 %2308, %v2250
      %v2310 = vpop.permute.xlu0 %2309
      %v2312 = vmul.f32 %v2306, %v2310
      %v2313 = vmul.f32 %v2307, %v2310
      %v2314 = vadd.f32 %v2304, %v2312
      %v2315 = vadd.f32 %v2305, %v2313
      %2316 = vrot.lane.b32.xlu0 %v2238, 127
      %v2317 = vpop.permute.xlu0 %2316
      %2318 = vrot.lane.b32.xlu0 %v2240, 127
      %v2319 = vpop.permute.xlu0 %2318
      %v2320 = vsel %vm870, %v2317, %v2319
      %v2321 = vsel %vm870, %v2319, %v2317
      %v2322 = vmul.f32 %v2320, %v879
      %v2323 = vmul.f32 %v2321, %v883
      %2324 = vset.pattern.permute.xlu0 5
      %2325 = vperm.xlu0 %2324, %v2250
      %v2326 = vpop.permute.xlu0 %2325
      %v2328 = vmul.f32 %v2322, %v2326
      %v2329 = vmul.f32 %v2323, %v2326
      %v2330 = vadd.f32 %v2314, %v2328
      %v2331 = vadd.f32 %v2315, %v2329
      %2332 = vrot.lane.b32.xlu0 %v2238, 113
      %v2333 = vpop.permute.xlu0 %2332
      %2334 = vrot.lane.b32.xlu0 %v2240, 113
      %v2335 = vpop.permute.xlu0 %2334
      %v2336 = vsel %vm900, %v2333, %v2335
      %v2337 = vsel %vm900, %v2335, %v2333
      %v2338 = vmul.f32 %v2336, %v909
      %v2339 = vmul.f32 %v2337, %v913
      %2340 = vset.pattern.permute.xlu0 6
      %2341 = vperm.xlu0 %2340, %v2250
      %v2342 = vpop.permute.xlu0 %2341
      %v2344 = vmul.f32 %v2338, %v2342
      %v2345 = vmul.f32 %v2339, %v2342
      %v2346 = vadd.f32 %v2330, %v2344
      %v2347 = vadd.f32 %v2331, %v2345
      %2348 = vrot.lane.b32.xlu0 %v2238, 112
      %v2349 = vpop.permute.xlu0 %2348
      %2350 = vrot.lane.b32.xlu0 %v2240, 112
      %v2351 = vpop.permute.xlu0 %2350
      %v2352 = vsel %vm930, %v2349, %v2351
      %v2353 = vsel %vm930, %v2351, %v2349
      %v2354 = vmul.f32 %v2352, %v939
      %v2355 = vmul.f32 %v2353, %v943
      %2356 = vset.pattern.permute.xlu0 7
      %2357 = vperm.xlu0 %2356, %v2250
      %v2358 = vpop.permute.xlu0 %2357
      %v2360 = vmul.f32 %v2354, %v2358
      %v2361 = vmul.f32 %v2355, %v2358
      %v2362 = vadd.f32 %v2346, %v2360
      %v2363 = vadd.f32 %v2347, %v2361
      %2364 = vrot.lane.b32.xlu0 %v2238, 111
      %v2365 = vpop.permute.xlu0 %2364
      %2366 = vrot.lane.b32.xlu0 %v2240, 111
      %v2367 = vpop.permute.xlu0 %2366
      %v2368 = vsel %vm960, %v2365, %v2367
      %v2369 = vsel %vm960, %v2367, %v2365
      %v2370 = vmul.f32 %v2368, %v969
      %v2371 = vmul.f32 %v2369, %v973
      %2372 = vset.pattern.permute.xlu0 8
      %2373 = vperm.xlu0 %2372, %v2250
      %v2374 = vpop.permute.xlu0 %2373
      %v2376 = vmul.f32 %v2370, %v2374
      %v2377 = vmul.f32 %v2371, %v2374
      %v2378 = vadd.f32 %v2362, %v2376
      %v2379 = vadd.f32 %v2363, %v2377
      %v2380 = vld [vmem:[%s19] sm:$0x3]
      %2382 = vset.pattern.permute.xlu0 0
      %2383 = vperm.xlu0 %2382, %v2380
      %v2384 = vpop.permute.xlu0 %2383
      %v2386 = vadd.f32 %v2378, %v2384
      %v2387 = vadd.f32 %v2379, %v2384
      %v2390 = vrot.slane %v2386, 6
      %v2391 = vrot.slane %v2387, 6
      %vm2394 = vcmask 1041408
      %v2395 = vsel %vm2394, %v2238, %v2390
      %v2396 = vsel %vm2394, %v2240, %v2391
      %v2397 = vadd.f32 %v2395, %v630
      %v2398 = vadd.f32 %v2396, %v639
      %v2401 = vcombine.low %v2397, %v2398
      %2403 = vst [vmem:[%s629] sm:$0xff] %v2401
      %p2404 = scmp.lt.s32.totalorder %s31, 1
      %s2405 = scalar_select %p2404, %s31, 1
      %s2406 = smul.addr %s2405, 2
      %s2407 = smul.addr %s2406, 4
      %s2408 = scalar_lea.vmem %s20, %s2407
      // Predicated region
      $region101: #{ghost_bottleneck_v2.1} parent=99 // pred_check
        %p2409 = pneg %p474
      $region102: #{ghost_bottleneck_v2.1} parent=99 // pred_check_branch
        %2411 = sbr.rel (%p2409) target = $region104
      $region103: #{ghost_bottleneck_v2.1} parent=99 // pred_region
        _
      $region104: #{ghost_bottleneck_v2.1} parent=99 // pred_fallthru
        _
    $region100: #{ghost_bottleneck_v2.1} parent=5 // pred_fallthru
      _
    %p2412 = scmp.le.s32.totalorder 2, %s26
    // Predicated region
    $region105: #{ghost_bottleneck_v2.1} parent=5 // pred_check
      %p2413 = pneg %p2412
    $region106: #{ghost_bottleneck_v2.1} parent=5 // pred_check_branch
      %2415 = sbr.rel (%p2413) target = $region108
    $region107: #{ghost_bottleneck_v2.1} parent=5 // pred_region
      %s2416 = ssub.s32 %s26, 2
      // Predicated region
      $region109: #{ghost_bottleneck_v2.1} parent=107 // pred_check
        %p2417 = pneg %p480
      $region110: #{ghost_bottleneck_v2.1} parent=107 // pred_check_branch
        %2419 = sbr.rel (%p2417) target = $region112
      $region111: #{ghost_bottleneck_v2.1} parent=107 // pred_region
        %p2420 = scmp.lt.s32.totalorder %s32, 1
        %s2421 = scalar_select %p2420, %s32, 1
        %s2422 = smul.addr %s2421, 2
        %s2423 = smul.addr %s2422, 4
        %s2424 = scalar_lea.vmem %s20, %s2423
      $region112: #{ghost_bottleneck_v2.1} parent=107 // pred_fallthru
        _
    $region108: #{ghost_bottleneck_v2.1} parent=5 // pred_fallthru
      _
  $region6: #{ghost_bottleneck_v2.1} parent=0 // loop_footer
    %s30 = sadd.s32 1, %s26
  $region7: #{ghost_bottleneck_v2.1} parent=0 // loop_footer_branch
    %25 = sbr.rel target = $region3
  $region8: #{ghost_bottleneck_v2.1} parent=0 // loop_exit
    _

</llo_original>
